<compile_context>
chip_gen: v6e
topology: v6e:2x2x1
jax: 0.10.0
libtpu: 0.0.40
codegen_flags: <defaults>
</compile_context>

<pallas_src>
import functools

import jax
import jax.numpy as jnp
from jax.experimental import pallas as pl
from jax.experimental.pallas import tpu as pltpu

LN_EPS = 1e-5  # torch.nn.LayerNorm default
VMEM_LIMIT = 64 * 1024 * 1024


# ----------------------------- in-kernel helpers -----------------------------

def _layernorm(x, g, b):
    x = x.astype(jnp.float32)
    mu = jnp.mean(x, axis=-1, keepdims=True)
    var = jnp.mean((x - mu) ** 2, axis=-1, keepdims=True)
    return (x - mu) * jax.lax.rsqrt(var + LN_EPS) * g + b


def _erf(x):
    # Abramowitz-Stegun 7.1.26, |err| < 1.5e-7 at f32; matches exact-erf nn.GELU().
    a1, a2, a3, a4, a5 = 0.254829592, -0.284496736, 1.421413741, -1.453152027, 1.061405429
    p = 0.3275911
    sgn = jnp.where(x >= 0.0, 1.0, -1.0)
    ax = jnp.abs(x)
    t = 1.0 / (1.0 + p * ax)
    poly = ((((a5 * t + a4) * t + a3) * t + a2) * t + a1) * t
    return sgn * (1.0 - poly * jnp.exp(-ax * ax))


def _gelu(x):
    return 0.5 * x * (1.0 + _erf(x * 0.7071067811865476))


def _row_tile(n_rows, max_tile=1024):
    """Largest multiple-of-8 divisor of n_rows that is <= max_tile (else full rows).

    NOTE: for awkward row counts with no multiple-of-8 divisor this falls back to
    a single full-size block; pad the token count in production to avoid a
    monolithic tile exceeding the VMEM budget.
    """
    best = n_rows
    for t in range(8, min(n_rows, max_tile) + 1, 8):
        if n_rows % t == 0:
            best = t
    return best


# ------------------------------ Pallas kernels -------------------------------

def patch_embed(x_flat, pos_emb, p, *, b, n_tok, row_tile):
    """LN -> Linear(bf16 MXU) -> LN -> +pos, tiled over token rows.

    x_flat: (b*n_tok, patch_dim) f32; pos_emb: (n_tok, d) f32.
    """
    m, dp = x_flat.shape
    d = p["w"].shape[1]
    nb = n_tok // row_tile

    def kernel(x_ref, g1_ref, b1_ref, w_ref, bias_ref, g2_ref, b2_ref, pos_ref, o_ref):
        xn = _layernorm(x_ref[...], g1_ref[...], b1_ref[...])
        y = jnp.dot(xn.astype(jnp.bfloat16), w_ref[...],
                    preferred_element_type=jnp.float32) + bias_ref[...]
        y = _layernorm(y, g2_ref[...], b2_ref[...])
        o_ref[...] = y + pos_ref[...]

    return pl.pallas_call(
        kernel,
        out_shape=jax.ShapeDtypeStruct((m, d), jnp.float32),
        grid=(b, nb),
        in_specs=[
            pl.BlockSpec((row_tile, dp), lambda i, j: (i * nb + j, 0)),
            pl.BlockSpec((1, dp), lambda i, j: (0, 0)),
            pl.BlockSpec((1, dp), lambda i, j: (0, 0)),
            pl.BlockSpec((dp, d), lambda i, j: (0, 0)),
            pl.BlockSpec((1, d), lambda i, j: (0, 0)),
            pl.BlockSpec((1, d), lambda i, j: (0, 0)),
            pl.BlockSpec((1, d), lambda i, j: (0, 0)),
            pl.BlockSpec((row_tile, d), lambda i, j: (j, 0)),   # pos-emb reused per batch
        ],
        out_specs=pl.BlockSpec((row_tile, d), lambda i, j: (i * nb + j, 0)),
        compiler_params=pltpu.CompilerParams(
            dimension_semantics=("parallel", "parallel"),
            vmem_limit_bytes=VMEM_LIMIT),
    )(x_flat, p["g1"], p["b1"], p["w"], p["b"], p["g2"], p["b2"], pos_emb)


def transformer_block(tokens, layer, *, heads, dim_head):
    """Fused pre-LN MHSA (+res) and pre-LN MLP (+res); one batch element per grid step.

    QKV projection and output projection are single lane-dense bf16 MXU matmuls
    (K = d, N = 3*heads*dh and K = heads*dh, N = d).  The per-head score / PV
    matmuls — which run per head on the MXU regardless of batching — are issued
    from a statically-unrolled head loop over aligned lane slices of the fused
    qkv activation; per-head outputs are lane-concatenated so the head reduction
    happens inside the output-projection contraction (MXU), not on the VPU.
    """
    b, n, d = tokens.shape
    inner = heads * dim_head
    mlp = layer["w1"].shape[1]

    def kernel(x_ref, ga_ref, ba_ref, wqkv_ref, wo_ref,
               gf_ref, bf_ref, w1_ref, b1_ref, w2_ref, b2_ref, o_ref):
        x = x_ref[0]                                                    # (n, d) f32

        # ------------------------------ attention ------------------------------
        xn = _layernorm(x, ga_ref[...], ba_ref[...]).astype(jnp.bfloat16)
        # One fused, lane-dense QKV projection (softmax scale pre-folded into Q cols).
        qkv = jnp.dot(xn, wqkv_ref[...], preferred_element_type=jnp.float32)  # (n, 3*inner)

        head_outs = []
        for h in range(heads):                                          # static unroll
            q = qkv[:, h * dim_head:(h + 1) * dim_head].astype(jnp.bfloat16)
            k = qkv[:, inner + h * dim_head: inner + (h + 1) * dim_head].astype(jnp.bfloat16)
            v = qkv[:, 2 * inner + h * dim_head: 2 * inner + (h + 1) * dim_head].astype(jnp.bfloat16)
            # bf16 x bf16 -> f32 accumulation on the MXU.
            s = jax.lax.dot_general(q, k, (((1,), (1,)), ((), ())),
                                    preferred_element_type=jnp.float32)  # (n, n)
            s = s - jnp.max(s, axis=-1, keepdims=True)
            e = jnp.exp(s)
            p_attn = e * pl.reciprocal(jnp.sum(e, axis=-1, keepdims=True), approx=True)
            head_outs.append(jnp.dot(p_attn.astype(jnp.bfloat16), v,
                                     preferred_element_type=jnp.float32))   # (n, dh)

        o = jnp.concatenate(head_outs, axis=-1)                          # (n, inner), head-major
        y = jnp.dot(o.astype(jnp.bfloat16), wo_ref[...],
                    preferred_element_type=jnp.float32)                  # (n, d)
        x = x + y                                                        # residual

        # ----------------------------- feed-forward -----------------------------
        xn2 = _layernorm(x, gf_ref[...], bf_ref[...]).astype(jnp.bfloat16)
        h1 = jnp.dot(xn2, w1_ref[...], preferred_element_type=jnp.float32) + b1_ref[...]
        h1 = _gelu(h1)
        y2 = jnp.dot(h1.astype(jnp.bfloat16), w2_ref[...],
                     preferred_element_type=jnp.float32) + b2_ref[...]
        o_ref[0] = x + y2                                                # residual

    def full(shape):
        return pl.BlockSpec(shape, lambda i, _n=len(shape): (0,) * _n)

    return pl.pallas_call(
        kernel,
        out_shape=jax.ShapeDtypeStruct((b, n, d), jnp.float32),
        grid=(b,),
        in_specs=[
            pl.BlockSpec((1, n, d), lambda i: (i, 0, 0)),
            full((1, d)), full((1, d)),
            full((d, 3 * inner)), full((inner, d)),
            full((1, d)), full((1, d)),
            full((d, mlp)), full((1, mlp)),
            full((mlp, d)), full((1, d)),
        ],
        out_specs=pl.BlockSpec((1, n, d), lambda i: (i, 0, 0)),
        compiler_params=pltpu.CompilerParams(
            dimension_semantics=("parallel",),
            vmem_limit_bytes=VMEM_LIMIT),
    )(tokens, layer["attn_g"], layer["attn_b"],
      layer["wqkv"], layer["wo"],
      layer["ff_g"], layer["ff_b"],
      layer["w1"], layer["b1"], layer["w2"], layer["b2"])


def layernorm_rows(x, p, *, row_tile):
    m, d = x.shape
    nb = m // row_tile

    def kernel(x_ref, g_ref, b_ref, o_ref):
        o_ref[...] = _layernorm(x_ref[...], g_ref[...], b_ref[...])

    return pl.pallas_call(
        kernel,
        out_shape=jax.ShapeDtypeStruct((m, d), jnp.float32),
        grid=(nb,),
        in_specs=[pl.BlockSpec((row_tile, d), lambda i: (i, 0)),
                  pl.BlockSpec((1, d), lambda i: (0, 0)),
                  pl.BlockSpec((1, d), lambda i: (0, 0))],
        out_specs=pl.BlockSpec((row_tile, d), lambda i: (i, 0)),
        compiler_params=pltpu.CompilerParams(
            dimension_semantics=("parallel",),
            vmem_limit_bytes=VMEM_LIMIT),
    )(x, p["g"], p["b"])


# ------------------------------- plain-JAX glue -------------------------------

def posemb_sincos_2d(h, w, dim, temperature=10000.0):
    y, x = jnp.meshgrid(jnp.arange(h), jnp.arange(w), indexing="ij")
    assert dim % 4 == 0
    omega = jnp.arange(dim // 4) / (dim // 4 - 1)
    omega = 1.0 / (temperature ** omega)
    y = y.reshape(-1)[:, None] * omega[None, :]
    x = x.reshape(-1)[:, None] * omega[None, :]
    return jnp.concatenate([jnp.sin(x), jnp.cos(x), jnp.sin(y), jnp.cos(y)], axis=1).astype(jnp.float32)


def image_meta_model(x, params, pos_emb, *, patch, heads, dim_head):
    b, c, hh, ww = x.shape
    ph = pw = patch
    h, w = hh // ph, ww // pw
    n_tok = h * w
    dp = ph * pw * c
    d = pos_emb.shape[-1]

    # 'b c (h p_h) (w p_w) -> (b h w) (p_h p_w c)'
    t = x.reshape(b, c, h, ph, w, pw).transpose(0, 2, 4, 3, 5, 1).reshape(b * n_tok, dp)

    tokens = patch_embed(t, pos_emb, params["pe"], b=b, n_tok=n_tok,
                         row_tile=_row_tile(n_tok))
    tokens = tokens.reshape(b, n_tok, d)

    for layer in params["layers"]:
        tokens = transformer_block(tokens, layer, heads=heads, dim_head=dim_head)

    tokens = layernorm_rows(tokens.reshape(b * n_tok, d), params["final"],
                            row_tile=_row_tile(b * n_tok))

    # '(b h w) (p_h p_w c) -> b c (h p_h) (w p_w)'
    return tokens.reshape(b, h, w, ph, pw, c).transpose(0, 5, 1, 3, 2, 4).reshape(b, c, hh, ww)


def init_params(key, *, dim, patch_dim, depth, heads, dim_head, mlp_dim):
    inner = heads * dim_head
    keys = iter(jax.random.split(key, 4 * depth + 2))

    def lin(din, dout):
        return jax.random.normal(next(keys), (din, dout), jnp.float32) * (1.0 / din) ** 0.5

    params = {
        "pe": {"g1": jnp.ones((1, patch_dim), jnp.float32),
               "b1": jnp.zeros((1, patch_dim), jnp.float32),
               "w": lin(patch_dim, dim).astype(jnp.bfloat16),
               "b": jnp.zeros((1, dim), jnp.float32),
               "g2": jnp.ones((1, dim), jnp.float32),
               "b2": jnp.zeros((1, dim), jnp.float32)},
        "layers": [],
        "final": {"g": jnp.ones((1, dim), jnp.float32), "b": jnp.zeros((1, dim), jnp.float32)},
    }
    for _ in range(depth):
        # Fused QKV weight == torch to_qkv.weight.T : columns are [q | k | v],
        # head-major inside each block (matches 'b n (h d) -> b h n d').
        wqkv = lin(dim, 3 * inner)
        # Fold the softmax scale into the Q columns BEFORE the bf16 cast.
        wqkv = wqkv.at[:, :inner].multiply(dim_head ** -0.5)
        wo = lin(inner, dim)                       # == torch to_out.weight.T (bias=False)
        params["layers"].append({
            "attn_g": jnp.ones((1, dim), jnp.float32),
            "attn_b": jnp.zeros((1, dim), jnp.float32),
            "wqkv": wqkv.astype(jnp.bfloat16),
            "wo": wo.astype(jnp.bfloat16),
            "ff_g": jnp.ones((1, dim), jnp.float32),
            "ff_b": jnp.zeros((1, dim), jnp.float32),
            "w1": lin(dim, mlp_dim).astype(jnp.bfloat16),
            "b1": jnp.zeros((1, mlp_dim), jnp.float32),
            "w2": lin(mlp_dim, dim).astype(jnp.bfloat16),
            "b2": jnp.zeros((1, dim), jnp.float32),
        })
    return params


if __name__ == "__main__":
    # Small shapes, chosen 128-lane aligned (dim = patch_dim = 128, inner = 128,
    # mlp = 256) so matmuls and output stores are lane-dense.
    b, c = 2, 8
    image_size, patch_size = 16, 4
    depth, heads, dim_head, mlp_dim = 2, 4, 32, 256
    patch_dim = c * patch_size * patch_size       # 128
    dim = patch_dim                               # ImageMetaModel sets dim = patch_dim

    key = jax.random.PRNGKey(0)
    kx, kp = jax.random.split(key)
    x = jax.random.normal(kx, (b, c, image_size, image_size), jnp.float32)

    params = init_params(kp, dim=dim, patch_dim=patch_dim, depth=depth,
                         heads=heads, dim_head=dim_head, mlp_dim=mlp_dim)
    pos_emb = posemb_sincos_2d(image_size // patch_size, image_size // patch_size, dim)

    fwd = jax.jit(functools.partial(image_meta_model, patch=patch_size,
                                    heads=heads, dim_head=dim_head))
    out = jax.block_until_ready(fwd(x, params, pos_emb))

    assert out.shape == (b, c, image_size, image_size), out.shape
    assert bool(jnp.all(jnp.isfinite(out)))
    print("KERNEL_OK")
</pallas_src>

<mosaic_0001>
module attributes {stable_mosaic.version = 11 : i64} {
  func.func @kernel(%arg0: i32, %arg1: i32, %arg2: memref<16x128xf32, #tpu.memory_space<vmem>>, %arg3: memref<1x128xf32, #tpu.memory_space<vmem>>, %arg4: memref<1x128xf32, #tpu.memory_space<vmem>>, %arg5: memref<128x128xbf16, #tpu.memory_space<vmem>>, %arg6: memref<1x128xf32, #tpu.memory_space<vmem>>, %arg7: memref<1x128xf32, #tpu.memory_space<vmem>>, %arg8: memref<1x128xf32, #tpu.memory_space<vmem>>, %arg9: memref<16x128xf32, #tpu.memory_space<vmem>>, %arg10: memref<16x128xf32, #tpu.memory_space<vmem>>) attributes {dimension_semantics = [#tpu.dimension_semantics<parallel>, #tpu.dimension_semantics<parallel>], iteration_bounds = array<i64: 2, 1>, scalar_prefetch = 0 : i64, scratch_operands = 0 : i64, tpu.core_type = #tpu.core_type<tc>, window_params = [{transform_indices = @transform_0, window_bounds = array<i64: 16, 128>}, {pipeline_mode = #tpu.pipeline_mode<synchronous>, transform_indices = @transform_1, window_bounds = array<i64: 1, 128>}, {pipeline_mode = #tpu.pipeline_mode<synchronous>, transform_indices = @transform_2, window_bounds = array<i64: 1, 128>}, {pipeline_mode = #tpu.pipeline_mode<synchronous>, transform_indices = @transform_3, window_bounds = array<i64: 128, 128>}, {pipeline_mode = #tpu.pipeline_mode<synchronous>, transform_indices = @transform_4, window_bounds = array<i64: 1, 128>}, {pipeline_mode = #tpu.pipeline_mode<synchronous>, transform_indices = @transform_5, window_bounds = array<i64: 1, 128>}, {pipeline_mode = #tpu.pipeline_mode<synchronous>, transform_indices = @transform_6, window_bounds = array<i64: 1, 128>}, {transform_indices = @transform_7, window_bounds = array<i64: 16, 128>}, {transform_indices = @transform_8, window_bounds = array<i64: 16, 128>}]} {
    %c0 = arith.constant 0 : index
    %c0_0 = arith.constant 0 : index
    %0 = vector.load %arg2[%c0, %c0_0] : memref<16x128xf32, #tpu.memory_space<vmem>>, vector<16x128xf32>
    %c0_1 = arith.constant 0 : index
    %c0_2 = arith.constant 0 : index
    %1 = vector.load %arg3[%c0_1, %c0_2] : memref<1x128xf32, #tpu.memory_space<vmem>>, vector<1x128xf32>
    %c0_3 = arith.constant 0 : index
    %c0_4 = arith.constant 0 : index
    %2 = vector.load %arg4[%c0_3, %c0_4] : memref<1x128xf32, #tpu.memory_space<vmem>>, vector<1x128xf32>
    %cst = arith.constant dense<0.000000e+00> : vector<16xf32>
    %3 = vector.multi_reduction <add>, %0, %cst [1] : vector<16x128xf32> to vector<16xf32>
    %4 = vector.shape_cast %3 : vector<16xf32> to vector<16x1xf32>
    %cst_5 = arith.constant 1.280000e+02 : f32
    %5 = vector.broadcast %cst_5 : f32 to vector<16x1xf32>
    %6 = arith.divf %4, %5 : vector<16x1xf32>
    %7 = vector.broadcast %6 : vector<16x1xf32> to vector<16x128xf32>
    %8 = arith.subf %0, %7 : vector<16x128xf32>
    %9 = arith.mulf %8, %8 : vector<16x128xf32>
    %cst_6 = arith.constant dense<0.000000e+00> : vector<16xf32>
    %10 = vector.multi_reduction <add>, %9, %cst_6 [1] : vector<16x128xf32> to vector<16xf32>
    %11 = vector.shape_cast %10 : vector<16xf32> to vector<16x1xf32>
    %cst_7 = arith.constant 1.280000e+02 : f32
    %12 = vector.broadcast %cst_7 : f32 to vector<16x1xf32>
    %13 = arith.divf %11, %12 : vector<16x1xf32>
    %14 = vector.broadcast %6 : vector<16x1xf32> to vector<16x128xf32>
    %15 = arith.subf %0, %14 : vector<16x128xf32>
    %cst_8 = arith.constant 9.99999974E-6 : f32
    %16 = vector.broadcast %cst_8 : f32 to vector<16x1xf32>
    %17 = arith.addf %13, %16 : vector<16x1xf32>
    %18 = math.rsqrt %17 : vector<16x1xf32>
    %19 = vector.broadcast %18 : vector<16x1xf32> to vector<16x128xf32>
    %20 = arith.mulf %15, %19 : vector<16x128xf32>
    %21 = vector.broadcast %1 : vector<1x128xf32> to vector<16x128xf32>
    %22 = arith.mulf %20, %21 : vector<16x128xf32>
    %23 = vector.broadcast %2 : vector<1x128xf32> to vector<16x128xf32>
    %24 = arith.addf %22, %23 : vector<16x128xf32>
    %25 = arith.truncf %24 : vector<16x128xf32> to vector<16x128xbf16>
    %c0_9 = arith.constant 0 : index
    %c0_10 = arith.constant 0 : index
    %26 = vector.load %arg5[%c0_9, %c0_10] : memref<128x128xbf16, #tpu.memory_space<vmem>>, vector<128x128xbf16>
    %cst_11 = arith.constant dense<0.000000e+00> : vector<16x128xf32>
    %27 = tpu.matmul %25, %26, %cst_11 {dimension_numbers = #tpu.dot_dimension_numbers<[1], [0], [0], [1], [0, 0, 1, 1], [], []>} : vector<16x128xbf16>, vector<128x128xbf16>, vector<16x128xf32> -> vector<16x128xf32>
    %c0_12 = arith.constant 0 : index
    %c0_13 = arith.constant 0 : index
    %28 = vector.load %arg6[%c0_12, %c0_13] : memref<1x128xf32, #tpu.memory_space<vmem>>, vector<1x128xf32>
    %29 = vector.broadcast %28 : vector<1x128xf32> to vector<16x128xf32>
    %30 = arith.addf %27, %29 : vector<16x128xf32>
    %c0_14 = arith.constant 0 : index
    %c0_15 = arith.constant 0 : index
    %31 = vector.load %arg7[%c0_14, %c0_15] : memref<1x128xf32, #tpu.memory_space<vmem>>, vector<1x128xf32>
    %c0_16 = arith.constant 0 : index
    %c0_17 = arith.constant 0 : index
    %32 = vector.load %arg8[%c0_16, %c0_17] : memref<1x128xf32, #tpu.memory_space<vmem>>, vector<1x128xf32>
    %cst_18 = arith.constant dense<0.000000e+00> : vector<16xf32>
    %33 = vector.multi_reduction <add>, %30, %cst_18 [1] : vector<16x128xf32> to vector<16xf32>
    %34 = vector.shape_cast %33 : vector<16xf32> to vector<16x1xf32>
    %cst_19 = arith.constant 1.280000e+02 : f32
    %35 = vector.broadcast %cst_19 : f32 to vector<16x1xf32>
    %36 = arith.divf %34, %35 : vector<16x1xf32>
    %37 = vector.broadcast %36 : vector<16x1xf32> to vector<16x128xf32>
    %38 = arith.subf %30, %37 : vector<16x128xf32>
    %39 = arith.mulf %38, %38 : vector<16x128xf32>
    %cst_20 = arith.constant dense<0.000000e+00> : vector<16xf32>
    %40 = vector.multi_reduction <add>, %39, %cst_20 [1] : vector<16x128xf32> to vector<16xf32>
    %41 = vector.shape_cast %40 : vector<16xf32> to vector<16x1xf32>
    %cst_21 = arith.constant 1.280000e+02 : f32
    %42 = vector.broadcast %cst_21 : f32 to vector<16x1xf32>
    %43 = arith.divf %41, %42 : vector<16x1xf32>
    %44 = vector.broadcast %36 : vector<16x1xf32> to vector<16x128xf32>
    %45 = arith.subf %30, %44 : vector<16x128xf32>
    %cst_22 = arith.constant 9.99999974E-6 : f32
    %46 = vector.broadcast %cst_22 : f32 to vector<16x1xf32>
    %47 = arith.addf %43, %46 : vector<16x1xf32>
    %48 = math.rsqrt %47 : vector<16x1xf32>
    %49 = vector.broadcast %48 : vector<16x1xf32> to vector<16x128xf32>
    %50 = arith.mulf %45, %49 : vector<16x128xf32>
    %51 = vector.broadcast %31 : vector<1x128xf32> to vector<16x128xf32>
    %52 = arith.mulf %50, %51 : vector<16x128xf32>
    %53 = vector.broadcast %32 : vector<1x128xf32> to vector<16x128xf32>
    %54 = arith.addf %52, %53 : vector<16x128xf32>
    %c0_23 = arith.constant 0 : index
    %c0_24 = arith.constant 0 : index
    %55 = vector.load %arg9[%c0_23, %c0_24] : memref<16x128xf32, #tpu.memory_space<vmem>>, vector<16x128xf32>
    %56 = arith.addf %54, %55 : vector<16x128xf32>
    %c0_25 = arith.constant 0 : index
    %c0_26 = arith.constant 0 : index
    %57 = vector.load %arg10[%c0_25, %c0_26] : memref<16x128xf32, #tpu.memory_space<vmem>>, vector<16x128xf32>
    tpu.vector_store %arg10[%c0_25, %c0_26], %56 {strides = array<i32>} : memref<16x128xf32, #tpu.memory_space<vmem>>, vector<16x128xf32>,
    return
  }
  func.func @transform_0(%arg0: i32, %arg1: i32) -> (i32, i32) {
    %c1_i32 = arith.constant 1 : i32
    %0 = arith.muli %arg0, %c1_i32 : i32
    %1 = arith.addi %0, %arg1 : i32
    %c0_i32 = arith.constant 0 : i32
    %c0_i32_0 = arith.constant 0 : i32
    return %1, %c0_i32 : i32, i32
  }
  func.func @transform_1(%arg0: i32, %arg1: i32) -> (i32, i32) {
    %c0_i32 = arith.constant 0 : i32
    %c0_i32_0 = arith.constant 0 : i32
    %c0_i32_1 = arith.constant 0 : i32
    return %c0_i32, %c0_i32_0 : i32, i32
  }
  func.func @transform_2(%arg0: i32, %arg1: i32) -> (i32, i32) {
    %c0_i32 = arith.constant 0 : i32
    %c0_i32_0 = arith.constant 0 : i32
    %c0_i32_1 = arith.constant 0 : i32
    return %c0_i32, %c0_i32_0 : i32, i32
  }
  func.func @transform_3(%arg0: i32, %arg1: i32) -> (i32, i32) {
    %c0_i32 = arith.constant 0 : i32
    %c0_i32_0 = arith.constant 0 : i32
    %c0_i32_1 = arith.constant 0 : i32
    return %c0_i32, %c0_i32_0 : i32, i32
  }
  func.func @transform_4(%arg0: i32, %arg1: i32) -> (i32, i32) {
    %c0_i32 = arith.constant 0 : i32
    %c0_i32_0 = arith.constant 0 : i32
    %c0_i32_1 = arith.constant 0 : i32
    return %c0_i32, %c0_i32_0 : i32, i32
  }
  func.func @transform_5(%arg0: i32, %arg1: i32) -> (i32, i32) {
    %c0_i32 = arith.constant 0 : i32
    %c0_i32_0 = arith.constant 0 : i32
    %c0_i32_1 = arith.constant 0 : i32
    return %c0_i32, %c0_i32_0 : i32, i32
  }
  func.func @transform_6(%arg0: i32, %arg1: i32) -> (i32, i32) {
    %c0_i32 = arith.constant 0 : i32
    %c0_i32_0 = arith.constant 0 : i32
    %c0_i32_1 = arith.constant 0 : i32
    return %c0_i32, %c0_i32_0 : i32, i32
  }
  func.func @transform_7(%arg0: i32, %arg1: i32) -> (i32, i32) {
    %c0_i32 = arith.constant 0 : i32
    %c0_i32_0 = arith.constant 0 : i32
    return %arg1, %c0_i32 : i32, i32
  }
  func.func @transform_8(%arg0: i32, %arg1: i32) -> (i32, i32) {
    %c1_i32 = arith.constant 1 : i32
    %0 = arith.muli %arg0, %c1_i32 : i32
    %1 = arith.addi %0, %arg1 : i32
    %c0_i32 = arith.constant 0 : i32
    %c0_i32_0 = arith.constant 0 : i32
    return %1, %c0_i32 : i32, i32
  }
}

module attributes {stable_mosaic.version = 11 : i64} {
  func.func @kernel(%arg0: i32, %arg1: memref<32x128xf32, #tpu.memory_space<vmem>>, %arg2: memref<1x128xf32, #tpu.memory_space<vmem>>, %arg3: memref<1x128xf32, #tpu.memory_space<vmem>>, %arg4: memref<32x128xf32, #tpu.memory_space<vmem>>) attributes {dimension_semantics = [#tpu.dimension_semantics<parallel>], iteration_bounds = array<i64: 1>, scalar_prefetch = 0 : i64, scratch_operands = 0 : i64, tpu.core_type = #tpu.core_type<tc>, window_params = [{transform_indices = @transform_0, window_bounds = array<i64: 32, 128>}, {pipeline_mode = #tpu.pipeline_mode<synchronous>, transform_indices = @transform_1, window_bounds = array<i64: 1, 128>}, {pipeline_mode = #tpu.pipeline_mode<synchronous>, transform_indices = @transform_2, window_bounds = array<i64: 1, 128>}, {transform_indices = @transform_3, window_bounds = array<i64: 32, 128>}]} {
    %c0 = arith.constant 0 : index
    %c0_0 = arith.constant 0 : index
    %0 = vector.load %arg1[%c0, %c0_0] : memref<32x128xf32, #tpu.memory_space<vmem>>, vector<32x128xf32>
    %c0_1 = arith.constant 0 : index
    %c0_2 = arith.constant 0 : index
    %1 = vector.load %arg2[%c0_1, %c0_2] : memref<1x128xf32, #tpu.memory_space<vmem>>, vector<1x128xf32>
    %c0_3 = arith.constant 0 : index
    %c0_4 = arith.constant 0 : index
    %2 = vector.load %arg3[%c0_3, %c0_4] : memref<1x128xf32, #tpu.memory_space<vmem>>, vector<1x128xf32>
    %cst = arith.constant dense<0.000000e+00> : vector<32xf32>
    %3 = vector.multi_reduction <add>, %0, %cst [1] : vector<32x128xf32> to vector<32xf32>
    %4 = vector.shape_cast %3 : vector<32xf32> to vector<32x1xf32>
    %cst_5 = arith.constant 1.280000e+02 : f32
    %5 = vector.broadcast %cst_5 : f32 to vector<32x1xf32>
    %6 = arith.divf %4, %5 : vector<32x1xf32>
    %7 = vector.broadcast %6 : vector<32x1xf32> to vector<32x128xf32>
    %8 = arith.subf %0, %7 : vector<32x128xf32>
    %9 = arith.mulf %8, %8 : vector<32x128xf32>
    %cst_6 = arith.constant dense<0.000000e+00> : vector<32xf32>
    %10 = vector.multi_reduction <add>, %9, %cst_6 [1] : vector<32x128xf32> to vector<32xf32>
    %11 = vector.shape_cast %10 : vector<32xf32> to vector<32x1xf32>
    %cst_7 = arith.constant 1.280000e+02 : f32
    %12 = vector.broadcast %cst_7 : f32 to vector<32x1xf32>
    %13 = arith.divf %11, %12 : vector<32x1xf32>
    %14 = vector.broadcast %6 : vector<32x1xf32> to vector<32x128xf32>
    %15 = arith.subf %0, %14 : vector<32x128xf32>
    %cst_8 = arith.constant 9.99999974E-6 : f32
    %16 = vector.broadcast %cst_8 : f32 to vector<32x1xf32>
    %17 = arith.addf %13, %16 : vector<32x1xf32>
    %18 = math.rsqrt %17 : vector<32x1xf32>
    %19 = vector.broadcast %18 : vector<32x1xf32> to vector<32x128xf32>
    %20 = arith.mulf %15, %19 : vector<32x128xf32>
    %21 = vector.broadcast %1 : vector<1x128xf32> to vector<32x128xf32>
    %22 = arith.mulf %20, %21 : vector<32x128xf32>
    %23 = vector.broadcast %2 : vector<1x128xf32> to vector<32x128xf32>
    %24 = arith.addf %22, %23 : vector<32x128xf32>
    %c0_9 = arith.constant 0 : index
    %c0_10 = arith.constant 0 : index
    %25 = vector.load %arg4[%c0_9, %c0_10] : memref<32x128xf32, #tpu.memory_space<vmem>>, vector<32x128xf32>
    tpu.vector_store %arg4[%c0_9, %c0_10], %24 {strides = array<i32>} : memref<32x128xf32, #tpu.memory_space<vmem>>, vector<32x128xf32>,
    return
  }
  func.func @transform_0(%arg0: i32) -> (i32, i32) {
    %c0_i32 = arith.constant 0 : i32
    %c0_i32_0 = arith.constant 0 : i32
    return %arg0, %c0_i32 : i32, i32
  }
  func.func @transform_1(%arg0: i32) -> (i32, i32) {
    %c0_i32 = arith.constant 0 : i32
    %c0_i32_0 = arith.constant 0 : i32
    %c0_i32_1 = arith.constant 0 : i32
    return %c0_i32, %c0_i32_0 : i32, i32
  }
  func.func @transform_2(%arg0: i32) -> (i32, i32) {
    %c0_i32 = arith.constant 0 : i32
    %c0_i32_0 = arith.constant 0 : i32
    %c0_i32_1 = arith.constant 0 : i32
    return %c0_i32, %c0_i32_0 : i32, i32
  }
  func.func @transform_3(%arg0: i32) -> (i32, i32) {
    %c0_i32 = arith.constant 0 : i32
    %c0_i32_0 = arith.constant 0 : i32
    return %arg0, %c0_i32 : i32, i32
  }
}

module attributes {stable_mosaic.version = 11 : i64} {
  func.func @kernel(%arg0: i32, %arg1: memref<1x16x128xf32, #tpu.memory_space<vmem>>, %arg2: memref<1x128xf32, #tpu.memory_space<vmem>>, %arg3: memref<1x128xf32, #tpu.memory_space<vmem>>, %arg4: memref<128x384xbf16, #tpu.memory_space<vmem>>, %arg5: memref<128x128xbf16, #tpu.memory_space<vmem>>, %arg6: memref<1x128xf32, #tpu.memory_space<vmem>>, %arg7: memref<1x128xf32, #tpu.memory_space<vmem>>, %arg8: memref<128x256xbf16, #tpu.memory_space<vmem>>, %arg9: memref<1x256xf32, #tpu.memory_space<vmem>>, %arg10: memref<256x128xbf16, #tpu.memory_space<vmem>>, %arg11: memref<1x128xf32, #tpu.memory_space<vmem>>, %arg12: memref<1x16x128xf32, #tpu.memory_space<vmem>>) attributes {dimension_semantics = [#tpu.dimension_semantics<parallel>], iteration_bounds = array<i64: 2>, scalar_prefetch = 0 : i64, scratch_operands = 0 : i64, tpu.core_type = #tpu.core_type<tc>, window_params = [{transform_indices = @transform_0, window_bounds = array<i64: 1, 16, 128>}, {pipeline_mode = #tpu.pipeline_mode<synchronous>, transform_indices = @transform_1, window_bounds = array<i64: 1, 128>}, {pipeline_mode = #tpu.pipeline_mode<synchronous>, transform_indices = @transform_2, window_bounds = array<i64: 1, 128>}, {pipeline_mode = #tpu.pipeline_mode<synchronous>, transform_indices = @transform_3, window_bounds = array<i64: 128, 384>}, {pipeline_mode = #tpu.pipeline_mode<synchronous>, transform_indices = @transform_4, window_bounds = array<i64: 128, 128>}, {pipeline_mode = #tpu.pipeline_mode<synchronous>, transform_indices = @transform_5, window_bounds = array<i64: 1, 128>}, {pipeline_mode = #tpu.pipeline_mode<synchronous>, transform_indices = @transform_6, window_bounds = array<i64: 1, 128>}, {pipeline_mode = #tpu.pipeline_mode<synchronous>, transform_indices = @transform_7, window_bounds = array<i64: 128, 256>}, {pipeline_mode = #tpu.pipeline_mode<synchronous>, transform_indices = @transform_8, window_bounds = array<i64: 1, 256>}, {pipeline_mode = #tpu.pipeline_mode<synchronous>, transform_indices = @transform_9, window_bounds = array<i64: 256, 128>}, {pipeline_mode = #tpu.pipeline_mode<synchronous>, transform_indices = @transform_10, window_bounds = array<i64: 1, 128>}, {transform_indices = @transform_11, window_bounds = array<i64: 1, 16, 128>}]} {
    %c0 = arith.constant 0 : index
    %c0_0 = arith.constant 0 : index
    %c0_1 = arith.constant 0 : index
    %0 = vector.load %arg1[%c0, %c0_0, %c0_1] : memref<1x16x128xf32, #tpu.memory_space<vmem>>, vector<1x16x128xf32>
    %1 = vector.shape_cast %0 : vector<1x16x128xf32> to vector<16x128xf32>
    %c0_2 = arith.constant 0 : index
    %c0_3 = arith.constant 0 : index
    %2 = vector.load %arg2[%c0_2, %c0_3] : memref<1x128xf32, #tpu.memory_space<vmem>>, vector<1x128xf32>
    %c0_4 = arith.constant 0 : index
    %c0_5 = arith.constant 0 : index
    %3 = vector.load %arg3[%c0_4, %c0_5] : memref<1x128xf32, #tpu.memory_space<vmem>>, vector<1x128xf32>
    %cst = arith.constant dense<0.000000e+00> : vector<16xf32>
    %4 = vector.multi_reduction <add>, %1, %cst [1] : vector<16x128xf32> to vector<16xf32>
    %5 = vector.shape_cast %4 : vector<16xf32> to vector<16x1xf32>
    %cst_6 = arith.constant 1.280000e+02 : f32
    %6 = vector.broadcast %cst_6 : f32 to vector<16x1xf32>
    %7 = arith.divf %5, %6 : vector<16x1xf32>
    %8 = vector.broadcast %7 : vector<16x1xf32> to vector<16x128xf32>
    %9 = arith.subf %1, %8 : vector<16x128xf32>
    %10 = arith.mulf %9, %9 : vector<16x128xf32>
    %cst_7 = arith.constant dense<0.000000e+00> : vector<16xf32>
    %11 = vector.multi_reduction <add>, %10, %cst_7 [1] : vector<16x128xf32> to vector<16xf32>
    %12 = vector.shape_cast %11 : vector<16xf32> to vector<16x1xf32>
    %cst_8 = arith.constant 1.280000e+02 : f32
    %13 = vector.broadcast %cst_8 : f32 to vector<16x1xf32>
    %14 = arith.divf %12, %13 : vector<16x1xf32>
    %15 = vector.broadcast %7 : vector<16x1xf32> to vector<16x128xf32>
    %16 = arith.subf %1, %15 : vector<16x128xf32>
    %cst_9 = arith.constant 9.99999974E-6 : f32
    %17 = vector.broadcast %cst_9 : f32 to vector<16x1xf32>
    %18 = arith.addf %14, %17 : vector<16x1xf32>
    %19 = math.rsqrt %18 : vector<16x1xf32>
    %20 = vector.broadcast %19 : vector<16x1xf32> to vector<16x128xf32>
    %21 = arith.mulf %16, %20 : vector<16x128xf32>
    %22 = vector.broadcast %2 : vector<1x128xf32> to vector<16x128xf32>
    %23 = arith.mulf %21, %22 : vector<16x128xf32>
    %24 = vector.broadcast %3 : vector<1x128xf32> to vector<16x128xf32>
    %25 = arith.addf %23, %24 : vector<16x128xf32>
    %26 = arith.truncf %25 : vector<16x128xf32> to vector<16x128xbf16>
    %c0_10 = arith.constant 0 : index
    %c0_11 = arith.constant 0 : index
    %27 = vector.load %arg4[%c0_10, %c0_11] : memref<128x384xbf16, #tpu.memory_space<vmem>>, vector<128x384xbf16>
    %cst_12 = arith.constant dense<0.000000e+00> : vector<16x384xf32>
    %28 = tpu.matmul %26, %27, %cst_12 {dimension_numbers = #tpu.dot_dimension_numbers<[1], [0], [0], [1], [0, 0, 1, 1], [], []>} : vector<16x128xbf16>, vector<128x384xbf16>, vector<16x384xf32> -> vector<16x384xf32>
    %29 = vector.extract_strided_slice %28 {offsets = [0, 0], sizes = [16, 32], strides = [1, 1]} : vector<16x384xf32> to vector<16x32xf32>
    %30 = arith.truncf %29 : vector<16x32xf32> to vector<16x32xbf16>
    %31 = vector.extract_strided_slice %28 {offsets = [0, 128], sizes = [16, 32], strides = [1, 1]} : vector<16x384xf32> to vector<16x32xf32>
    %32 = arith.truncf %31 : vector<16x32xf32> to vector<16x32xbf16>
    %33 = vector.extract_strided_slice %28 {offsets = [0, 256], sizes = [16, 32], strides = [1, 1]} : vector<16x384xf32> to vector<16x32xf32>
    %34 = arith.truncf %33 : vector<16x32xf32> to vector<16x32xbf16>
    %cst_13 = arith.constant dense<0.000000e+00> : vector<16x16xf32>
    %35 = tpu.matmul %30, %32, %cst_13 {dimension_numbers = #tpu.dot_dimension_numbers<[1], [1], [0], [0], [0, 0, 1, 0], [], []>} : vector<16x32xbf16>, vector<16x32xbf16>, vector<16x16xf32> -> vector<16x16xf32>
    %cst_14 = arith.constant dense<0xFF800000> : vector<16xf32>
    %36 = vector.multi_reduction <maximumf>, %35, %cst_14 [1] : vector<16x16xf32> to vector<16xf32>
    %37 = vector.shape_cast %36 : vector<16xf32> to vector<16x1xf32>
    %38 = vector.broadcast %37 : vector<16x1xf32> to vector<16x16xf32>
    %39 = arith.subf %35, %38 : vector<16x16xf32>
    %40 = math.exp %39 : vector<16x16xf32>
    %cst_15 = arith.constant dense<0.000000e+00> : vector<16xf32>
    %41 = vector.multi_reduction <add>, %40, %cst_15 [1] : vector<16x16xf32> to vector<16xf32>
    %42 = vector.shape_cast %41 : vector<16xf32> to vector<16x1xf32>
    %43 = tpu.reciprocal %42 {approx = true} : vector<16x1xf32> -> vector<16x1xf32>
    %44 = vector.broadcast %43 : vector<16x1xf32> to vector<16x16xf32>
    %45 = arith.mulf %40, %44 : vector<16x16xf32>
    %46 = arith.truncf %45 : vector<16x16xf32> to vector<16x16xbf16>
    %cst_16 = arith.constant dense<0.000000e+00> : vector<16x32xf32>
    %47 = tpu.matmul %46, %34, %cst_16 {dimension_numbers = #tpu.dot_dimension_numbers<[1], [0], [0], [1], [0, 0, 1, 1], [], []>} : vector<16x16xbf16>, vector<16x32xbf16>, vector<16x32xf32> -> vector<16x32xf32>
    %48 = vector.extract_strided_slice %28 {offsets = [0, 32], sizes = [16, 32], strides = [1, 1]} : vector<16x384xf32> to vector<16x32xf32>
    %49 = arith.truncf %48 : vector<16x32xf32> to vector<16x32xbf16>
    %50 = vector.extract_strided_slice %28 {offsets = [0, 160], sizes = [16, 32], strides = [1, 1]} : vector<16x384xf32> to vector<16x32xf32>
    %51 = arith.truncf %50 : vector<16x32xf32> to vector<16x32xbf16>
    %52 = vector.extract_strided_slice %28 {offsets = [0, 288], sizes = [16, 32], strides = [1, 1]} : vector<16x384xf32> to vector<16x32xf32>
    %53 = arith.truncf %52 : vector<16x32xf32> to vector<16x32xbf16>
    %cst_17 = arith.constant dense<0.000000e+00> : vector<16x16xf32>
    %54 = tpu.matmul %49, %51, %cst_17 {dimension_numbers = #tpu.dot_dimension_numbers<[1], [1], [0], [0], [0, 0, 1, 0], [], []>} : vector<16x32xbf16>, vector<16x32xbf16>, vector<16x16xf32> -> vector<16x16xf32>
    %cst_18 = arith.constant dense<0xFF800000> : vector<16xf32>
    %55 = vector.multi_reduction <maximumf>, %54, %cst_18 [1] : vector<16x16xf32> to vector<16xf32>
    %56 = vector.shape_cast %55 : vector<16xf32> to vector<16x1xf32>
    %57 = vector.broadcast %56 : vector<16x1xf32> to vector<16x16xf32>
    %58 = arith.subf %54, %57 : vector<16x16xf32>
    %59 = math.exp %58 : vector<16x16xf32>
    %cst_19 = arith.constant dense<0.000000e+00> : vector<16xf32>
    %60 = vector.multi_reduction <add>, %59, %cst_19 [1] : vector<16x16xf32> to vector<16xf32>
    %61 = vector.shape_cast %60 : vector<16xf32> to vector<16x1xf32>
    %62 = tpu.reciprocal %61 {approx = true} : vector<16x1xf32> -> vector<16x1xf32>
    %63 = vector.broadcast %62 : vector<16x1xf32> to vector<16x16xf32>
    %64 = arith.mulf %59, %63 : vector<16x16xf32>
    %65 = arith.truncf %64 : vector<16x16xf32> to vector<16x16xbf16>
    %cst_20 = arith.constant dense<0.000000e+00> : vector<16x32xf32>
    %66 = tpu.matmul %65, %53, %cst_20 {dimension_numbers = #tpu.dot_dimension_numbers<[1], [0], [0], [1], [0, 0, 1, 1], [], []>} : vector<16x16xbf16>, vector<16x32xbf16>, vector<16x32xf32> -> vector<16x32xf32>
    %67 = vector.extract_strided_slice %28 {offsets = [0, 64], sizes = [16, 32], strides = [1, 1]} : vector<16x384xf32> to vector<16x32xf32>
    %68 = arith.truncf %67 : vector<16x32xf32> to vector<16x32xbf16>
    %69 = vector.extract_strided_slice %28 {offsets = [0, 192], sizes = [16, 32], strides = [1, 1]} : vector<16x384xf32> to vector<16x32xf32>
    %70 = arith.truncf %69 : vector<16x32xf32> to vector<16x32xbf16>
    %71 = vector.extract_strided_slice %28 {offsets = [0, 320], sizes = [16, 32], strides = [1, 1]} : vector<16x384xf32> to vector<16x32xf32>
    %72 = arith.truncf %71 : vector<16x32xf32> to vector<16x32xbf16>
    %cst_21 = arith.constant dense<0.000000e+00> : vector<16x16xf32>
    %73 = tpu.matmul %68, %70, %cst_21 {dimension_numbers = #tpu.dot_dimension_numbers<[1], [1], [0], [0], [0, 0, 1, 0], [], []>} : vector<16x32xbf16>, vector<16x32xbf16>, vector<16x16xf32> -> vector<16x16xf32>
    %cst_22 = arith.constant dense<0xFF800000> : vector<16xf32>
    %74 = vector.multi_reduction <maximumf>, %73, %cst_22 [1] : vector<16x16xf32> to vector<16xf32>
    %75 = vector.shape_cast %74 : vector<16xf32> to vector<16x1xf32>
    %76 = vector.broadcast %75 : vector<16x1xf32> to vector<16x16xf32>
    %77 = arith.subf %73, %76 : vector<16x16xf32>
    %78 = math.exp %77 : vector<16x16xf32>
    %cst_23 = arith.constant dense<0.000000e+00> : vector<16xf32>
    %79 = vector.multi_reduction <add>, %78, %cst_23 [1] : vector<16x16xf32> to vector<16xf32>
    %80 = vector.shape_cast %79 : vector<16xf32> to vector<16x1xf32>
    %81 = tpu.reciprocal %80 {approx = true} : vector<16x1xf32> -> vector<16x1xf32>
    %82 = vector.broadcast %81 : vector<16x1xf32> to vector<16x16xf32>
    %83 = arith.mulf %78, %82 : vector<16x16xf32>
    %84 = arith.truncf %83 : vector<16x16xf32> to vector<16x16xbf16>
    %cst_24 = arith.constant dense<0.000000e+00> : vector<16x32xf32>
    %85 = tpu.matmul %84, %72, %cst_24 {dimension_numbers = #tpu.dot_dimension_numbers<[1], [0], [0], [1], [0, 0, 1, 1], [], []>} : vector<16x16xbf16>, vector<16x32xbf16>, vector<16x32xf32> -> vector<16x32xf32>
    %86 = vector.extract_strided_slice %28 {offsets = [0, 96], sizes = [16, 32], strides = [1, 1]} : vector<16x384xf32> to vector<16x32xf32>
    %87 = arith.truncf %86 : vector<16x32xf32> to vector<16x32xbf16>
    %88 = vector.extract_strided_slice %28 {offsets = [0, 224], sizes = [16, 32], strides = [1, 1]} : vector<16x384xf32> to vector<16x32xf32>
    %89 = arith.truncf %88 : vector<16x32xf32> to vector<16x32xbf16>
    %90 = vector.extract_strided_slice %28 {offsets = [0, 352], sizes = [16, 32], strides = [1, 1]} : vector<16x384xf32> to vector<16x32xf32>
    %91 = arith.truncf %90 : vector<16x32xf32> to vector<16x32xbf16>
    %cst_25 = arith.constant dense<0.000000e+00> : vector<16x16xf32>
    %92 = tpu.matmul %87, %89, %cst_25 {dimension_numbers = #tpu.dot_dimension_numbers<[1], [1], [0], [0], [0, 0, 1, 0], [], []>} : vector<16x32xbf16>, vector<16x32xbf16>, vector<16x16xf32> -> vector<16x16xf32>
    %cst_26 = arith.constant dense<0xFF800000> : vector<16xf32>
    %93 = vector.multi_reduction <maximumf>, %92, %cst_26 [1] : vector<16x16xf32> to vector<16xf32>
    %94 = vector.shape_cast %93 : vector<16xf32> to vector<16x1xf32>
    %95 = vector.broadcast %94 : vector<16x1xf32> to vector<16x16xf32>
    %96 = arith.subf %92, %95 : vector<16x16xf32>
    %97 = math.exp %96 : vector<16x16xf32>
    %cst_27 = arith.constant dense<0.000000e+00> : vector<16xf32>
    %98 = vector.multi_reduction <add>, %97, %cst_27 [1] : vector<16x16xf32> to vector<16xf32>
    %99 = vector.shape_cast %98 : vector<16xf32> to vector<16x1xf32>
    %100 = tpu.reciprocal %99 {approx = true} : vector<16x1xf32> -> vector<16x1xf32>
    %101 = vector.broadcast %100 : vector<16x1xf32> to vector<16x16xf32>
    %102 = arith.mulf %97, %101 : vector<16x16xf32>
    %103 = arith.truncf %102 : vector<16x16xf32> to vector<16x16xbf16>
    %cst_28 = arith.constant dense<0.000000e+00> : vector<16x32xf32>
    %104 = tpu.matmul %103, %91, %cst_28 {dimension_numbers = #tpu.dot_dimension_numbers<[1], [0], [0], [1], [0, 0, 1, 1], [], []>} : vector<16x16xbf16>, vector<16x32xbf16>, vector<16x32xf32> -> vector<16x32xf32>
    %105 = tpu.concatenate %47, %66, %85, %104 in 1 : vector<16x32xf32>, vector<16x32xf32>, vector<16x32xf32>, vector<16x32xf32> -> vector<16x128xf32>
    %106 = arith.truncf %105 : vector<16x128xf32> to vector<16x128xbf16>
    %c0_29 = arith.constant 0 : index
    %c0_30 = arith.constant 0 : index
    %107 = vector.load %arg5[%c0_29, %c0_30] : memref<128x128xbf16, #tpu.memory_space<vmem>>, vector<128x128xbf16>
    %cst_31 = arith.constant dense<0.000000e+00> : vector<16x128xf32>
    %108 = tpu.matmul %106, %107, %cst_31 {dimension_numbers = #tpu.dot_dimension_numbers<[1], [0], [0], [1], [0, 0, 1, 1], [], []>} : vector<16x128xbf16>, vector<128x128xbf16>, vector<16x128xf32> -> vector<16x128xf32>
    %109 = arith.addf %1, %108 : vector<16x128xf32>
    %c0_32 = arith.constant 0 : index
    %c0_33 = arith.constant 0 : index
    %110 = vector.load %arg6[%c0_32, %c0_33] : memref<1x128xf32, #tpu.memory_space<vmem>>, vector<1x128xf32>
    %c0_34 = arith.constant 0 : index
    %c0_35 = arith.constant 0 : index
    %111 = vector.load %arg7[%c0_34, %c0_35] : memref<1x128xf32, #tpu.memory_space<vmem>>, vector<1x128xf32>
    %cst_36 = arith.constant dense<0.000000e+00> : vector<16xf32>
    %112 = vector.multi_reduction <add>, %109, %cst_36 [1] : vector<16x128xf32> to vector<16xf32>
    %113 = vector.shape_cast %112 : vector<16xf32> to vector<16x1xf32>
    %cst_37 = arith.constant 1.280000e+02 : f32
    %114 = vector.broadcast %cst_37 : f32 to vector<16x1xf32>
    %115 = arith.divf %113, %114 : vector<16x1xf32>
    %116 = vector.broadcast %115 : vector<16x1xf32> to vector<16x128xf32>
    %117 = arith.subf %109, %116 : vector<16x128xf32>
    %118 = arith.mulf %117, %117 : vector<16x128xf32>
    %cst_38 = arith.constant dense<0.000000e+00> : vector<16xf32>
    %119 = vector.multi_reduction <add>, %118, %cst_38 [1] : vector<16x128xf32> to vector<16xf32>
    %120 = vector.shape_cast %119 : vector<16xf32> to vector<16x1xf32>
    %cst_39 = arith.constant 1.280000e+02 : f32
    %121 = vector.broadcast %cst_39 : f32 to vector<16x1xf32>
    %122 = arith.divf %120, %121 : vector<16x1xf32>
    %123 = vector.broadcast %115 : vector<16x1xf32> to vector<16x128xf32>
    %124 = arith.subf %109, %123 : vector<16x128xf32>
    %cst_40 = arith.constant 9.99999974E-6 : f32
    %125 = vector.broadcast %cst_40 : f32 to vector<16x1xf32>
    %126 = arith.addf %122, %125 : vector<16x1xf32>
    %127 = math.rsqrt %126 : vector<16x1xf32>
    %128 = vector.broadcast %127 : vector<16x1xf32> to vector<16x128xf32>
    %129 = arith.mulf %124, %128 : vector<16x128xf32>
    %130 = vector.broadcast %110 : vector<1x128xf32> to vector<16x128xf32>
    %131 = arith.mulf %129, %130 : vector<16x128xf32>
    %132 = vector.broadcast %111 : vector<1x128xf32> to vector<16x128xf32>
    %133 = arith.addf %131, %132 : vector<16x128xf32>
    %134 = arith.truncf %133 : vector<16x128xf32> to vector<16x128xbf16>
    %c0_41 = arith.constant 0 : index
    %c0_42 = arith.constant 0 : index
    %135 = vector.load %arg8[%c0_41, %c0_42] : memref<128x256xbf16, #tpu.memory_space<vmem>>, vector<128x256xbf16>
    %cst_43 = arith.constant dense<0.000000e+00> : vector<16x256xf32>
    %136 = tpu.matmul %134, %135, %cst_43 {dimension_numbers = #tpu.dot_dimension_numbers<[1], [0], [0], [1], [0, 0, 1, 1], [], []>} : vector<16x128xbf16>, vector<128x256xbf16>, vector<16x256xf32> -> vector<16x256xf32>
    %c0_44 = arith.constant 0 : index
    %c0_45 = arith.constant 0 : index
    %137 = vector.load %arg9[%c0_44, %c0_45] : memref<1x256xf32, #tpu.memory_space<vmem>>, vector<1x256xf32>
    %138 = vector.broadcast %137 : vector<1x256xf32> to vector<16x256xf32>
    %139 = arith.addf %136, %138 : vector<16x256xf32>
    %cst_46 = arith.constant 5.000000e-01 : f32
    %140 = vector.broadcast %cst_46 : f32 to vector<16x256xf32>
    %141 = arith.mulf %140, %139 : vector<16x256xf32>
    %cst_47 = arith.constant 0.707106769 : f32
    %142 = vector.broadcast %cst_47 : f32 to vector<16x256xf32>
    %143 = arith.mulf %139, %142 : vector<16x256xf32>
    %cst_48 = arith.constant 0.000000e+00 : f32
    %144 = vector.broadcast %cst_48 : f32 to vector<16x256xf32>
    %145 = arith.cmpf oge, %143, %144 : vector<16x256xf32>
    %cst_49 = arith.constant 1.000000e+00 : f32
    %cst_50 = arith.constant -1.000000e+00 : f32
    %146 = vector.broadcast %cst_49 : f32 to vector<16x256xf32>
    %147 = vector.broadcast %cst_50 : f32 to vector<16x256xf32>
    %148 = arith.select %145, %146, %147 : vector<16x256xi1>, vector<16x256xf32>
    %149 = math.absf %143 : vector<16x256xf32>
    %cst_51 = arith.constant 0.327591091 : f32
    %150 = vector.broadcast %cst_51 : f32 to vector<16x256xf32>
    %151 = arith.mulf %150, %149 : vector<16x256xf32>
    %cst_52 = arith.constant 1.000000e+00 : f32
    %152 = vector.broadcast %cst_52 : f32 to vector<16x256xf32>
    %153 = arith.addf %152, %151 : vector<16x256xf32>
    %cst_53 = arith.constant 1.000000e+00 : f32
    %154 = vector.broadcast %cst_53 : f32 to vector<16x256xf32>
    %155 = arith.divf %154, %153 : vector<16x256xf32>
    %cst_54 = arith.constant 1.06140542 : f32
    %156 = vector.broadcast %cst_54 : f32 to vector<16x256xf32>
    %157 = arith.mulf %156, %155 : vector<16x256xf32>
    %cst_55 = arith.constant -1.45315206 : f32
    %158 = vector.broadcast %cst_55 : f32 to vector<16x256xf32>
    %159 = arith.addf %157, %158 : vector<16x256xf32>
    %160 = arith.mulf %159, %155 : vector<16x256xf32>
    %cst_56 = arith.constant 1.42141378 : f32
    %161 = vector.broadcast %cst_56 : f32 to vector<16x256xf32>
    %162 = arith.addf %160, %161 : vector<16x256xf32>
    %163 = arith.mulf %162, %155 : vector<16x256xf32>
    %cst_57 = arith.constant -0.284496725 : f32
    %164 = vector.broadcast %cst_57 : f32 to vector<16x256xf32>
    %165 = arith.addf %163, %164 : vector<16x256xf32>
    %166 = arith.mulf %165, %155 : vector<16x256xf32>
    %cst_58 = arith.constant 0.254829586 : f32
    %167 = vector.broadcast %cst_58 : f32 to vector<16x256xf32>
    %168 = arith.addf %166, %167 : vector<16x256xf32>
    %169 = arith.mulf %168, %155 : vector<16x256xf32>
    %cst_59 = arith.constant 0.000000e+00 : f32
    %170 = vector.broadcast %cst_59 : f32 to vector<16x256xf32>
    %171 = arith.subf %170, %149 : vector<16x256xf32>
    %172 = arith.mulf %171, %149 : vector<16x256xf32>
    %173 = math.exp %172 : vector<16x256xf32>
    %174 = arith.mulf %169, %173 : vector<16x256xf32>
    %cst_60 = arith.constant 1.000000e+00 : f32
    %175 = vector.broadcast %cst_60 : f32 to vector<16x256xf32>
    %176 = arith.subf %175, %174 : vector<16x256xf32>
    %177 = arith.mulf %148, %176 : vector<16x256xf32>
    %cst_61 = arith.constant 1.000000e+00 : f32
    %178 = vector.broadcast %cst_61 : f32 to vector<16x256xf32>
    %179 = arith.addf %178, %177 : vector<16x256xf32>
    %180 = arith.mulf %141, %179 : vector<16x256xf32>
    %181 = arith.truncf %180 : vector<16x256xf32> to vector<16x256xbf16>
    %c0_62 = arith.constant 0 : index
    %c0_63 = arith.constant 0 : index
    %182 = vector.load %arg10[%c0_62, %c0_63] : memref<256x128xbf16, #tpu.memory_space<vmem>>, vector<256x128xbf16>
    %cst_64 = arith.constant dense<0.000000e+00> : vector<16x128xf32>
    %183 = tpu.matmul %181, %182, %cst_64 {dimension_numbers = #tpu.dot_dimension_numbers<[1], [0], [0], [1], [0, 0, 1, 1], [], []>} : vector<16x256xbf16>, vector<256x128xbf16>, vector<16x128xf32> -> vector<16x128xf32>
    %c0_65 = arith.constant 0 : index
    %c0_66 = arith.constant 0 : index
    %184 = vector.load %arg11[%c0_65, %c0_66] : memref<1x128xf32, #tpu.memory_space<vmem>>, vector<1x128xf32>
    %185 = vector.broadcast %184 : vector<1x128xf32> to vector<16x128xf32>
    %186 = arith.addf %183, %185 : vector<16x128xf32>
    %187 = arith.addf %109, %186 : vector<16x128xf32>
    %c0_67 = arith.constant 0 : index
    %c0_68 = arith.constant 0 : index
    %c0_69 = arith.constant 0 : index
    %188 = vector.load %arg12[%c0_67, %c0_68, %c0_69] : memref<1x16x128xf32, #tpu.memory_space<vmem>>, vector<1x16x128xf32>
    %189 = vector.shape_cast %188 : vector<1x16x128xf32> to vector<16x128xf32>
    %190 = vector.shape_cast %187 : vector<16x128xf32> to vector<1x16x128xf32>
    tpu.vector_store %arg12[%c0_67, %c0_68, %c0_69], %190 {strides = array<i32>} : memref<1x16x128xf32, #tpu.memory_space<vmem>>, vector<1x16x128xf32>,
    return
  }
  func.func @transform_0(%arg0: i32) -> (i32, i32, i32) {
    %c0_i32 = arith.constant 0 : i32
    %c0_i32_0 = arith.constant 0 : i32
    %c0_i32_1 = arith.constant 0 : i32
    return %arg0, %c0_i32, %c0_i32_0 : i32, i32, i32
  }
  func.func @transform_1(%arg0: i32) -> (i32, i32) {
    %c0_i32 = arith.constant 0 : i32
    %c0_i32_0 = arith.constant 0 : i32
    %c0_i32_1 = arith.constant 0 : i32
    return %c0_i32, %c0_i32_0 : i32, i32
  }
  func.func @transform_2(%arg0: i32) -> (i32, i32) {
    %c0_i32 = arith.constant 0 : i32
    %c0_i32_0 = arith.constant 0 : i32
    %c0_i32_1 = arith.constant 0 : i32
    return %c0_i32, %c0_i32_0 : i32, i32
  }
  func.func @transform_3(%arg0: i32) -> (i32, i32) {
    %c0_i32 = arith.constant 0 : i32
    %c0_i32_0 = arith.constant 0 : i32
    %c0_i32_1 = arith.constant 0 : i32
    return %c0_i32, %c0_i32_0 : i32, i32
  }
  func.func @transform_4(%arg0: i32) -> (i32, i32) {
    %c0_i32 = arith.constant 0 : i32
    %c0_i32_0 = arith.constant 0 : i32
    %c0_i32_1 = arith.constant 0 : i32
    return %c0_i32, %c0_i32_0 : i32, i32
  }
  func.func @transform_5(%arg0: i32) -> (i32, i32) {
    %c0_i32 = arith.constant 0 : i32
    %c0_i32_0 = arith.constant 0 : i32
    %c0_i32_1 = arith.constant 0 : i32
    return %c0_i32, %c0_i32_0 : i32, i32
  }
  func.func @transform_6(%arg0: i32) -> (i32, i32) {
    %c0_i32 = arith.constant 0 : i32
    %c0_i32_0 = arith.constant 0 : i32
    %c0_i32_1 = arith.constant 0 : i32
    return %c0_i32, %c0_i32_0 : i32, i32
  }
  func.func @transform_7(%arg0: i32) -> (i32, i32) {
    %c0_i32 = arith.constant 0 : i32
    %c0_i32_0 = arith.constant 0 : i32
    %c0_i32_1 = arith.constant 0 : i32
    return %c0_i32, %c0_i32_0 : i32, i32
  }
  func.func @transform_8(%arg0: i32) -> (i32, i32) {
    %c0_i32 = arith.constant 0 : i32
    %c0_i32_0 = arith.constant 0 : i32
    %c0_i32_1 = arith.constant 0 : i32
    return %c0_i32, %c0_i32_0 : i32, i32
  }
  func.func @transform_9(%arg0: i32) -> (i32, i32) {
    %c0_i32 = arith.constant 0 : i32
    %c0_i32_0 = arith.constant 0 : i32
    %c0_i32_1 = arith.constant 0 : i32
    return %c0_i32, %c0_i32_0 : i32, i32
  }
  func.func @transform_10(%arg0: i32) -> (i32, i32) {
    %c0_i32 = arith.constant 0 : i32
    %c0_i32_0 = arith.constant 0 : i32
    %c0_i32_1 = arith.constant 0 : i32
    return %c0_i32, %c0_i32_0 : i32, i32
  }
  func.func @transform_11(%arg0: i32) -> (i32, i32, i32) {
    %c0_i32 = arith.constant 0 : i32
    %c0_i32_0 = arith.constant 0 : i32
    %c0_i32_1 = arith.constant 0 : i32
    return %arg0, %c0_i32, %c0_i32_0 : i32, i32, i32
  }
}

</mosaic_0001>

<llo_original>
// kernel: image_meta_model.7
$region0: #{image_meta_model.7}
  #allocation0 [shape = 'u32[]', space=smem, size = 0x4, offset = 0x4, fixed_abs, tag = 'smem constant byte address 0x4 - core index']
  #allocation1 [shape = 'u32[144,128]{1,0:T(1,128)}', space=vmem, size = 0x12000, scoped, tag = 'internal scratch']
  %s0 = inlined_call_operand.vmem [shape: f32[32,128], index: 0, kind: input, shape index: {}]
  %s1 = inlined_call_operand.vmem [shape: f32[1,128], index: 1, kind: input, shape index: {}]
  %s2 = inlined_call_operand.vmem [shape: f32[1,128], index: 2, kind: input, shape index: {}]
  %s3 = inlined_call_operand.vmem [shape: f32[32,128], index: 3, kind: output, shape index: {}]
  %s4 = sld [smem:[#allocation0]]
  $region22: #{image_meta_model.7} parent=0
    _
  %s6 = ssub.s32 1, %s4
  %s7 = scalar_select 0, %s6, %s4
  // Predicated region
  $region2: #{image_meta_model.7} parent=0 // pred_check
    _
  $region3: #{image_meta_model.7} parent=0 // pred_check_branch
    %9 = sbr.rel (0) target = $region5
  $region4: #{image_meta_model.7} parent=0 // pred_region
    _
  $region5: #{image_meta_model.7} parent=0 // pred_fallthru
    _
  // Predicated region
  $region6: #{image_meta_model.7} parent=0 // pred_check
    _
  $region7: #{image_meta_model.7} parent=0 // pred_check_branch
    %11 = sbr.rel (0) target = $region9
  $region8: #{image_meta_model.7} parent=0 // pred_region
    _
  $region9: #{image_meta_model.7} parent=0 // pred_fallthru
    _
  // Predicated region
  $region10: #{image_meta_model.7} parent=0 // pred_check
    _
  $region11: #{image_meta_model.7} parent=0 // pred_check_branch
    %13 = sbr.rel (0) target = $region13
  $region12: #{image_meta_model.7} parent=0 // pred_region
    _
  $region13: #{image_meta_model.7} parent=0 // pred_fallthru
    _
  %v14 = vld [vmem:[%s0] sm:$0xff]
  %v15 = vld [vmem:[%s0 + $0x8] sm:$0xff]
  %v16 = vld [vmem:[%s0 + $0x10] sm:$0xff]
  %v17 = vld [vmem:[%s0 + $0x18] sm:$0xff]
  %v18 = vld [vmem:[%s1] sm:$0x1]
  %v19 = vld [vmem:[%s2] sm:$0x1]
  %20 = vadd.xlane.f32.xlu0 %v14
  %v21 = vpop.xlane.xlu0 %20
  %22 = vadd.xlane.f32.xlu0 %v15
  %v23 = vpop.xlane.xlu0 %22
  %24 = vadd.xlane.f32.xlu0 %v16
  %v25 = vpop.xlane.xlu0 %24
  %26 = vadd.xlane.f32.xlu0 %v17
  %v27 = vpop.xlane.xlu0 %26
  %v28 = vrcp.pop 128.0
  %v29 = vmul.f32 %v21, %v28
  %v30 = vmul.f32 %v23, %v28
  %v31 = vmul.f32 %v25, %v28
  %v32 = vmul.f32 %v27, %v28
  %v33 = vsub.f32 %v14, %v29
  %v34 = vsub.f32 %v15, %v30
  %v35 = vsub.f32 %v16, %v31
  %v36 = vsub.f32 %v17, %v32
  %v37 = vmul.f32 %v33, %v33
  %v38 = vmul.f32 %v34, %v34
  %v39 = vmul.f32 %v35, %v35
  %v40 = vmul.f32 %v36, %v36
  %41 = vadd.xlane.f32.xlu0 %v37
  %v42 = vpop.xlane.xlu0 %41
  %43 = vadd.xlane.f32.xlu0 %v38
  %v44 = vpop.xlane.xlu0 %43
  %45 = vadd.xlane.f32.xlu0 %v39
  %v46 = vpop.xlane.xlu0 %45
  %47 = vadd.xlane.f32.xlu0 %v40
  %v48 = vpop.xlane.xlu0 %47
  %v49 = vmul.f32 %v42, %v28
  %v50 = vmul.f32 %v44, %v28
  %v51 = vmul.f32 %v46, %v28
  %v52 = vmul.f32 %v48, %v28
  %v53 = vadd.f32 %v49, 1e-05
  %v54 = vadd.f32 %v50, 1e-05
  %v55 = vadd.f32 %v51, 1e-05
  %v56 = vadd.f32 %v52, 1e-05
  %v57 = vrsqrt.pop %v53
  %v58 = vrsqrt.pop %v54
  %v59 = vrsqrt.pop %v55
  %v60 = vrsqrt.pop %v56
  %v61 = vmul.f32 %v33, %v57
  %v62 = vmul.f32 %v34, %v58
  %v63 = vmul.f32 %v35, %v59
  %v64 = vmul.f32 %v36, %v60
  %v66 = vlaneseq
  %v67 = vshrl.u32 %v66, 7
  %v68 = vsub.s32 0, %v67
  %v69 = vrot.slane %v18, %v68
  %v71 = vmul.f32 %v61, %v69
  %v72 = vmul.f32 %v62, %v69
  %v73 = vmul.f32 %v63, %v69
  %v74 = vmul.f32 %v64, %v69
  %v76 = vlaneseq
  %v77 = vshrl.u32 %v76, 7
  %v78 = vsub.s32 0, %v77
  %v79 = vrot.slane %v19, %v78
  %v81 = vadd.f32 %v71, %v79
  %v82 = vadd.f32 %v72, %v79
  %v83 = vadd.f32 %v73, %v79
  %v84 = vadd.f32 %v74, %v79
  %85 = vst [vmem:[%s3] sm:$0xff] %v81
  %86 = vst [vmem:[%s3 + $0x8] sm:$0xff] %v82
  %87 = vst [vmem:[%s3 + $0x10] sm:$0xff] %v83
  %88 = vst [vmem:[%s3 + $0x18] sm:$0xff] %v84
  // Predicated region
  $region14: #{image_meta_model.7} parent=0 // pred_check
    _
  $region15: #{image_meta_model.7} parent=0 // pred_check_branch
    %90 = sbr.rel (0) target = $region17
  $region16: #{image_meta_model.7} parent=0 // pred_region
    _
  $region17: #{image_meta_model.7} parent=0 // pred_fallthru
    _
  // Predicated region
  $region18: #{image_meta_model.7} parent=0 // pred_check
    _
  $region19: #{image_meta_model.7} parent=0 // pred_check_branch
    %92 = sbr.rel (0) target = $region21
  $region20: #{image_meta_model.7} parent=0 // pred_region
    _
  $region21: #{image_meta_model.7} parent=0 // pred_fallthru
    _

// kernel: image_meta_model.4
$region0: #{image_meta_model.4}
  #allocation0 [shape = 'u32[]', space=smem, size = 0x4, offset = 0x4, fixed_abs, tag = 'smem constant byte address 0x4 - core index']
  #allocation1 [shape = 'u32[144,128]{1,0:T(1,128)}', space=vmem, size = 0x12000, scoped, tag = 'internal scratch']
  %s0 = inlined_call_operand.vmem [shape: f32[32,128], index: 0, kind: input, shape index: {}]
  %s1 = inlined_call_operand.vmem [shape: f32[1,128], index: 1, kind: input, shape index: {}]
  %s2 = inlined_call_operand.vmem [shape: f32[1,128], index: 2, kind: input, shape index: {}]
  %s3 = inlined_call_operand.vmem [shape: bf16[128,128], index: 3, kind: input, shape index: {}]
  %s4 = inlined_call_operand.vmem [shape: f32[1,128], index: 4, kind: input, shape index: {}]
  %s5 = inlined_call_operand.vmem [shape: f32[1,128], index: 5, kind: input, shape index: {}]
  %s6 = inlined_call_operand.vmem [shape: f32[1,128], index: 6, kind: input, shape index: {}]
  %s7 = inlined_call_operand.vmem [shape: f32[16,128], index: 7, kind: input, shape index: {}]
  %s8 = inlined_call_operand.vmem [shape: f32[32,128], index: 8, kind: output, shape index: {}]
  %s9 = sld [smem:[#allocation0]]
  $region65: #{image_meta_model.4} parent=0
    _
  %s11 = ssub.s32 1, %s9
  %s12 = scalar_select 0, %s11, %s9
  loop: start=0, step=1, limit=4
  $region2: #{image_meta_model.4} parent=0 // loop_pre_header
    _
  $region3: #{image_meta_model.4} parent=0 // loop_header
    %s14 = sphi 0, %s18
    %p15 = scmp.ge.s32.totalorder %s14, 4
    %s21 = sphi 0, %s33
    %s22 = sphi 0, %s29
    %s23 = sphi 0, %s21
    %s24 = sphi 0, %s22
    %s25 = sphi 0, %s23
    %s26 = sphi 0, %s24
    %s38 = sphi 0, %s40
    %s41 = sphi 0, %s38
    %s42 = sphi 0, %s41
    %s58 = sphi 0, %s42
    %s62 = sphi 0, %s62
    %s64 = sphi 0, %s62
    %s65 = sphi 0, %s64
    %s79 = sphi 0, %s65
    %s83 = sphi 0, %s83
    %s85 = sphi 0, %s83
    %s86 = sphi 0, %s85
    %s100 = sphi 0, %s86
    %s104 = sphi 0, %s104
    %s106 = sphi 0, %s104
    %s107 = sphi 0, %s106
    %s121 = sphi 0, %s107
    %s125 = sphi 0, %s125
    %s127 = sphi 0, %s125
    %s128 = sphi 0, %s127
    %s142 = sphi 0, %s128
    %s146 = sphi 0, %s146
    %s148 = sphi 0, %s146
    %s149 = sphi 0, %s148
    %s163 = sphi 0, %s149
    %s167 = sphi 0, %s167
    %s169 = sphi 0, %s167
    %s170 = sphi 0, %s169
    %s184 = sphi 0, %s170
    %s190 = sphi 0, %s192
    %s193 = sphi 0, %s190
    %s194 = sphi 0, %s193
    %s210 = sphi 0, %s194
    %s218 = sphi 0, %s220
    %s221 = sphi 0, %s218
    %s222 = sphi 0, %s221
    %s238 = sphi 0, %s222
  $region4: #{image_meta_model.4} parent=0 // loop_header_branch
    %17 = sbr.rel (%p15) target = $region8
  $region5: #{image_meta_model.4} parent=0 // loop_body
    %s19 = ssub.s32 %s14, 1
    %s20 = ssub.s32 %s14, 2
    %s27 = sadd.s32 1, %s22
    %p28 = scmp.ge.s32.totalorder %s27, 1
    %s29 = scalar_select %p28, 0, %s27
    %s30 = sadd.s32 1, %s21
    %s31 = scalar_select %p28, %s30, %s21
    %p32 = scmp.ge.s32.totalorder %s31, 2
    %s33 = scalar_select %p32, 0, %s31
    %s34 = sadd.s32 %s21, %s22
    %s35 = sadd.s32 %s33, %s29
    %s36 = ssub.s32 %s34, %s35
    %p37 = scmp.eq.s32.totalorder %s36, 0
    %s39 = sadd.s32 %s38, 1
    %s40 = scalar_select %p37, %s38, %s39
    %p43 = pneg %p37
    %p44 = scmp.eq.s32.totalorder %s14, 1
    %p45 = por %p43, %p44
    %p46 = scmp.ne.s32.totalorder %s38, %s41
    %p47 = scmp.eq.s32.totalorder %s14, 0
    %p48 = por %p46, %p47
    %p49 = scmp.ne.s32.totalorder %s38, %s41
    %p50 = scmp.eq.s32.totalorder %s19, 1
    %p51 = por %p49, %p50
    %p52 = scmp.ne.s32.totalorder %s41, %s42
    %p53 = scmp.eq.s32.totalorder %s19, 0
    %p54 = por %p52, %p53
    %p55 = scmp.ne.s32.totalorder %s41, %s42
    %p56 = scmp.eq.s32.totalorder %s20, 1
    %p57 = por %p55, %p56
    %p59 = scmp.ne.s32.totalorder %s42, %s58
    %p60 = scmp.eq.s32.totalorder %s20, 0
    %p61 = por %p59, %p60
    %s63 = sadd.s32 %s62, 1
    %p66 = scmp.eq.s32.totalorder %s14, 1
    %p67 = scmp.ne.s32.totalorder %s62, %s64
    %p68 = scmp.eq.s32.totalorder %s14, 0
    %p69 = por %p67, %p68
    %p70 = scmp.ne.s32.totalorder %s62, %s64
    %p71 = scmp.eq.s32.totalorder %s19, 1
    %p72 = por %p70, %p71
    %p73 = scmp.ne.s32.totalorder %s64, %s65
    %p74 = scmp.eq.s32.totalorder %s19, 0
    %p75 = por %p73, %p74
    %p76 = scmp.ne.s32.totalorder %s64, %s65
    %p77 = scmp.eq.s32.totalorder %s20, 1
    %p78 = por %p76, %p77
    %p80 = scmp.ne.s32.totalorder %s65, %s79
    %p81 = scmp.eq.s32.totalorder %s20, 0
    %p82 = por %p80, %p81
    %s84 = sadd.s32 %s83, 1
    %p87 = scmp.eq.s32.totalorder %s14, 1
    %p88 = scmp.ne.s32.totalorder %s83, %s85
    %p89 = scmp.eq.s32.totalorder %s14, 0
    %p90 = por %p88, %p89
    %p91 = scmp.ne.s32.totalorder %s83, %s85
    %p92 = scmp.eq.s32.totalorder %s19, 1
    %p93 = por %p91, %p92
    %p94 = scmp.ne.s32.totalorder %s85, %s86
    %p95 = scmp.eq.s32.totalorder %s19, 0
    %p96 = por %p94, %p95
    %p97 = scmp.ne.s32.totalorder %s85, %s86
    %p98 = scmp.eq.s32.totalorder %s20, 1
    %p99 = por %p97, %p98
    %p101 = scmp.ne.s32.totalorder %s86, %s100
    %p102 = scmp.eq.s32.totalorder %s20, 0
    %p103 = por %p101, %p102
    %s105 = sadd.s32 %s104, 1
    %p108 = scmp.eq.s32.totalorder %s14, 1
    %p109 = scmp.ne.s32.totalorder %s104, %s106
    %p110 = scmp.eq.s32.totalorder %s14, 0
    %p111 = por %p109, %p110
    %p112 = scmp.ne.s32.totalorder %s104, %s106
    %p113 = scmp.eq.s32.totalorder %s19, 1
    %p114 = por %p112, %p113
    %p115 = scmp.ne.s32.totalorder %s106, %s107
    %p116 = scmp.eq.s32.totalorder %s19, 0
    %p117 = por %p115, %p116
    %p118 = scmp.ne.s32.totalorder %s106, %s107
    %p119 = scmp.eq.s32.totalorder %s20, 1
    %p120 = por %p118, %p119
    %p122 = scmp.ne.s32.totalorder %s107, %s121
    %p123 = scmp.eq.s32.totalorder %s20, 0
    %p124 = por %p122, %p123
    %s126 = sadd.s32 %s125, 1
    %p129 = scmp.eq.s32.totalorder %s14, 1
    %p130 = scmp.ne.s32.totalorder %s125, %s127
    %p131 = scmp.eq.s32.totalorder %s14, 0
    %p132 = por %p130, %p131
    %p133 = scmp.ne.s32.totalorder %s125, %s127
    %p134 = scmp.eq.s32.totalorder %s19, 1
    %p135 = por %p133, %p134
    %p136 = scmp.ne.s32.totalorder %s127, %s128
    %p137 = scmp.eq.s32.totalorder %s19, 0
    %p138 = por %p136, %p137
    %p139 = scmp.ne.s32.totalorder %s127, %s128
    %p140 = scmp.eq.s32.totalorder %s20, 1
    %p141 = por %p139, %p140
    %p143 = scmp.ne.s32.totalorder %s128, %s142
    %p144 = scmp.eq.s32.totalorder %s20, 0
    %p145 = por %p143, %p144
    %s147 = sadd.s32 %s146, 1
    %p150 = scmp.eq.s32.totalorder %s14, 1
    %p151 = scmp.ne.s32.totalorder %s146, %s148
    %p152 = scmp.eq.s32.totalorder %s14, 0
    %p153 = por %p151, %p152
    %p154 = scmp.ne.s32.totalorder %s146, %s148
    %p155 = scmp.eq.s32.totalorder %s19, 1
    %p156 = por %p154, %p155
    %p157 = scmp.ne.s32.totalorder %s148, %s149
    %p158 = scmp.eq.s32.totalorder %s19, 0
    %p159 = por %p157, %p158
    %p160 = scmp.ne.s32.totalorder %s148, %s149
    %p161 = scmp.eq.s32.totalorder %s20, 1
    %p162 = por %p160, %p161
    %p164 = scmp.ne.s32.totalorder %s149, %s163
    %p165 = scmp.eq.s32.totalorder %s20, 0
    %p166 = por %p164, %p165
    %s168 = sadd.s32 %s167, 1
    %p171 = scmp.eq.s32.totalorder %s14, 1
    %p172 = scmp.ne.s32.totalorder %s167, %s169
    %p173 = scmp.eq.s32.totalorder %s14, 0
    %p174 = por %p172, %p173
    %p175 = scmp.ne.s32.totalorder %s167, %s169
    %p176 = scmp.eq.s32.totalorder %s19, 1
    %p177 = por %p175, %p176
    %p178 = scmp.ne.s32.totalorder %s169, %s170
    %p179 = scmp.eq.s32.totalorder %s19, 0
    %p180 = por %p178, %p179
    %p181 = scmp.ne.s32.totalorder %s169, %s170
    %p182 = scmp.eq.s32.totalorder %s20, 1
    %p183 = por %p181, %p182
    %p185 = scmp.ne.s32.totalorder %s170, %s184
    %p186 = scmp.eq.s32.totalorder %s20, 0
    %p187 = por %p185, %p186
    %s188 = ssub.s32 %s22, %s29
    %p189 = scmp.eq.s32.totalorder %s188, 0
    %s191 = sadd.s32 %s190, 1
    %s192 = scalar_select %p189, %s190, %s191
    %p195 = pneg %p189
    %p196 = scmp.eq.s32.totalorder %s14, 1
    %p197 = por %p195, %p196
    %p198 = scmp.ne.s32.totalorder %s190, %s193
    %p199 = scmp.eq.s32.totalorder %s14, 0
    %p200 = por %p198, %p199
    %p201 = scmp.ne.s32.totalorder %s190, %s193
    %p202 = scmp.eq.s32.totalorder %s19, 1
    %p203 = por %p201, %p202
    %p204 = scmp.ne.s32.totalorder %s193, %s194
    %p205 = scmp.eq.s32.totalorder %s19, 0
    %p206 = por %p204, %p205
    %p207 = scmp.ne.s32.totalorder %s193, %s194
    %p208 = scmp.eq.s32.totalorder %s20, 1
    %p209 = por %p207, %p208
    %p211 = scmp.ne.s32.totalorder %s194, %s210
    %p212 = scmp.eq.s32.totalorder %s20, 0
    %p213 = por %p211, %p212
    %s214 = sadd.s32 %s21, %s22
    %s215 = sadd.s32 %s33, %s29
    %s216 = ssub.s32 %s214, %s215
    %p217 = scmp.eq.s32.totalorder %s216, 0
    %s219 = sadd.s32 %s218, 1
    %s220 = scalar_select %p217, %s218, %s219
    %p223 = pneg %p217
    %p224 = scmp.eq.s32.totalorder %s14, 1
    %p225 = por %p223, %p224
    %p226 = scmp.ne.s32.totalorder %s218, %s221
    %p227 = scmp.eq.s32.totalorder %s14, 0
    %p228 = por %p226, %p227
    %p229 = scmp.ne.s32.totalorder %s218, %s221
    %p230 = scmp.eq.s32.totalorder %s19, 1
    %p231 = por %p229, %p230
    %p232 = scmp.ne.s32.totalorder %s221, %s222
    %p233 = scmp.eq.s32.totalorder %s19, 0
    %p234 = por %p232, %p233
    %p235 = scmp.ne.s32.totalorder %s221, %s222
    %p236 = scmp.eq.s32.totalorder %s20, 1
    %p237 = por %p235, %p236
    %p239 = scmp.ne.s32.totalorder %s222, %s238
    %p240 = scmp.eq.s32.totalorder %s20, 0
    %p241 = por %p239, %p240
    %p242 = scmp.le.s32.totalorder 1, %s14
    %p243 = scmp.lt.s32.totalorder %s14, 3
    %p244 = pnand %p242, %p243
    %p245 = pneg %p244
    // Predicated region
    $region9: #{image_meta_model.4} parent=5 // pred_check
      _
    $region10: #{image_meta_model.4} parent=5 // pred_check_branch
      %247 = sbr.rel (%p244) target = $region12
    $region11: #{image_meta_model.4} parent=5 // pred_region
      %s248 = ssub.s32 %s14, 1
      // Predicated region
      $region13: #{image_meta_model.4} parent=11 // pred_check
        %p249 = pneg %p75
      $region14: #{image_meta_model.4} parent=11 // pred_check_branch
        %251 = sbr.rel (%p249) target = $region16
      $region15: #{image_meta_model.4} parent=11 // pred_region
        _
      $region16: #{image_meta_model.4} parent=11 // pred_fallthru
        _
      // Predicated region
      $region17: #{image_meta_model.4} parent=11 // pred_check
        %p252 = pneg %p96
      $region18: #{image_meta_model.4} parent=11 // pred_check_branch
        %254 = sbr.rel (%p252) target = $region20
      $region19: #{image_meta_model.4} parent=11 // pred_region
        _
      $region20: #{image_meta_model.4} parent=11 // pred_fallthru
        _
      // Predicated region
      $region21: #{image_meta_model.4} parent=11 // pred_check
        %p255 = pneg %p117
      $region22: #{image_meta_model.4} parent=11 // pred_check_branch
        %257 = sbr.rel (%p255) target = $region24
      $region23: #{image_meta_model.4} parent=11 // pred_region
        _
      $region24: #{image_meta_model.4} parent=11 // pred_fallthru
        _
      // Predicated region
      $region25: #{image_meta_model.4} parent=11 // pred_check
        %p258 = pneg %p138
      $region26: #{image_meta_model.4} parent=11 // pred_check_branch
        %260 = sbr.rel (%p258) target = $region28
      $region27: #{image_meta_model.4} parent=11 // pred_region
        _
      $region28: #{image_meta_model.4} parent=11 // pred_fallthru
        _
      // Predicated region
      $region29: #{image_meta_model.4} parent=11 // pred_check
        %p261 = pneg %p159
      $region30: #{image_meta_model.4} parent=11 // pred_check_branch
        %263 = sbr.rel (%p261) target = $region32
      $region31: #{image_meta_model.4} parent=11 // pred_region
        _
      $region32: #{image_meta_model.4} parent=11 // pred_fallthru
        _
      // Predicated region
      $region33: #{image_meta_model.4} parent=11 // pred_check
        %p264 = pneg %p180
      $region34: #{image_meta_model.4} parent=11 // pred_check_branch
        %266 = sbr.rel (%p264) target = $region36
      $region35: #{image_meta_model.4} parent=11 // pred_region
        _
      $region36: #{image_meta_model.4} parent=11 // pred_fallthru
        _
      // Predicated region
      $region37: #{image_meta_model.4} parent=11 // pred_check
        %p267 = pneg %p206
      $region38: #{image_meta_model.4} parent=11 // pred_check_branch
        %269 = sbr.rel (%p267) target = $region40
      $region39: #{image_meta_model.4} parent=11 // pred_region
        %s270 = smul.u32 2, %s24
        %p271 = scmp.lt.s32.totalorder %s270, 1
        %s272 = scalar_select %p271, %s270, 1
        %s273 = smul.addr %s272, 8
        %s274 = scalar_lea.vmem %s7, %s273
        %s275 = smul.u32 2, %s24
      $region40: #{image_meta_model.4} parent=11 // pred_fallthru
        _
    $region12: #{image_meta_model.4} parent=5 // pred_fallthru
      _
    %p276 = scmp.lt.s32.totalorder %s14, 2
    // Predicated region
    $region41: #{image_meta_model.4} parent=5 // pred_check
      %p277 = pneg %p276
    $region42: #{image_meta_model.4} parent=5 // pred_check_branch
      %279 = sbr.rel (%p277) target = $region44
    $region43: #{image_meta_model.4} parent=5 // pred_region
      // Predicated region
      $region45: #{image_meta_model.4} parent=43 // pred_check
        %p280 = pneg %p48
      $region46: #{image_meta_model.4} parent=43 // pred_check_branch
        %282 = sbr.rel (%p280) target = $region48
      $region47: #{image_meta_model.4} parent=43 // pred_region
        %s283 = sadd.s32 %s21, %s22
        %s284 = smul.u32 2, %s283
        %p285 = scmp.lt.s32.totalorder %s284, 3
        %s286 = scalar_select %p285, %s284, 3
        %s287 = smul.addr %s286, 8
        %s288 = scalar_lea.vmem %s0, %s287
        %s289 = sadd.s32 %s21, %s22
        %s290 = smul.u32 2, %s289
      $region48: #{image_meta_model.4} parent=43 // pred_fallthru
        _
    $region44: #{image_meta_model.4} parent=5 // pred_fallthru
      _
    %p291 = scmp.le.s32.totalorder 1, %s14
    %p292 = scmp.lt.s32.totalorder %s14, 3
    %p293 = pnand %p291, %p292
    %p294 = pneg %p293
    // Predicated region
    $region49: #{image_meta_model.4} parent=5 // pred_check
      _
    $region50: #{image_meta_model.4} parent=5 // pred_check_branch
      %296 = sbr.rel (%p293) target = $region52
    $region51: #{image_meta_model.4} parent=5 // pred_region
      %s297 = ssub.s32 %s14, 1
      %s298 = sadd.s32 %s23, %s24
      %s299 = smul.u32 2, %s298
      %p300 = scmp.lt.s32.totalorder %s299, 3
      %s301 = scalar_select %p300, %s299, 3
      %s302 = smul.addr %s301, 8
      %s303 = scalar_lea.vmem %s0, %s302
      %p304 = pneg %p54
      %p305 = pneg %p51
      %p306 = pneg %p75
      %p307 = pneg %p72
      %p308 = pneg %p96
      %p309 = pneg %p93
      %p310 = pneg %p117
      %p311 = pneg %p114
      %p312 = pneg %p138
      %p313 = pneg %p135
      %p314 = pneg %p159
      %p315 = pneg %p156
      %p316 = pneg %p180
      %p317 = pneg %p177
      %s318 = smul.u32 2, %s24
      %p319 = scmp.lt.s32.totalorder %s318, 1
      %s320 = scalar_select %p319, %s318, 1
      %s321 = smul.addr %s320, 8
      %s322 = scalar_lea.vmem %s7, %s321
      %p323 = pneg %p206
      %p324 = pneg %p203
      %p325 = pneg %p234
      %p326 = pneg %p231
      %s327 = sadd.s32 %s23, %s24
      %s328 = smul.u32 2, %s327
      %p329 = scmp.lt.s32.totalorder %s328, 3
      %s330 = scalar_select %p329, %s328, 3
      %s331 = smul.addr %s330, 8
      %s332 = scalar_lea.vmem %s8, %s331
      %s333 = sadd.s32 %s23, %s24
      %s334 = smul.u32 2, %s333
      %p335 = scmp.lt.s32.totalorder %s334, 3
      %s336 = scalar_select %p335, %s334, 3
      %s337 = smul.addr %s336, 8
      %s338 = scalar_lea.vmem %s0, %s337
      %s339 = sadd.s32 %s23, %s24
      %s340 = smul.u32 2, %s339
      %s341 = smul.u32 2, %s24
      %p342 = scmp.lt.s32.totalorder %s341, 1
      %s343 = scalar_select %p342, %s341, 1
      %s344 = smul.addr %s343, 8
      %s345 = scalar_lea.vmem %s7, %s344
      %s346 = smul.u32 2, %s24
      %s347 = sadd.s32 %s23, %s24
      %s348 = smul.u32 2, %s347
      %p349 = scmp.lt.s32.totalorder %s348, 3
      %s350 = scalar_select %p349, %s348, 3
      %s351 = smul.addr %s350, 8
      %s352 = scalar_lea.vmem %s8, %s351
      %s353 = sadd.s32 %s23, %s24
      %s354 = smul.u32 2, %s353
      %v356 = vld [vmem:[%s338] sm:$0xff]
      %v357 = vld [vmem:[%s338 + $0x8] sm:$0xff]
      %v358 = vld [vmem:[%s1] sm:$0x1]
      %v359 = vld [vmem:[%s2] sm:$0x1]
      %360 = vadd.xlane.f32.xlu0 %v356
      %v361 = vpop.xlane.xlu0 %360
      %362 = vadd.xlane.f32.xlu0 %v357
      %v363 = vpop.xlane.xlu0 %362
      %v364 = vrcp.pop 128.0
      %v365 = vmul.f32 %v361, %v364
      %v366 = vmul.f32 %v363, %v364
      %v367 = vsub.f32 %v356, %v365
      %v368 = vsub.f32 %v357, %v366
      %v369 = vmul.f32 %v367, %v367
      %v370 = vmul.f32 %v368, %v368
      %371 = vadd.xlane.f32.xlu0 %v369
      %v372 = vpop.xlane.xlu0 %371
      %373 = vadd.xlane.f32.xlu0 %v370
      %v374 = vpop.xlane.xlu0 %373
      %v375 = vmul.f32 %v372, %v364
      %v376 = vmul.f32 %v374, %v364
      %v377 = vadd.f32 %v375, 1e-05
      %v378 = vadd.f32 %v376, 1e-05
      %v379 = vrsqrt.pop %v377
      %v380 = vrsqrt.pop %v378
      %v381 = vmul.f32 %v367, %v379
      %v382 = vmul.f32 %v368, %v380
      %v384 = vlaneseq
      %v385 = vshrl.u32 %v384, 7
      %v386 = vsub.s32 0, %v385
      %v387 = vrot.slane %v358, %v386
      %v389 = vmul.f32 %v381, %v387
      %v390 = vmul.f32 %v382, %v387
      %v392 = vlaneseq
      %v393 = vshrl.u32 %v392, 7
      %v394 = vsub.s32 0, %v393
      %v395 = vrot.slane %v359, %v394
      %v397 = vadd.f32 %v389, %v395
      %v398 = vadd.f32 %v390, %v395
      %v399 = vpack.c.bf16 %v398, %v397
      %v400 = vld [vmem:[%s3] sm:$0xf]
      %v401 = vld [vmem:[%s3 + $0x4] sm:$0xf]
      %v402 = vld [vmem:[%s3 + $0x8] sm:$0xf]
      %v403 = vld [vmem:[%s3 + $0xc] sm:$0xf]
      %v404 = vld [vmem:[%s3 + $0x10] sm:$0xf]
      %v405 = vld [vmem:[%s3 + $0x14] sm:$0xf]
      %v406 = vld [vmem:[%s3 + $0x18] sm:$0xf]
      %v407 = vld [vmem:[%s3 + $0x1c] sm:$0xf]
      %v408 = vld [vmem:[%s3 + $0x20] sm:$0xf]
      %v409 = vld [vmem:[%s3 + $0x24] sm:$0xf]
      %v410 = vld [vmem:[%s3 + $0x28] sm:$0xf]
      %v411 = vld [vmem:[%s3 + $0x2c] sm:$0xf]
      %v412 = vld [vmem:[%s3 + $0x30] sm:$0xf]
      %v413 = vld [vmem:[%s3 + $0x34] sm:$0xf]
      %v414 = vld [vmem:[%s3 + $0x38] sm:$0xf]
      %v415 = vld [vmem:[%s3 + $0x3c] sm:$0xf]
      %v416 = vld [vmem:[%s4] sm:$0x1]
      %v418 = vlaneseq
      %v419 = vshrl.u32 %v418, 7
      %v420 = vsub.s32 0, %v419
      %v421 = vrot.slane %v416, %v420
      %v439 = vunpack.c.l.b16 %v400
      %v440 = vunpack.c.l.b16 %v401
      %v441 = vunpack.c.l.b16 %v402
      %v442 = vunpack.c.l.b16 %v403
      %v443 = vunpack.c.l.b16 %v404
      %v444 = vunpack.c.l.b16 %v405
      %v445 = vunpack.c.l.b16 %v406
      %v446 = vunpack.c.l.b16 %v407
      %v447 = vunpack.c.l.b16 %v408
      %v448 = vunpack.c.l.b16 %v409
      %v449 = vunpack.c.l.b16 %v410
      %v450 = vunpack.c.l.b16 %v411
      %v451 = vunpack.c.l.b16 %v412
      %v452 = vunpack.c.l.b16 %v413
      %v453 = vunpack.c.l.b16 %v414
      %v454 = vunpack.c.l.b16 %v415
      %v455 = vpack.c.b16 %v440, %v439
      %v456 = vpack.c.b16 %v442, %v441
      %v457 = vpack.c.b16 %v444, %v443
      %v458 = vpack.c.b16 %v446, %v445
      %v459 = vpack.c.b16 %v448, %v447
      %v460 = vpack.c.b16 %v450, %v449
      %v461 = vpack.c.b16 %v452, %v451
      %v462 = vpack.c.b16 %v454, %v453
      %471 = vmatprep.subr.bf16.mxu0 0
      %472 = vmatpush1.bf16.msra.mxu0 %v462
      %473 = vmatprep.subr.bf16.mxu0 0
      %474 = vmatpush1.bf16.msra.mxu0 %v461
      %475 = vmatprep.subr.bf16.mxu0 0
      %476 = vmatpush1.bf16.msra.mxu0 %v460
      %477 = vmatprep.subr.bf16.mxu0 0
      %478 = vmatpush1.bf16.msra.mxu0 %v459
      %479 = vmatprep.subr.bf16.mxu0 0
      %480 = vmatpush1.bf16.msra.mxu0 %v458
      %481 = vmatprep.subr.bf16.mxu0 0
      %482 = vmatpush1.bf16.msra.mxu0 %v457
      %483 = vmatprep.subr.bf16.mxu0 0
      %484 = vmatpush1.bf16.msra.mxu0 %v456
      %485 = vmatprep.subr.bf16.mxu0 0
      %486 = vmatpush1.bf16.msra.mxu0 %v455
      %487 = vmatprep.subr.bf16.mxu0 0
      %488 = vmatpush2.bf16.msra.mxu0 0
      %489 = vmatprep.subr.bf16.mxu0 0
      %490 = vmatpush2.bf16.msra.mxu0 0
      %491 = vmatprep.subr.bf16.mxu0 0
      %492 = vmatpush2.bf16.msra.mxu0 0
      %493 = vmatprep.subr.bf16.mxu0 0
      %494 = vmatpush2.bf16.msra.mxu0 0
      %495 = vmatprep.subr.bf16.mxu0 0
      %496 = vmatpush2.bf16.msra.mxu0 0
      %497 = vmatprep.subr.bf16.mxu0 0
      %498 = vmatpush2.bf16.msra.mxu0 0
      %499 = vmatprep.subr.bf16.mxu0 0
      %500 = vmatpush2.bf16.msra.mxu0 0
      %501 = vmatprep.subr.bf16.mxu0 0
      %502 = vmatpush2.bf16.msra.mxu0 0
      %503 = vmatprep.mubr.bf16.mxu0 0
      %504 = vmatmul.mubr.bf16.gmra.mxu0 %v399
      %v505 = vpop.f32.mrf.mxu0
      %v506 = vadd.f32 %v421, %v505
      %v507 = vpop.f32.mrf.mxu0
      %v508 = vpop.f32.mrf.mxu0
      %v509 = vadd.f32 %v421, %v508
      %v510 = vpop.f32.mrf.mxu0
      %511 = vdwg.mxu0
      %v512 = vld [vmem:[%s5] sm:$0x1]
      %v513 = vld [vmem:[%s6] sm:$0x1]
      %514 = vadd.xlane.f32.xlu0 %v506
      %v515 = vpop.xlane.xlu0 %514
      %516 = vadd.xlane.f32.xlu0 %v509
      %v517 = vpop.xlane.xlu0 %516
      %v518 = vmul.f32 %v515, %v364
      %v519 = vmul.f32 %v517, %v364
      %v520 = vsub.f32 %v506, %v518
      %v521 = vsub.f32 %v509, %v519
      %v522 = vmul.f32 %v520, %v520
      %v523 = vmul.f32 %v521, %v521
      %524 = vadd.xlane.f32.xlu0 %v522
      %v525 = vpop.xlane.xlu0 %524
      %526 = vadd.xlane.f32.xlu0 %v523
      %v527 = vpop.xlane.xlu0 %526
      %v528 = vmul.f32 %v525, %v364
      %v529 = vmul.f32 %v527, %v364
      %v530 = vadd.f32 %v528, 1e-05
      %v531 = vadd.f32 %v529, 1e-05
      %v532 = vrsqrt.pop %v530
      %v533 = vrsqrt.pop %v531
      %v534 = vmul.f32 %v520, %v532
      %v535 = vmul.f32 %v521, %v533
      %v537 = vlaneseq
      %v538 = vshrl.u32 %v537, 7
      %v539 = vsub.s32 0, %v538
      %v540 = vrot.slane %v512, %v539
      %v542 = vmul.f32 %v534, %v540
      %v543 = vmul.f32 %v535, %v540
      %v545 = vlaneseq
      %v546 = vshrl.u32 %v545, 7
      %v547 = vsub.s32 0, %v546
      %v548 = vrot.slane %v513, %v547
      %v550 = vadd.f32 %v542, %v548
      %v551 = vadd.f32 %v543, %v548
      %v552 = vld [vmem:[%s345] sm:$0xff]
      %v553 = vld [vmem:[%s345 + $0x8] sm:$0xff]
      %v554 = vadd.f32 %v550, %v552
      %v555 = vadd.f32 %v551, %v553
      %556 = vst [vmem:[%s352] sm:$0xff] %v554
      %557 = vst [vmem:[%s352 + $0x8] sm:$0xff] %v555
      %s558 = sadd.s32 %s23, %s24
      %s559 = smul.u32 2, %s558
      %p560 = scmp.lt.s32.totalorder %s559, 3
      %s561 = scalar_select %p560, %s559, 3
      %s562 = smul.addr %s561, 8
      %s563 = scalar_lea.vmem %s8, %s562
      // Predicated region
      $region53: #{image_meta_model.4} parent=51 // pred_check
        %p564 = pneg %p231
      $region54: #{image_meta_model.4} parent=51 // pred_check_branch
        %566 = sbr.rel (%p564) target = $region56
      $region55: #{image_meta_model.4} parent=51 // pred_region
        %s567 = sadd.s32 %s23, %s24
        %s568 = smul.u32 2, %s567
      $region56: #{image_meta_model.4} parent=51 // pred_fallthru
        _
    $region52: #{image_meta_model.4} parent=5 // pred_fallthru
      _
    %p569 = scmp.le.s32.totalorder 2, %s14
    // Predicated region
    $region57: #{image_meta_model.4} parent=5 // pred_check
      %p570 = pneg %p569
    $region58: #{image_meta_model.4} parent=5 // pred_check_branch
      %572 = sbr.rel (%p570) target = $region60
    $region59: #{image_meta_model.4} parent=5 // pred_region
      %s573 = ssub.s32 %s14, 2
      // Predicated region
      $region61: #{image_meta_model.4} parent=59 // pred_check
        %p574 = pneg %p237
      $region62: #{image_meta_model.4} parent=59 // pred_check_branch
        %576 = sbr.rel (%p574) target = $region64
      $region63: #{image_meta_model.4} parent=59 // pred_region
        %s577 = sadd.s32 %s25, %s26
        %s578 = smul.u32 2, %s577
        %p579 = scmp.lt.s32.totalorder %s578, 3
        %s580 = scalar_select %p579, %s578, 3
        %s581 = smul.addr %s580, 8
        %s582 = scalar_lea.vmem %s8, %s581
      $region64: #{image_meta_model.4} parent=59 // pred_fallthru
        _
    $region60: #{image_meta_model.4} parent=5 // pred_fallthru
      _
  $region6: #{image_meta_model.4} parent=0 // loop_footer
    %s18 = sadd.s32 1, %s14
  $region7: #{image_meta_model.4} parent=0 // loop_footer_branch
    %13 = sbr.rel target = $region3
  $region8: #{image_meta_model.4} parent=0 // loop_exit
    _

// kernel: image_meta_model.5
$region0: #{image_meta_model.5}
  #allocation0 [shape = 'u32[]', space=smem, size = 0x4, offset = 0x4, fixed_abs, tag = 'smem constant byte address 0x4 - core index']
  #allocation1 [shape = 'u32[144,128]{1,0:T(1,128)}', space=vmem, size = 0x12000, scoped, tag = 'internal scratch']
  %s0 = inlined_call_operand.vmem [shape: f32[2,16,128], index: 0, kind: input, shape index: {}]
  %s1 = inlined_call_operand.vmem [shape: f32[1,128], index: 1, kind: input, shape index: {}]
  %s2 = inlined_call_operand.vmem [shape: f32[1,128], index: 2, kind: input, shape index: {}]
  %s3 = inlined_call_operand.vmem [shape: bf16[128,384], index: 3, kind: input, shape index: {}]
  %s4 = inlined_call_operand.vmem [shape: bf16[128,128], index: 4, kind: input, shape index: {}]
  %s5 = inlined_call_operand.vmem [shape: f32[1,128], index: 5, kind: input, shape index: {}]
  %s6 = inlined_call_operand.vmem [shape: f32[1,128], index: 6, kind: input, shape index: {}]
  %s7 = inlined_call_operand.vmem [shape: bf16[128,256], index: 7, kind: input, shape index: {}]
  %s8 = inlined_call_operand.vmem [shape: f32[1,256], index: 8, kind: input, shape index: {}]
  %s9 = inlined_call_operand.vmem [shape: bf16[256,128], index: 9, kind: input, shape index: {}]
  %s10 = inlined_call_operand.vmem [shape: f32[1,128], index: 10, kind: input, shape index: {}]
  %s11 = inlined_call_operand.vmem [shape: f32[2,16,128], index: 11, kind: output, shape index: {}]
  %s12 = sld [smem:[#allocation0]]
  $region77: #{image_meta_model.5} parent=0
    _
  %s14 = ssub.s32 1, %s12
  %s15 = scalar_select 0, %s14, %s12
  loop: start=0, step=1, limit=4
  $region2: #{image_meta_model.5} parent=0 // loop_pre_header
    _
  $region3: #{image_meta_model.5} parent=0 // loop_header
    %s17 = sphi 0, %s21
    %p18 = scmp.ge.s32.totalorder %s17, 4
    %s27 = sphi 0, %s29
    %s30 = sphi 0, %s27
    %s31 = sphi 0, %s30
    %s47 = sphi 0, %s31
    %s51 = sphi 0, %s51
    %s53 = sphi 0, %s51
    %s54 = sphi 0, %s53
    %s68 = sphi 0, %s54
    %s72 = sphi 0, %s72
    %s74 = sphi 0, %s72
    %s75 = sphi 0, %s74
    %s89 = sphi 0, %s75
    %s93 = sphi 0, %s93
    %s95 = sphi 0, %s93
    %s96 = sphi 0, %s95
    %s110 = sphi 0, %s96
    %s114 = sphi 0, %s114
    %s116 = sphi 0, %s114
    %s117 = sphi 0, %s116
    %s131 = sphi 0, %s117
    %s135 = sphi 0, %s135
    %s137 = sphi 0, %s135
    %s138 = sphi 0, %s137
    %s152 = sphi 0, %s138
    %s156 = sphi 0, %s156
    %s158 = sphi 0, %s156
    %s159 = sphi 0, %s158
    %s173 = sphi 0, %s159
    %s177 = sphi 0, %s177
    %s179 = sphi 0, %s177
    %s180 = sphi 0, %s179
    %s194 = sphi 0, %s180
    %s198 = sphi 0, %s198
    %s200 = sphi 0, %s198
    %s201 = sphi 0, %s200
    %s215 = sphi 0, %s201
    %s219 = sphi 0, %s219
    %s221 = sphi 0, %s219
    %s222 = sphi 0, %s221
    %s236 = sphi 0, %s222
    %s240 = sphi 0, %s240
    %s242 = sphi 0, %s240
    %s243 = sphi 0, %s242
    %s257 = sphi 0, %s243
    %s263 = sphi 0, %s265
    %s266 = sphi 0, %s263
    %s267 = sphi 0, %s266
    %s283 = sphi 0, %s267
  $region4: #{image_meta_model.5} parent=0 // loop_header_branch
    %20 = sbr.rel (%p18) target = $region8
  $region5: #{image_meta_model.5} parent=0 // loop_body
    %s22 = ssub.s32 %s17, 1
    %s23 = ssub.s32 %s17, 2
    %s24 = sadd.s32 %s17, 1
    %s25 = ssub.s32 %s17, %s24
    %p26 = scmp.eq.s32.totalorder %s25, 0
    %s28 = sadd.s32 %s27, 1
    %s29 = scalar_select %p26, %s27, %s28
    %p32 = pneg %p26
    %p33 = scmp.eq.s32.totalorder %s17, 1
    %p34 = por %p32, %p33
    %p35 = scmp.ne.s32.totalorder %s27, %s30
    %p36 = scmp.eq.s32.totalorder %s17, 0
    %p37 = por %p35, %p36
    %p38 = scmp.ne.s32.totalorder %s27, %s30
    %p39 = scmp.eq.s32.totalorder %s22, 1
    %p40 = por %p38, %p39
    %p41 = scmp.ne.s32.totalorder %s30, %s31
    %p42 = scmp.eq.s32.totalorder %s22, 0
    %p43 = por %p41, %p42
    %p44 = scmp.ne.s32.totalorder %s30, %s31
    %p45 = scmp.eq.s32.totalorder %s23, 1
    %p46 = por %p44, %p45
    %p48 = scmp.ne.s32.totalorder %s31, %s47
    %p49 = scmp.eq.s32.totalorder %s23, 0
    %p50 = por %p48, %p49
    %s52 = sadd.s32 %s51, 1
    %p55 = scmp.eq.s32.totalorder %s17, 1
    %p56 = scmp.ne.s32.totalorder %s51, %s53
    %p57 = scmp.eq.s32.totalorder %s17, 0
    %p58 = por %p56, %p57
    %p59 = scmp.ne.s32.totalorder %s51, %s53
    %p60 = scmp.eq.s32.totalorder %s22, 1
    %p61 = por %p59, %p60
    %p62 = scmp.ne.s32.totalorder %s53, %s54
    %p63 = scmp.eq.s32.totalorder %s22, 0
    %p64 = por %p62, %p63
    %p65 = scmp.ne.s32.totalorder %s53, %s54
    %p66 = scmp.eq.s32.totalorder %s23, 1
    %p67 = por %p65, %p66
    %p69 = scmp.ne.s32.totalorder %s54, %s68
    %p70 = scmp.eq.s32.totalorder %s23, 0
    %p71 = por %p69, %p70
    %s73 = sadd.s32 %s72, 1
    %p76 = scmp.eq.s32.totalorder %s17, 1
    %p77 = scmp.ne.s32.totalorder %s72, %s74
    %p78 = scmp.eq.s32.totalorder %s17, 0
    %p79 = por %p77, %p78
    %p80 = scmp.ne.s32.totalorder %s72, %s74
    %p81 = scmp.eq.s32.totalorder %s22, 1
    %p82 = por %p80, %p81
    %p83 = scmp.ne.s32.totalorder %s74, %s75
    %p84 = scmp.eq.s32.totalorder %s22, 0
    %p85 = por %p83, %p84
    %p86 = scmp.ne.s32.totalorder %s74, %s75
    %p87 = scmp.eq.s32.totalorder %s23, 1
    %p88 = por %p86, %p87
    %p90 = scmp.ne.s32.totalorder %s75, %s89
    %p91 = scmp.eq.s32.totalorder %s23, 0
    %p92 = por %p90, %p91
    %s94 = sadd.s32 %s93, 1
    %p97 = scmp.eq.s32.totalorder %s17, 1
    %p98 = scmp.ne.s32.totalorder %s93, %s95
    %p99 = scmp.eq.s32.totalorder %s17, 0
    %p100 = por %p98, %p99
    %p101 = scmp.ne.s32.totalorder %s93, %s95
    %p102 = scmp.eq.s32.totalorder %s22, 1
    %p103 = por %p101, %p102
    %p104 = scmp.ne.s32.totalorder %s95, %s96
    %p105 = scmp.eq.s32.totalorder %s22, 0
    %p106 = por %p104, %p105
    %p107 = scmp.ne.s32.totalorder %s95, %s96
    %p108 = scmp.eq.s32.totalorder %s23, 1
    %p109 = por %p107, %p108
    %p111 = scmp.ne.s32.totalorder %s96, %s110
    %p112 = scmp.eq.s32.totalorder %s23, 0
    %p113 = por %p111, %p112
    %s115 = sadd.s32 %s114, 1
    %p118 = scmp.eq.s32.totalorder %s17, 1
    %p119 = scmp.ne.s32.totalorder %s114, %s116
    %p120 = scmp.eq.s32.totalorder %s17, 0
    %p121 = por %p119, %p120
    %p122 = scmp.ne.s32.totalorder %s114, %s116
    %p123 = scmp.eq.s32.totalorder %s22, 1
    %p124 = por %p122, %p123
    %p125 = scmp.ne.s32.totalorder %s116, %s117
    %p126 = scmp.eq.s32.totalorder %s22, 0
    %p127 = por %p125, %p126
    %p128 = scmp.ne.s32.totalorder %s116, %s117
    %p129 = scmp.eq.s32.totalorder %s23, 1
    %p130 = por %p128, %p129
    %p132 = scmp.ne.s32.totalorder %s117, %s131
    %p133 = scmp.eq.s32.totalorder %s23, 0
    %p134 = por %p132, %p133
    %s136 = sadd.s32 %s135, 1
    %p139 = scmp.eq.s32.totalorder %s17, 1
    %p140 = scmp.ne.s32.totalorder %s135, %s137
    %p141 = scmp.eq.s32.totalorder %s17, 0
    %p142 = por %p140, %p141
    %p143 = scmp.ne.s32.totalorder %s135, %s137
    %p144 = scmp.eq.s32.totalorder %s22, 1
    %p145 = por %p143, %p144
    %p146 = scmp.ne.s32.totalorder %s137, %s138
    %p147 = scmp.eq.s32.totalorder %s22, 0
    %p148 = por %p146, %p147
    %p149 = scmp.ne.s32.totalorder %s137, %s138
    %p150 = scmp.eq.s32.totalorder %s23, 1
    %p151 = por %p149, %p150
    %p153 = scmp.ne.s32.totalorder %s138, %s152
    %p154 = scmp.eq.s32.totalorder %s23, 0
    %p155 = por %p153, %p154
    %s157 = sadd.s32 %s156, 1
    %p160 = scmp.eq.s32.totalorder %s17, 1
    %p161 = scmp.ne.s32.totalorder %s156, %s158
    %p162 = scmp.eq.s32.totalorder %s17, 0
    %p163 = por %p161, %p162
    %p164 = scmp.ne.s32.totalorder %s156, %s158
    %p165 = scmp.eq.s32.totalorder %s22, 1
    %p166 = por %p164, %p165
    %p167 = scmp.ne.s32.totalorder %s158, %s159
    %p168 = scmp.eq.s32.totalorder %s22, 0
    %p169 = por %p167, %p168
    %p170 = scmp.ne.s32.totalorder %s158, %s159
    %p171 = scmp.eq.s32.totalorder %s23, 1
    %p172 = por %p170, %p171
    %p174 = scmp.ne.s32.totalorder %s159, %s173
    %p175 = scmp.eq.s32.totalorder %s23, 0
    %p176 = por %p174, %p175
    %s178 = sadd.s32 %s177, 1
    %p181 = scmp.eq.s32.totalorder %s17, 1
    %p182 = scmp.ne.s32.totalorder %s177, %s179
    %p183 = scmp.eq.s32.totalorder %s17, 0
    %p184 = por %p182, %p183
    %p185 = scmp.ne.s32.totalorder %s177, %s179
    %p186 = scmp.eq.s32.totalorder %s22, 1
    %p187 = por %p185, %p186
    %p188 = scmp.ne.s32.totalorder %s179, %s180
    %p189 = scmp.eq.s32.totalorder %s22, 0
    %p190 = por %p188, %p189
    %p191 = scmp.ne.s32.totalorder %s179, %s180
    %p192 = scmp.eq.s32.totalorder %s23, 1
    %p193 = por %p191, %p192
    %p195 = scmp.ne.s32.totalorder %s180, %s194
    %p196 = scmp.eq.s32.totalorder %s23, 0
    %p197 = por %p195, %p196
    %s199 = sadd.s32 %s198, 1
    %p202 = scmp.eq.s32.totalorder %s17, 1
    %p203 = scmp.ne.s32.totalorder %s198, %s200
    %p204 = scmp.eq.s32.totalorder %s17, 0
    %p205 = por %p203, %p204
    %p206 = scmp.ne.s32.totalorder %s198, %s200
    %p207 = scmp.eq.s32.totalorder %s22, 1
    %p208 = por %p206, %p207
    %p209 = scmp.ne.s32.totalorder %s200, %s201
    %p210 = scmp.eq.s32.totalorder %s22, 0
    %p211 = por %p209, %p210
    %p212 = scmp.ne.s32.totalorder %s200, %s201
    %p213 = scmp.eq.s32.totalorder %s23, 1
    %p214 = por %p212, %p213
    %p216 = scmp.ne.s32.totalorder %s201, %s215
    %p217 = scmp.eq.s32.totalorder %s23, 0
    %p218 = por %p216, %p217
    %s220 = sadd.s32 %s219, 1
    %p223 = scmp.eq.s32.totalorder %s17, 1
    %p224 = scmp.ne.s32.totalorder %s219, %s221
    %p225 = scmp.eq.s32.totalorder %s17, 0
    %p226 = por %p224, %p225
    %p227 = scmp.ne.s32.totalorder %s219, %s221
    %p228 = scmp.eq.s32.totalorder %s22, 1
    %p229 = por %p227, %p228
    %p230 = scmp.ne.s32.totalorder %s221, %s222
    %p231 = scmp.eq.s32.totalorder %s22, 0
    %p232 = por %p230, %p231
    %p233 = scmp.ne.s32.totalorder %s221, %s222
    %p234 = scmp.eq.s32.totalorder %s23, 1
    %p235 = por %p233, %p234
    %p237 = scmp.ne.s32.totalorder %s222, %s236
    %p238 = scmp.eq.s32.totalorder %s23, 0
    %p239 = por %p237, %p238
    %s241 = sadd.s32 %s240, 1
    %p244 = scmp.eq.s32.totalorder %s17, 1
    %p245 = scmp.ne.s32.totalorder %s240, %s242
    %p246 = scmp.eq.s32.totalorder %s17, 0
    %p247 = por %p245, %p246
    %p248 = scmp.ne.s32.totalorder %s240, %s242
    %p249 = scmp.eq.s32.totalorder %s22, 1
    %p250 = por %p248, %p249
    %p251 = scmp.ne.s32.totalorder %s242, %s243
    %p252 = scmp.eq.s32.totalorder %s22, 0
    %p253 = por %p251, %p252
    %p254 = scmp.ne.s32.totalorder %s242, %s243
    %p255 = scmp.eq.s32.totalorder %s23, 1
    %p256 = por %p254, %p255
    %p258 = scmp.ne.s32.totalorder %s243, %s257
    %p259 = scmp.eq.s32.totalorder %s23, 0
    %p260 = por %p258, %p259
    %s261 = ssub.s32 %s17, %s24
    %p262 = scmp.eq.s32.totalorder %s261, 0
    %s264 = sadd.s32 %s263, 1
    %s265 = scalar_select %p262, %s263, %s264
    %p268 = pneg %p262
    %p269 = scmp.eq.s32.totalorder %s17, 1
    %p270 = por %p268, %p269
    %p271 = scmp.ne.s32.totalorder %s263, %s266
    %p272 = scmp.eq.s32.totalorder %s17, 0
    %p273 = por %p271, %p272
    %p274 = scmp.ne.s32.totalorder %s263, %s266
    %p275 = scmp.eq.s32.totalorder %s22, 1
    %p276 = por %p274, %p275
    %p277 = scmp.ne.s32.totalorder %s266, %s267
    %p278 = scmp.eq.s32.totalorder %s22, 0
    %p279 = por %p277, %p278
    %p280 = scmp.ne.s32.totalorder %s266, %s267
    %p281 = scmp.eq.s32.totalorder %s23, 1
    %p282 = por %p280, %p281
    %p284 = scmp.ne.s32.totalorder %s267, %s283
    %p285 = scmp.eq.s32.totalorder %s23, 0
    %p286 = por %p284, %p285
    %p287 = scmp.le.s32.totalorder 1, %s17
    %p288 = scmp.lt.s32.totalorder %s17, 3
    %p289 = pnand %p287, %p288
    %p290 = pneg %p289
    // Predicated region
    $region9: #{image_meta_model.5} parent=5 // pred_check
      _
    $region10: #{image_meta_model.5} parent=5 // pred_check_branch
      %292 = sbr.rel (%p289) target = $region12
    $region11: #{image_meta_model.5} parent=5 // pred_region
      %s293 = ssub.s32 %s17, 1
      // Predicated region
      $region13: #{image_meta_model.5} parent=11 // pred_check
        %p294 = pneg %p64
      $region14: #{image_meta_model.5} parent=11 // pred_check_branch
        %296 = sbr.rel (%p294) target = $region16
      $region15: #{image_meta_model.5} parent=11 // pred_region
        _
      $region16: #{image_meta_model.5} parent=11 // pred_fallthru
        _
      // Predicated region
      $region17: #{image_meta_model.5} parent=11 // pred_check
        %p297 = pneg %p85
      $region18: #{image_meta_model.5} parent=11 // pred_check_branch
        %299 = sbr.rel (%p297) target = $region20
      $region19: #{image_meta_model.5} parent=11 // pred_region
        _
      $region20: #{image_meta_model.5} parent=11 // pred_fallthru
        _
      // Predicated region
      $region21: #{image_meta_model.5} parent=11 // pred_check
        %p300 = pneg %p106
      $region22: #{image_meta_model.5} parent=11 // pred_check_branch
        %302 = sbr.rel (%p300) target = $region24
      $region23: #{image_meta_model.5} parent=11 // pred_region
        _
      $region24: #{image_meta_model.5} parent=11 // pred_fallthru
        _
      // Predicated region
      $region25: #{image_meta_model.5} parent=11 // pred_check
        %p303 = pneg %p127
      $region26: #{image_meta_model.5} parent=11 // pred_check_branch
        %305 = sbr.rel (%p303) target = $region28
      $region27: #{image_meta_model.5} parent=11 // pred_region
        _
      $region28: #{image_meta_model.5} parent=11 // pred_fallthru
        _
      // Predicated region
      $region29: #{image_meta_model.5} parent=11 // pred_check
        %p306 = pneg %p148
      $region30: #{image_meta_model.5} parent=11 // pred_check_branch
        %308 = sbr.rel (%p306) target = $region32
      $region31: #{image_meta_model.5} parent=11 // pred_region
        _
      $region32: #{image_meta_model.5} parent=11 // pred_fallthru
        _
      // Predicated region
      $region33: #{image_meta_model.5} parent=11 // pred_check
        %p309 = pneg %p169
      $region34: #{image_meta_model.5} parent=11 // pred_check_branch
        %311 = sbr.rel (%p309) target = $region36
      $region35: #{image_meta_model.5} parent=11 // pred_region
        _
      $region36: #{image_meta_model.5} parent=11 // pred_fallthru
        _
      // Predicated region
      $region37: #{image_meta_model.5} parent=11 // pred_check
        %p312 = pneg %p190
      $region38: #{image_meta_model.5} parent=11 // pred_check_branch
        %314 = sbr.rel (%p312) target = $region40
      $region39: #{image_meta_model.5} parent=11 // pred_region
        _
      $region40: #{image_meta_model.5} parent=11 // pred_fallthru
        _
      // Predicated region
      $region41: #{image_meta_model.5} parent=11 // pred_check
        %p315 = pneg %p211
      $region42: #{image_meta_model.5} parent=11 // pred_check_branch
        %317 = sbr.rel (%p315) target = $region44
      $region43: #{image_meta_model.5} parent=11 // pred_region
        _
      $region44: #{image_meta_model.5} parent=11 // pred_fallthru
        _
      // Predicated region
      $region45: #{image_meta_model.5} parent=11 // pred_check
        %p318 = pneg %p232
      $region46: #{image_meta_model.5} parent=11 // pred_check_branch
        %320 = sbr.rel (%p318) target = $region48
      $region47: #{image_meta_model.5} parent=11 // pred_region
        _
      $region48: #{image_meta_model.5} parent=11 // pred_fallthru
        _
      // Predicated region
      $region49: #{image_meta_model.5} parent=11 // pred_check
        %p321 = pneg %p253
      $region50: #{image_meta_model.5} parent=11 // pred_check_branch
        %323 = sbr.rel (%p321) target = $region52
      $region51: #{image_meta_model.5} parent=11 // pred_region
        _
      $region52: #{image_meta_model.5} parent=11 // pred_fallthru
        _
    $region12: #{image_meta_model.5} parent=5 // pred_fallthru
      _
    %p324 = scmp.lt.s32.totalorder %s17, 2
    // Predicated region
    $region53: #{image_meta_model.5} parent=5 // pred_check
      %p325 = pneg %p324
    $region54: #{image_meta_model.5} parent=5 // pred_check_branch
      %327 = sbr.rel (%p325) target = $region56
    $region55: #{image_meta_model.5} parent=5 // pred_region
      // Predicated region
      $region57: #{image_meta_model.5} parent=55 // pred_check
        %p328 = pneg %p37
      $region58: #{image_meta_model.5} parent=55 // pred_check_branch
        %330 = sbr.rel (%p328) target = $region60
      $region59: #{image_meta_model.5} parent=55 // pred_region
        %p331 = scmp.lt.s32.totalorder %s17, 1
        %s332 = scalar_select %p331, %s17, 1
        %s333 = smul.addr %s332, 2
        %s334 = smul.addr %s333, 8
        %s335 = scalar_lea.vmem %s0, %s334
      $region60: #{image_meta_model.5} parent=55 // pred_fallthru
        _
    $region56: #{image_meta_model.5} parent=5 // pred_fallthru
      _
    %p336 = scmp.le.s32.totalorder 1, %s17
    %p337 = scmp.lt.s32.totalorder %s17, 3
    %p338 = pnand %p336, %p337
    %p339 = pneg %p338
    // Predicated region
    $region61: #{image_meta_model.5} parent=5 // pred_check
      _
    $region62: #{image_meta_model.5} parent=5 // pred_check_branch
      %341 = sbr.rel (%p338) target = $region64
    $region63: #{image_meta_model.5} parent=5 // pred_region
      %s342 = ssub.s32 %s17, 1
      %p343 = scmp.lt.s32.totalorder %s22, 1
      %s344 = scalar_select %p343, %s22, 1
      %s345 = smul.addr %s344, 2
      %s346 = smul.addr %s345, 8
      %s347 = scalar_lea.vmem %s0, %s346
      %p348 = pneg %p43
      %p349 = pneg %p40
      %p350 = pneg %p64
      %p351 = pneg %p61
      %p352 = pneg %p85
      %p353 = pneg %p82
      %p354 = pneg %p106
      %p355 = pneg %p103
      %p356 = pneg %p127
      %p357 = pneg %p124
      %p358 = pneg %p148
      %p359 = pneg %p145
      %p360 = pneg %p169
      %p361 = pneg %p166
      %p362 = pneg %p190
      %p363 = pneg %p187
      %p364 = pneg %p211
      %p365 = pneg %p208
      %p366 = pneg %p232
      %p367 = pneg %p229
      %p368 = pneg %p253
      %p369 = pneg %p250
      %p370 = pneg %p279
      %p371 = pneg %p276
      %p372 = scmp.lt.s32.totalorder %s22, 1
      %s373 = scalar_select %p372, %s22, 1
      %s374 = smul.addr %s373, 2
      %s375 = smul.addr %s374, 8
      %s376 = scalar_lea.vmem %s11, %s375
      %p377 = scmp.lt.s32.totalorder %s22, 1
      %s378 = scalar_select %p377, %s22, 1
      %s379 = smul.addr %s378, 2
      %s380 = smul.addr %s379, 8
      %s381 = scalar_lea.vmem %s0, %s380
      %p382 = scmp.lt.s32.totalorder %s22, 1
      %s383 = scalar_select %p382, %s22, 1
      %s384 = smul.addr %s383, 2
      %s385 = smul.addr %s384, 8
      %s386 = scalar_lea.vmem %s11, %s385
      %v388 = vld [vmem:[%s381] sm:$0xff]
      %v389 = vld [vmem:[%s381 + $0x8] sm:$0xff]
      %v390 = vld [vmem:[%s1] sm:$0x1]
      %v391 = vld [vmem:[%s2] sm:$0x1]
      %392 = vadd.xlane.f32.xlu0 %v388
      %v393 = vpop.xlane.xlu0 %392
      %394 = vadd.xlane.f32.xlu0 %v389
      %v395 = vpop.xlane.xlu0 %394
      %v396 = vrcp.pop 128.0
      %v397 = vmul.f32 %v393, %v396
      %v398 = vmul.f32 %v395, %v396
      %v399 = vsub.f32 %v388, %v397
      %v400 = vsub.f32 %v389, %v398
      %v401 = vmul.f32 %v399, %v399
      %v402 = vmul.f32 %v400, %v400
      %403 = vadd.xlane.f32.xlu0 %v401
      %v404 = vpop.xlane.xlu0 %403
      %405 = vadd.xlane.f32.xlu0 %v402
      %v406 = vpop.xlane.xlu0 %405
      %v407 = vmul.f32 %v404, %v396
      %v408 = vmul.f32 %v406, %v396
      %v409 = vadd.f32 %v407, 1e-05
      %v410 = vadd.f32 %v408, 1e-05
      %v411 = vrsqrt.pop %v409
      %v412 = vrsqrt.pop %v410
      %v413 = vmul.f32 %v399, %v411
      %v414 = vmul.f32 %v400, %v412
      %v416 = vlaneseq
      %v417 = vshrl.u32 %v416, 7
      %v418 = vsub.s32 0, %v417
      %v419 = vrot.slane %v390, %v418
      %v421 = vmul.f32 %v413, %v419
      %v422 = vmul.f32 %v414, %v419
      %v424 = vlaneseq
      %v425 = vshrl.u32 %v424, 7
      %v426 = vsub.s32 0, %v425
      %v427 = vrot.slane %v391, %v426
      %v429 = vadd.f32 %v421, %v427
      %v430 = vadd.f32 %v422, %v427
      %v431 = vpack.c.bf16 %v430, %v429
      %v432 = vld [vmem:[%s3] sm:$0xff]
      %v433 = vld [vmem:[%s3 + $0x8] sm:$0xf]
      %v434 = vld [vmem:[%s3 + $0xc] sm:$0xff]
      %v435 = vld [vmem:[%s3 + $0x14] sm:$0xf]
      %v436 = vld [vmem:[%s3 + $0x18] sm:$0xff]
      %v437 = vld [vmem:[%s3 + $0x20] sm:$0xf]
      %v438 = vld [vmem:[%s3 + $0x24] sm:$0xff]
      %v439 = vld [vmem:[%s3 + $0x2c] sm:$0xf]
      %v440 = vld [vmem:[%s3 + $0x30] sm:$0xff]
      %v441 = vld [vmem:[%s3 + $0x38] sm:$0xf]
      %v442 = vld [vmem:[%s3 + $0x3c] sm:$0xff]
      %v443 = vld [vmem:[%s3 + $0x44] sm:$0xf]
      %v444 = vld [vmem:[%s3 + $0x48] sm:$0xff]
      %v445 = vld [vmem:[%s3 + $0x50] sm:$0xf]
      %v446 = vld [vmem:[%s3 + $0x54] sm:$0xff]
      %v447 = vld [vmem:[%s3 + $0x5c] sm:$0xf]
      %v448 = vld [vmem:[%s3 + $0x60] sm:$0xff]
      %v449 = vld [vmem:[%s3 + $0x68] sm:$0xf]
      %v450 = vld [vmem:[%s3 + $0x6c] sm:$0xff]
      %v451 = vld [vmem:[%s3 + $0x74] sm:$0xf]
      %v452 = vld [vmem:[%s3 + $0x78] sm:$0xff]
      %v453 = vld [vmem:[%s3 + $0x80] sm:$0xf]
      %v454 = vld [vmem:[%s3 + $0x84] sm:$0xff]
      %v455 = vld [vmem:[%s3 + $0x8c] sm:$0xf]
      %v456 = vld [vmem:[%s3 + $0x90] sm:$0xff]
      %v457 = vld [vmem:[%s3 + $0x98] sm:$0xf]
      %v458 = vld [vmem:[%s3 + $0x9c] sm:$0xff]
      %v459 = vld [vmem:[%s3 + $0xa4] sm:$0xf]
      %v460 = vld [vmem:[%s3 + $0xa8] sm:$0xff]
      %v461 = vld [vmem:[%s3 + $0xb0] sm:$0xf]
      %v462 = vld [vmem:[%s3 + $0xb4] sm:$0xff]
      %v463 = vld [vmem:[%s3 + $0xbc] sm:$0xf]
      %v496 = vunpack.c.l.b16 %v432
      %v497 = vunpack.c.h.b16 %v432
      %v498 = vunpack.c.l.b16 %v433
      %v499 = vunpack.c.l.b16 %v434
      %v500 = vunpack.c.h.b16 %v434
      %v501 = vunpack.c.l.b16 %v435
      %v502 = vunpack.c.l.b16 %v436
      %v503 = vunpack.c.h.b16 %v436
      %v504 = vunpack.c.l.b16 %v437
      %v505 = vunpack.c.l.b16 %v438
      %v506 = vunpack.c.h.b16 %v438
      %v507 = vunpack.c.l.b16 %v439
      %v508 = vunpack.c.l.b16 %v440
      %v509 = vunpack.c.h.b16 %v440
      %v510 = vunpack.c.l.b16 %v441
      %v511 = vunpack.c.l.b16 %v442
      %v512 = vunpack.c.h.b16 %v442
      %v513 = vunpack.c.l.b16 %v443
      %v514 = vunpack.c.l.b16 %v444
      %v515 = vunpack.c.h.b16 %v444
      %v516 = vunpack.c.l.b16 %v445
      %v517 = vunpack.c.l.b16 %v446
      %v518 = vunpack.c.h.b16 %v446
      %v519 = vunpack.c.l.b16 %v447
      %v520 = vunpack.c.l.b16 %v448
      %v521 = vunpack.c.h.b16 %v448
      %v522 = vunpack.c.l.b16 %v449
      %v523 = vunpack.c.l.b16 %v450
      %v524 = vunpack.c.h.b16 %v450
      %v525 = vunpack.c.l.b16 %v451
      %v526 = vunpack.c.l.b16 %v452
      %v527 = vunpack.c.h.b16 %v452
      %v528 = vunpack.c.l.b16 %v453
      %v529 = vunpack.c.l.b16 %v454
      %v530 = vunpack.c.h.b16 %v454
      %v531 = vunpack.c.l.b16 %v455
      %v532 = vunpack.c.l.b16 %v456
      %v533 = vunpack.c.h.b16 %v456
      %v534 = vunpack.c.l.b16 %v457
      %v535 = vunpack.c.l.b16 %v458
      %v536 = vunpack.c.h.b16 %v458
      %v537 = vunpack.c.l.b16 %v459
      %v538 = vunpack.c.l.b16 %v460
      %v539 = vunpack.c.h.b16 %v460
      %v540 = vunpack.c.l.b16 %v461
      %v541 = vunpack.c.l.b16 %v462
      %v542 = vunpack.c.h.b16 %v462
      %v543 = vunpack.c.l.b16 %v463
      %v544 = vpack.c.b16 %v499, %v496
      %v545 = vpack.c.b16 %v500, %v497
      %v546 = vpack.c.b16 %v501, %v498
      %v547 = vpack.c.b16 %v505, %v502
      %v548 = vpack.c.b16 %v506, %v503
      %v549 = vpack.c.b16 %v507, %v504
      %v550 = vpack.c.b16 %v511, %v508
      %v551 = vpack.c.b16 %v512, %v509
      %v552 = vpack.c.b16 %v513, %v510
      %v553 = vpack.c.b16 %v517, %v514
      %v554 = vpack.c.b16 %v518, %v515
      %v555 = vpack.c.b16 %v519, %v516
      %v556 = vpack.c.b16 %v523, %v520
      %v557 = vpack.c.b16 %v524, %v521
      %v558 = vpack.c.b16 %v525, %v522
      %v559 = vpack.c.b16 %v529, %v526
      %v560 = vpack.c.b16 %v530, %v527
      %v561 = vpack.c.b16 %v531, %v528
      %v562 = vpack.c.b16 %v535, %v532
      %v563 = vpack.c.b16 %v536, %v533
      %v564 = vpack.c.b16 %v537, %v534
      %v565 = vpack.c.b16 %v541, %v538
      %v566 = vpack.c.b16 %v542, %v539
      %v567 = vpack.c.b16 %v543, %v540
      %592 = vmatprep.subr.bf16.mxu0 %v566
      %593 = vmatpush1.bf16.msra.mxu0 %v565
      %594 = vmatprep.subr.bf16.mxu0 %v563
      %595 = vmatpush1.bf16.msra.mxu0 %v562
      %596 = vmatprep.subr.bf16.mxu0 %v560
      %597 = vmatpush1.bf16.msra.mxu0 %v559
      %598 = vmatprep.subr.bf16.mxu0 %v557
      %599 = vmatpush1.bf16.msra.mxu0 %v556
      %600 = vmatprep.subr.bf16.mxu0 %v554
      %601 = vmatpush1.bf16.msra.mxu0 %v553
      %602 = vmatprep.subr.bf16.mxu0 %v551
      %603 = vmatpush1.bf16.msra.mxu0 %v550
      %604 = vmatprep.subr.bf16.mxu0 %v548
      %605 = vmatpush1.bf16.msra.mxu0 %v547
      %606 = vmatprep.subr.bf16.mxu0 %v545
      %607 = vmatpush1.bf16.msra.mxu0 %v544
      %608 = vmatprep.subr.bf16.mxu0 0
      %609 = vmatpush2.bf16.msra.mxu0 0
      %610 = vmatprep.subr.bf16.mxu0 0
      %611 = vmatpush2.bf16.msra.mxu0 0
      %612 = vmatprep.subr.bf16.mxu0 0
      %613 = vmatpush2.bf16.msra.mxu0 0
      %614 = vmatprep.subr.bf16.mxu0 0
      %615 = vmatpush2.bf16.msra.mxu0 0
      %616 = vmatprep.subr.bf16.mxu0 0
      %617 = vmatpush2.bf16.msra.mxu0 0
      %618 = vmatprep.subr.bf16.mxu0 0
      %619 = vmatpush2.bf16.msra.mxu0 0
      %620 = vmatprep.subr.bf16.mxu0 0
      %621 = vmatpush2.bf16.msra.mxu0 0
      %622 = vmatprep.subr.bf16.mxu0 0
      %623 = vmatpush2.bf16.msra.mxu0 0
      %624 = vmatprep.mubr.bf16.mxu0 0
      %625 = vmatmul.mubr.bf16.gmra.mxu0 %v431
      %v626 = vpop.f32.mrf.mxu0
      %v627 = vadd.f32 0.0, %v626
      %v628 = vpop.f32.mrf.mxu0
      %v629 = vadd.f32 0.0, %v628
      %v630 = vpop.f32.mrf.mxu0
      %v631 = vadd.f32 0.0, %v630
      %v632 = vpop.f32.mrf.mxu0
      %v633 = vadd.f32 0.0, %v632
      %634 = vdwg.mxu0
      %635 = vmatprep.subr.bf16.mxu0 0
      %636 = vmatpush1.bf16.msra.mxu0 %v567
      %637 = vmatprep.subr.bf16.mxu0 0
      %638 = vmatpush1.bf16.msra.mxu0 %v564
      %639 = vmatprep.subr.bf16.mxu0 0
      %640 = vmatpush1.bf16.msra.mxu0 %v561
      %641 = vmatprep.subr.bf16.mxu0 0
      %642 = vmatpush1.bf16.msra.mxu0 %v558
      %643 = vmatprep.subr.bf16.mxu0 0
      %644 = vmatpush1.bf16.msra.mxu0 %v555
      %645 = vmatprep.subr.bf16.mxu0 0
      %646 = vmatpush1.bf16.msra.mxu0 %v552
      %647 = vmatprep.subr.bf16.mxu0 0
      %648 = vmatpush1.bf16.msra.mxu0 %v549
      %649 = vmatprep.subr.bf16.mxu0 0
      %650 = vmatpush1.bf16.msra.mxu0 %v546
      %651 = vmatprep.subr.bf16.mxu0 0
      %652 = vmatpush2.bf16.msra.mxu0 0
      %653 = vmatprep.subr.bf16.mxu0 0
      %654 = vmatpush2.bf16.msra.mxu0 0
      %655 = vmatprep.subr.bf16.mxu0 0
      %656 = vmatpush2.bf16.msra.mxu0 0
      %657 = vmatprep.subr.bf16.mxu0 0
      %658 = vmatpush2.bf16.msra.mxu0 0
      %659 = vmatprep.subr.bf16.mxu0 0
      %660 = vmatpush2.bf16.msra.mxu0 0
      %661 = vmatprep.subr.bf16.mxu0 0
      %662 = vmatpush2.bf16.msra.mxu0 0
      %663 = vmatprep.subr.bf16.mxu0 0
      %664 = vmatpush2.bf16.msra.mxu0 0
      %665 = vmatprep.subr.bf16.mxu0 0
      %666 = vmatpush2.bf16.msra.mxu0 0
      %667 = vmatprep.mubr.bf16.mxu0 0
      %668 = vmatmul.mubr.bf16.gmra.mxu0 %v431
      %v669 = vpop.f32.mrf.mxu0
      %v670 = vadd.f32 0.0, %v669
      %v671 = vpop.f32.mrf.mxu0
      %v672 = vpop.f32.mrf.mxu0
      %v673 = vadd.f32 0.0, %v672
      %v674 = vpop.f32.mrf.mxu0
      %675 = vdwg.mxu0
      %v676 = vpack.c.bf16 %v631, %v627
      %v677 = vpack.c.bf16 %v633, %v629
      %v678 = vpack.c.bf16 %v673, %v670
      %vm679 = vcmask 261120
      %v681 = vsel %vm679, %v676, 0
      %v684 = vsel %vm679, %v677, 0
      %686 = vmatprep.subr.bf16.mxu0 0
      %687 = vmatpush1.bf16.xpose.msra.mxu0 0
      %688 = vmatprep.subr.bf16.mxu0 0
      %689 = vmatpush1.bf16.xpose.msra.mxu0 0
      %690 = vmatprep.subr.bf16.mxu0 0
      %691 = vmatpush1.bf16.xpose.msra.mxu0 0
      %692 = vmatprep.subr.bf16.mxu0 0
      %693 = vmatpush1.bf16.xpose.msra.mxu0 0
      %694 = vmatprep.subr.bf16.mxu0 0
      %695 = vmatpush1.bf16.xpose.msra.mxu0 0
      %696 = vmatprep.subr.bf16.mxu0 0
      %697 = vmatpush1.bf16.xpose.msra.mxu0 0
      %698 = vmatprep.subr.bf16.mxu0 0
      %699 = vmatpush1.bf16.xpose.msra.mxu0 0
      %700 = vmatprep.subr.bf16.mxu0 0
      %701 = vmatpush1.bf16.xpose.msra.mxu0 %v684
      %702 = vmatprep.subr.bf16.mxu0 0
      %703 = vmatpush2.bf16.xpose.msra.mxu0 0
      %704 = vmatprep.subr.bf16.mxu0 0
      %705 = vmatpush2.bf16.xpose.msra.mxu0 0
      %706 = vmatprep.subr.bf16.mxu0 0
      %707 = vmatpush2.bf16.xpose.msra.mxu0 0
      %708 = vmatprep.subr.bf16.mxu0 0
      %709 = vmatpush2.bf16.xpose.msra.mxu0 0
      %710 = vmatprep.subr.bf16.mxu0 0
      %711 = vmatpush2.bf16.xpose.msra.mxu0 0
      %712 = vmatprep.subr.bf16.mxu0 0
      %713 = vmatpush2.bf16.xpose.msra.mxu0 0
      %714 = vmatprep.subr.bf16.mxu0 0
      %715 = vmatpush2.bf16.xpose.msra.mxu0 0
      %716 = vmatprep.subr.bf16.mxu0 0
      %717 = vmatpush2.bf16.xpose.msra.mxu0 0
      %718 = vmatprep.mubr.bf16.mxu0 0
      %719 = vmatmul.mubr.bf16.gmra.mxu0 %v681
      %v720 = vpop.f32.mrf.mxu0
      %v721 = vadd.f32 0.0, %v720
      %v722 = vpop.f32.mrf.mxu0
      %v723 = vpop.f32.mrf.mxu0
      %v724 = vadd.f32 0.0, %v723
      %v725 = vpop.f32.mrf.mxu0
      %726 = vdwg.mxu0
      %vm727 = vcmask 130048
      %v728 = vsel %vm727, %v721, -inf
      %729 = vmax.xlane.f32.xlu0 %v728
      %v730 = vpop.xlane.xlu0 %729
      %v731 = vsel %vm727, %v724, -inf
      %732 = vmax.xlane.f32.xlu0 %v731
      %v733 = vpop.xlane.xlu0 %732
      %v734 = vsub.f32 %v721, %v730
      %v735 = vsub.f32 %v724, %v733
      %v736 = vmul.f32 %v734, 1.442695
      %v737 = vpow.pop %v736
      %v738 = vmul.f32 %v735, 1.442695
      %v739 = vpow.pop %v738
      %v740 = vsel %vm727, %v737, 0.0
      %741 = vadd.xlane.f32.xlu0 %v740
      %v742 = vpop.xlane.xlu0 %741
      %v743 = vsel %vm727, %v739, 0.0
      %744 = vadd.xlane.f32.xlu0 %v743
      %v745 = vpop.xlane.xlu0 %744
      %v746 = vrcp.pop %v742
      %v747 = vrcp.pop %v745
      %v748 = vmul.f32 %v737, %v746
      %v749 = vmul.f32 %v739, %v747
      %v750 = vpack.c.bf16 %v749, %v748
      %v752 = vsel %vm727, %v750, 0
      %754 = vmatprep.subr.bf16.mxu0 0
      %755 = vmatpush1.bf16.msra.mxu0 0
      %756 = vmatprep.subr.bf16.mxu0 0
      %757 = vmatpush1.bf16.msra.mxu0 0
      %758 = vmatprep.subr.bf16.mxu0 0
      %759 = vmatpush1.bf16.msra.mxu0 0
      %760 = vmatprep.subr.bf16.mxu0 0
      %761 = vmatpush1.bf16.msra.mxu0 0
      %762 = vmatprep.subr.bf16.mxu0 0
      %763 = vmatpush1.bf16.msra.mxu0 0
      %764 = vmatprep.subr.bf16.mxu0 0
      %765 = vmatpush1.bf16.msra.mxu0 0
      %766 = vmatprep.subr.bf16.mxu0 0
      %767 = vmatpush1.bf16.msra.mxu0 0
      %768 = vmatprep.subr.bf16.mxu0 0
      %769 = vmatpush1.bf16.msra.mxu0 %v678
      %770 = vmatprep.subr.bf16.mxu0 0
      %771 = vmatpush2.bf16.msra.mxu0 0
      %772 = vmatprep.subr.bf16.mxu0 0
      %773 = vmatpush2.bf16.msra.mxu0 0
      %774 = vmatprep.subr.bf16.mxu0 0
      %775 = vmatpush2.bf16.msra.mxu0 0
      %776 = vmatprep.subr.bf16.mxu0 0
      %777 = vmatpush2.bf16.msra.mxu0 0
      %778 = vmatprep.subr.bf16.mxu0 0
      %779 = vmatpush2.bf16.msra.mxu0 0
      %780 = vmatprep.subr.bf16.mxu0 0
      %781 = vmatpush2.bf16.msra.mxu0 0
      %782 = vmatprep.subr.bf16.mxu0 0
      %783 = vmatpush2.bf16.msra.mxu0 0
      %784 = vmatprep.subr.bf16.mxu0 0
      %785 = vmatpush2.bf16.msra.mxu0 0
      %786 = vmatprep.mubr.bf16.mxu0 0
      %787 = vmatmul.mubr.bf16.gmra.mxu0 %v752
      %v788 = vpop.f32.mrf.mxu0
      %v789 = vadd.f32 0.0, %v788
      %v790 = vpop.f32.mrf.mxu0
      %v791 = vpop.f32.mrf.mxu0
      %v792 = vadd.f32 0.0, %v791
      %v793 = vpop.f32.mrf.mxu0
      %794 = vdwg.mxu0
      %796 = vrot.lane.b32.xlu0 %v676, 96
      %v797 = vpop.permute.xlu0 %796
      %799 = vrot.lane.b32.xlu0 %v677, 96
      %v800 = vpop.permute.xlu0 %799
      %v802 = vsel %vm679, %v797, 0
      %v805 = vsel %vm679, %v800, 0
      %807 = vmatprep.subr.bf16.mxu0 0
      %808 = vmatpush1.bf16.xpose.msra.mxu0 0
      %809 = vmatprep.subr.bf16.mxu0 0
      %810 = vmatpush1.bf16.xpose.msra.mxu0 0
      %811 = vmatprep.subr.bf16.mxu0 0
      %812 = vmatpush1.bf16.xpose.msra.mxu0 0
      %813 = vmatprep.subr.bf16.mxu0 0
      %814 = vmatpush1.bf16.xpose.msra.mxu0 0
      %815 = vmatprep.subr.bf16.mxu0 0
      %816 = vmatpush1.bf16.xpose.msra.mxu0 0
      %817 = vmatprep.subr.bf16.mxu0 0
      %818 = vmatpush1.bf16.xpose.msra.mxu0 0
      %819 = vmatprep.subr.bf16.mxu0 0
      %820 = vmatpush1.bf16.xpose.msra.mxu0 0
      %821 = vmatprep.subr.bf16.mxu0 0
      %822 = vmatpush1.bf16.xpose.msra.mxu0 %v805
      %823 = vmatprep.subr.bf16.mxu0 0
      %824 = vmatpush2.bf16.xpose.msra.mxu0 0
      %825 = vmatprep.subr.bf16.mxu0 0
      %826 = vmatpush2.bf16.xpose.msra.mxu0 0
      %827 = vmatprep.subr.bf16.mxu0 0
      %828 = vmatpush2.bf16.xpose.msra.mxu0 0
      %829 = vmatprep.subr.bf16.mxu0 0
      %830 = vmatpush2.bf16.xpose.msra.mxu0 0
      %831 = vmatprep.subr.bf16.mxu0 0
      %832 = vmatpush2.bf16.xpose.msra.mxu0 0
      %833 = vmatprep.subr.bf16.mxu0 0
      %834 = vmatpush2.bf16.xpose.msra.mxu0 0
      %835 = vmatprep.subr.bf16.mxu0 0
      %836 = vmatpush2.bf16.xpose.msra.mxu0 0
      %837 = vmatprep.subr.bf16.mxu0 0
      %838 = vmatpush2.bf16.xpose.msra.mxu0 0
      %839 = vmatprep.mubr.bf16.mxu0 0
      %840 = vmatmul.mubr.bf16.gmra.mxu0 %v802
      %v841 = vpop.f32.mrf.mxu0
      %v842 = vadd.f32 0.0, %v841
      %v843 = vpop.f32.mrf.mxu0
      %v844 = vpop.f32.mrf.mxu0
      %v845 = vadd.f32 0.0, %v844
      %v846 = vpop.f32.mrf.mxu0
      %847 = vdwg.mxu0
      %v848 = vsel %vm727, %v842, -inf
      %849 = vmax.xlane.f32.xlu0 %v848
      %v850 = vpop.xlane.xlu0 %849
      %v851 = vsel %vm727, %v845, -inf
      %852 = vmax.xlane.f32.xlu0 %v851
      %v853 = vpop.xlane.xlu0 %852
      %v854 = vsub.f32 %v842, %v850
      %v855 = vsub.f32 %v845, %v853
      %v856 = vmul.f32 %v854, 1.442695
      %v857 = vpow.pop %v856
      %v858 = vmul.f32 %v855, 1.442695
      %v859 = vpow.pop %v858
      %v860 = vsel %vm727, %v857, 0.0
      %861 = vadd.xlane.f32.xlu0 %v860
      %v862 = vpop.xlane.xlu0 %861
      %v863 = vsel %vm727, %v859, 0.0
      %864 = vadd.xlane.f32.xlu0 %v863
      %v865 = vpop.xlane.xlu0 %864
      %v866 = vrcp.pop %v862
      %v867 = vrcp.pop %v865
      %v868 = vmul.f32 %v857, %v866
      %v869 = vmul.f32 %v859, %v867
      %v870 = vpack.c.bf16 %v869, %v868
      %872 = vrot.lane.b32.xlu0 %v678, 96
      %v873 = vpop.permute.xlu0 %872
      %v876 = vsel %vm727, %v870, 0
      %878 = vmatprep.subr.bf16.mxu0 0
      %879 = vmatpush1.bf16.msra.mxu0 0
      %880 = vmatprep.subr.bf16.mxu0 0
      %881 = vmatpush1.bf16.msra.mxu0 0
      %882 = vmatprep.subr.bf16.mxu0 0
      %883 = vmatpush1.bf16.msra.mxu0 0
      %884 = vmatprep.subr.bf16.mxu0 0
      %885 = vmatpush1.bf16.msra.mxu0 0
      %886 = vmatprep.subr.bf16.mxu0 0
      %887 = vmatpush1.bf16.msra.mxu0 0
      %888 = vmatprep.subr.bf16.mxu0 0
      %889 = vmatpush1.bf16.msra.mxu0 0
      %890 = vmatprep.subr.bf16.mxu0 0
      %891 = vmatpush1.bf16.msra.mxu0 0
      %892 = vmatprep.subr.bf16.mxu0 0
      %893 = vmatpush1.bf16.msra.mxu0 %v873
      %894 = vmatprep.subr.bf16.mxu0 0
      %895 = vmatpush2.bf16.msra.mxu0 0
      %896 = vmatprep.subr.bf16.mxu0 0
      %897 = vmatpush2.bf16.msra.mxu0 0
      %898 = vmatprep.subr.bf16.mxu0 0
      %899 = vmatpush2.bf16.msra.mxu0 0
      %900 = vmatprep.subr.bf16.mxu0 0
      %901 = vmatpush2.bf16.msra.mxu0 0
      %902 = vmatprep.subr.bf16.mxu0 0
      %903 = vmatpush2.bf16.msra.mxu0 0
      %904 = vmatprep.subr.bf16.mxu0 0
      %905 = vmatpush2.bf16.msra.mxu0 0
      %906 = vmatprep.subr.bf16.mxu0 0
      %907 = vmatpush2.bf16.msra.mxu0 0
      %908 = vmatprep.subr.bf16.mxu0 0
      %909 = vmatpush2.bf16.msra.mxu0 0
      %910 = vmatprep.mubr.bf16.mxu0 0
      %911 = vmatmul.mubr.bf16.gmra.mxu0 %v876
      %v912 = vpop.f32.mrf.mxu0
      %v913 = vadd.f32 0.0, %v912
      %v914 = vpop.f32.mrf.mxu0
      %v915 = vpop.f32.mrf.mxu0
      %v916 = vadd.f32 0.0, %v915
      %v917 = vpop.f32.mrf.mxu0
      %918 = vdwg.mxu0
      %919 = vrot.lane.b32.xlu0 %v676, 64
      %v920 = vpop.permute.xlu0 %919
      %921 = vrot.lane.b32.xlu0 %v677, 64
      %v922 = vpop.permute.xlu0 %921
      %v924 = vsel %vm679, %v920, 0
      %v927 = vsel %vm679, %v922, 0
      %929 = vmatprep.subr.bf16.mxu0 0
      %930 = vmatpush1.bf16.xpose.msra.mxu0 0
      %931 = vmatprep.subr.bf16.mxu0 0
      %932 = vmatpush1.bf16.xpose.msra.mxu0 0
      %933 = vmatprep.subr.bf16.mxu0 0
      %934 = vmatpush1.bf16.xpose.msra.mxu0 0
      %935 = vmatprep.subr.bf16.mxu0 0
      %936 = vmatpush1.bf16.xpose.msra.mxu0 0
      %937 = vmatprep.subr.bf16.mxu0 0
      %938 = vmatpush1.bf16.xpose.msra.mxu0 0
      %939 = vmatprep.subr.bf16.mxu0 0
      %940 = vmatpush1.bf16.xpose.msra.mxu0 0
      %941 = vmatprep.subr.bf16.mxu0 0
      %942 = vmatpush1.bf16.xpose.msra.mxu0 0
      %943 = vmatprep.subr.bf16.mxu0 0
      %944 = vmatpush1.bf16.xpose.msra.mxu0 %v927
      %945 = vmatprep.subr.bf16.mxu0 0
      %946 = vmatpush2.bf16.xpose.msra.mxu0 0
      %947 = vmatprep.subr.bf16.mxu0 0
      %948 = vmatpush2.bf16.xpose.msra.mxu0 0
      %949 = vmatprep.subr.bf16.mxu0 0
      %950 = vmatpush2.bf16.xpose.msra.mxu0 0
      %951 = vmatprep.subr.bf16.mxu0 0
      %952 = vmatpush2.bf16.xpose.msra.mxu0 0
      %953 = vmatprep.subr.bf16.mxu0 0
      %954 = vmatpush2.bf16.xpose.msra.mxu0 0
      %955 = vmatprep.subr.bf16.mxu0 0
      %956 = vmatpush2.bf16.xpose.msra.mxu0 0
      %957 = vmatprep.subr.bf16.mxu0 0
      %958 = vmatpush2.bf16.xpose.msra.mxu0 0
      %959 = vmatprep.subr.bf16.mxu0 0
      %960 = vmatpush2.bf16.xpose.msra.mxu0 0
      %961 = vmatprep.mubr.bf16.mxu0 0
      %962 = vmatmul.mubr.bf16.gmra.mxu0 %v924
      %v963 = vpop.f32.mrf.mxu0
      %v964 = vadd.f32 0.0, %v963
      %v965 = vpop.f32.mrf.mxu0
      %v966 = vpop.f32.mrf.mxu0
      %v967 = vadd.f32 0.0, %v966
      %v968 = vpop.f32.mrf.mxu0
      %969 = vdwg.mxu0
      %v970 = vsel %vm727, %v964, -inf
      %971 = vmax.xlane.f32.xlu0 %v970
      %v972 = vpop.xlane.xlu0 %971
      %v973 = vsel %vm727, %v967, -inf
      %974 = vmax.xlane.f32.xlu0 %v973
      %v975 = vpop.xlane.xlu0 %974
      %v976 = vsub.f32 %v964, %v972
      %v977 = vsub.f32 %v967, %v975
      %v978 = vmul.f32 %v976, 1.442695
      %v979 = vpow.pop %v978
      %v980 = vmul.f32 %v977, 1.442695
      %v981 = vpow.pop %v980
      %v982 = vsel %vm727, %v979, 0.0
      %983 = vadd.xlane.f32.xlu0 %v982
      %v984 = vpop.xlane.xlu0 %983
      %v985 = vsel %vm727, %v981, 0.0
      %986 = vadd.xlane.f32.xlu0 %v985
      %v987 = vpop.xlane.xlu0 %986
      %v988 = vrcp.pop %v984
      %v989 = vrcp.pop %v987
      %v990 = vmul.f32 %v979, %v988
      %v991 = vmul.f32 %v981, %v989
      %v992 = vpack.c.bf16 %v991, %v990
      %993 = vrot.lane.b32.xlu0 %v678, 64
      %v994 = vpop.permute.xlu0 %993
      %v997 = vsel %vm727, %v992, 0
      %999 = vmatprep.subr.bf16.mxu0 0
      %1000 = vmatpush1.bf16.msra.mxu0 0
      %1001 = vmatprep.subr.bf16.mxu0 0
      %1002 = vmatpush1.bf16.msra.mxu0 0
      %1003 = vmatprep.subr.bf16.mxu0 0
      %1004 = vmatpush1.bf16.msra.mxu0 0
      %1005 = vmatprep.subr.bf16.mxu0 0
      %1006 = vmatpush1.bf16.msra.mxu0 0
      %1007 = vmatprep.subr.bf16.mxu0 0
      %1008 = vmatpush1.bf16.msra.mxu0 0
      %1009 = vmatprep.subr.bf16.mxu0 0
      %1010 = vmatpush1.bf16.msra.mxu0 0
      %1011 = vmatprep.subr.bf16.mxu0 0
      %1012 = vmatpush1.bf16.msra.mxu0 0
      %1013 = vmatprep.subr.bf16.mxu0 0
      %1014 = vmatpush1.bf16.msra.mxu0 %v994
      %1015 = vmatprep.subr.bf16.mxu0 0
      %1016 = vmatpush2.bf16.msra.mxu0 0
      %1017 = vmatprep.subr.bf16.mxu0 0
      %1018 = vmatpush2.bf16.msra.mxu0 0
      %1019 = vmatprep.subr.bf16.mxu0 0
      %1020 = vmatpush2.bf16.msra.mxu0 0
      %1021 = vmatprep.subr.bf16.mxu0 0
      %1022 = vmatpush2.bf16.msra.mxu0 0
      %1023 = vmatprep.subr.bf16.mxu0 0
      %1024 = vmatpush2.bf16.msra.mxu0 0
      %1025 = vmatprep.subr.bf16.mxu0 0
      %1026 = vmatpush2.bf16.msra.mxu0 0
      %1027 = vmatprep.subr.bf16.mxu0 0
      %1028 = vmatpush2.bf16.msra.mxu0 0
      %1029 = vmatprep.subr.bf16.mxu0 0
      %1030 = vmatpush2.bf16.msra.mxu0 0
      %1031 = vmatprep.mubr.bf16.mxu0 0
      %1032 = vmatmul.mubr.bf16.gmra.mxu0 %v997
      %v1033 = vpop.f32.mrf.mxu0
      %v1034 = vadd.f32 0.0, %v1033
      %v1035 = vpop.f32.mrf.mxu0
      %v1036 = vpop.f32.mrf.mxu0
      %v1037 = vadd.f32 0.0, %v1036
      %v1038 = vpop.f32.mrf.mxu0
      %1039 = vdwg.mxu0
      %1040 = vrot.lane.b32.xlu0 %v676, 32
      %v1041 = vpop.permute.xlu0 %1040
      %1042 = vrot.lane.b32.xlu0 %v677, 32
      %v1043 = vpop.permute.xlu0 %1042
      %v1045 = vsel %vm679, %v1041, 0
      %v1048 = vsel %vm679, %v1043, 0
      %1050 = vmatprep.subr.bf16.mxu0 0
      %1051 = vmatpush1.bf16.xpose.msra.mxu0 0
      %1052 = vmatprep.subr.bf16.mxu0 0
      %1053 = vmatpush1.bf16.xpose.msra.mxu0 0
      %1054 = vmatprep.subr.bf16.mxu0 0
      %1055 = vmatpush1.bf16.xpose.msra.mxu0 0
      %1056 = vmatprep.subr.bf16.mxu0 0
      %1057 = vmatpush1.bf16.xpose.msra.mxu0 0
      %1058 = vmatprep.subr.bf16.mxu0 0
      %1059 = vmatpush1.bf16.xpose.msra.mxu0 0
      %1060 = vmatprep.subr.bf16.mxu0 0
      %1061 = vmatpush1.bf16.xpose.msra.mxu0 0
      %1062 = vmatprep.subr.bf16.mxu0 0
      %1063 = vmatpush1.bf16.xpose.msra.mxu0 0
      %1064 = vmatprep.subr.bf16.mxu0 0
      %1065 = vmatpush1.bf16.xpose.msra.mxu0 %v1048
      %1066 = vmatprep.subr.bf16.mxu0 0
      %1067 = vmatpush2.bf16.xpose.msra.mxu0 0
      %1068 = vmatprep.subr.bf16.mxu0 0
      %1069 = vmatpush2.bf16.xpose.msra.mxu0 0
      %1070 = vmatprep.subr.bf16.mxu0 0
      %1071 = vmatpush2.bf16.xpose.msra.mxu0 0
      %1072 = vmatprep.subr.bf16.mxu0 0
      %1073 = vmatpush2.bf16.xpose.msra.mxu0 0
      %1074 = vmatprep.subr.bf16.mxu0 0
      %1075 = vmatpush2.bf16.xpose.msra.mxu0 0
      %1076 = vmatprep.subr.bf16.mxu0 0
      %1077 = vmatpush2.bf16.xpose.msra.mxu0 0
      %1078 = vmatprep.subr.bf16.mxu0 0
      %1079 = vmatpush2.bf16.xpose.msra.mxu0 0
      %1080 = vmatprep.subr.bf16.mxu0 0
      %1081 = vmatpush2.bf16.xpose.msra.mxu0 0
      %1082 = vmatprep.mubr.bf16.mxu0 0
      %1083 = vmatmul.mubr.bf16.gmra.mxu0 %v1045
      %v1084 = vpop.f32.mrf.mxu0
      %v1085 = vadd.f32 0.0, %v1084
      %v1086 = vpop.f32.mrf.mxu0
      %v1087 = vpop.f32.mrf.mxu0
      %v1088 = vadd.f32 0.0, %v1087
      %v1089 = vpop.f32.mrf.mxu0
      %1090 = vdwg.mxu0
      %v1091 = vsel %vm727, %v1085, -inf
      %1092 = vmax.xlane.f32.xlu0 %v1091
      %v1093 = vpop.xlane.xlu0 %1092
      %v1094 = vsel %vm727, %v1088, -inf
      %1095 = vmax.xlane.f32.xlu0 %v1094
      %v1096 = vpop.xlane.xlu0 %1095
      %v1097 = vsub.f32 %v1085, %v1093
      %v1098 = vsub.f32 %v1088, %v1096
      %v1099 = vmul.f32 %v1097, 1.442695
      %v1100 = vpow.pop %v1099
      %v1101 = vmul.f32 %v1098, 1.442695
      %v1102 = vpow.pop %v1101
      %v1103 = vsel %vm727, %v1100, 0.0
      %1104 = vadd.xlane.f32.xlu0 %v1103
      %v1105 = vpop.xlane.xlu0 %1104
      %v1106 = vsel %vm727, %v1102, 0.0
      %1107 = vadd.xlane.f32.xlu0 %v1106
      %v1108 = vpop.xlane.xlu0 %1107
      %v1109 = vrcp.pop %v1105
      %v1110 = vrcp.pop %v1108
      %v1111 = vmul.f32 %v1100, %v1109
      %v1112 = vmul.f32 %v1102, %v1110
      %v1113 = vpack.c.bf16 %v1112, %v1111
      %1114 = vrot.lane.b32.xlu0 %v678, 32
      %v1115 = vpop.permute.xlu0 %1114
      %v1118 = vsel %vm727, %v1113, 0
      %1120 = vmatprep.subr.bf16.mxu0 0
      %1121 = vmatpush1.bf16.msra.mxu0 0
      %1122 = vmatprep.subr.bf16.mxu0 0
      %1123 = vmatpush1.bf16.msra.mxu0 0
      %1124 = vmatprep.subr.bf16.mxu0 0
      %1125 = vmatpush1.bf16.msra.mxu0 0
      %1126 = vmatprep.subr.bf16.mxu0 0
      %1127 = vmatpush1.bf16.msra.mxu0 0
      %1128 = vmatprep.subr.bf16.mxu0 0
      %1129 = vmatpush1.bf16.msra.mxu0 0
      %1130 = vmatprep.subr.bf16.mxu0 0
      %1131 = vmatpush1.bf16.msra.mxu0 0
      %1132 = vmatprep.subr.bf16.mxu0 0
      %1133 = vmatpush1.bf16.msra.mxu0 0
      %1134 = vmatprep.subr.bf16.mxu0 0
      %1135 = vmatpush1.bf16.msra.mxu0 %v1115
      %1136 = vmatprep.subr.bf16.mxu0 0
      %1137 = vmatpush2.bf16.msra.mxu0 0
      %1138 = vmatprep.subr.bf16.mxu0 0
      %1139 = vmatpush2.bf16.msra.mxu0 0
      %1140 = vmatprep.subr.bf16.mxu0 0
      %1141 = vmatpush2.bf16.msra.mxu0 0
      %1142 = vmatprep.subr.bf16.mxu0 0
      %1143 = vmatpush2.bf16.msra.mxu0 0
      %1144 = vmatprep.subr.bf16.mxu0 0
      %1145 = vmatpush2.bf16.msra.mxu0 0
      %1146 = vmatprep.subr.bf16.mxu0 0
      %1147 = vmatpush2.bf16.msra.mxu0 0
      %1148 = vmatprep.subr.bf16.mxu0 0
      %1149 = vmatpush2.bf16.msra.mxu0 0
      %1150 = vmatprep.subr.bf16.mxu0 0
      %1151 = vmatpush2.bf16.msra.mxu0 0
      %1152 = vmatprep.mubr.bf16.mxu0 0
      %1153 = vmatmul.mubr.bf16.gmra.mxu0 %v1118
      %v1154 = vpop.f32.mrf.mxu0
      %v1155 = vadd.f32 0.0, %v1154
      %v1156 = vpop.f32.mrf.mxu0
      %v1157 = vpop.f32.mrf.mxu0
      %v1158 = vadd.f32 0.0, %v1157
      %v1159 = vpop.f32.mrf.mxu0
      %1160 = vdwg.mxu0
      %1163 = vrot.lane.b32.xlu0 %v913, 32
      %v1164 = vpop.permute.xlu0 %1163
      %1165 = vrot.lane.b32.xlu0 %v916, 32
      %v1166 = vpop.permute.xlu0 %1165
      %1171 = vrot.lane.b32.xlu0 %v1034, 64
      %v1172 = vpop.permute.xlu0 %1171
      %1173 = vrot.lane.b32.xlu0 %v1037, 64
      %v1174 = vpop.permute.xlu0 %1173
      %1179 = vrot.lane.b32.xlu0 %v1155, 96
      %v1180 = vpop.permute.xlu0 %1179
      %1181 = vrot.lane.b32.xlu0 %v1158, 96
      %v1182 = vpop.permute.xlu0 %1181
      %v1185 = vsel %vm679, %v789, %v1164
      %v1186 = vsel %vm679, %v792, %v1166
      %vm1187 = vcmask 523264
      %v1188 = vsel %vm1187, %v1185, %v1172
      %v1189 = vsel %vm1187, %v1186, %v1174
      %vm1190 = vcmask 785408
      %v1191 = vsel %vm1190, %v1188, %v1180
      %v1192 = vsel %vm1190, %v1189, %v1182
      %v1193 = vpack.c.bf16 %v1192, %v1191
      %v1194 = vld [vmem:[%s4] sm:$0xf]
      %v1195 = vld [vmem:[%s4 + $0x4] sm:$0xf]
      %v1196 = vld [vmem:[%s4 + $0x8] sm:$0xf]
      %v1197 = vld [vmem:[%s4 + $0xc] sm:$0xf]
      %v1198 = vld [vmem:[%s4 + $0x10] sm:$0xf]
      %v1199 = vld [vmem:[%s4 + $0x14] sm:$0xf]
      %v1200 = vld [vmem:[%s4 + $0x18] sm:$0xf]
      %v1201 = vld [vmem:[%s4 + $0x1c] sm:$0xf]
      %v1202 = vld [vmem:[%s4 + $0x20] sm:$0xf]
      %v1203 = vld [vmem:[%s4 + $0x24] sm:$0xf]
      %v1204 = vld [vmem:[%s4 + $0x28] sm:$0xf]
      %v1205 = vld [vmem:[%s4 + $0x2c] sm:$0xf]
      %v1206 = vld [vmem:[%s4 + $0x30] sm:$0xf]
      %v1207 = vld [vmem:[%s4 + $0x34] sm:$0xf]
      %v1208 = vld [vmem:[%s4 + $0x38] sm:$0xf]
      %v1209 = vld [vmem:[%s4 + $0x3c] sm:$0xf]
      %v1226 = vunpack.c.l.b16 %v1194
      %v1227 = vunpack.c.l.b16 %v1195
      %v1228 = vunpack.c.l.b16 %v1196
      %v1229 = vunpack.c.l.b16 %v1197
      %v1230 = vunpack.c.l.b16 %v1198
      %v1231 = vunpack.c.l.b16 %v1199
      %v1232 = vunpack.c.l.b16 %v1200
      %v1233 = vunpack.c.l.b16 %v1201
      %v1234 = vunpack.c.l.b16 %v1202
      %v1235 = vunpack.c.l.b16 %v1203
      %v1236 = vunpack.c.l.b16 %v1204
      %v1237 = vunpack.c.l.b16 %v1205
      %v1238 = vunpack.c.l.b16 %v1206
      %v1239 = vunpack.c.l.b16 %v1207
      %v1240 = vunpack.c.l.b16 %v1208
      %v1241 = vunpack.c.l.b16 %v1209
      %v1242 = vpack.c.b16 %v1227, %v1226
      %v1243 = vpack.c.b16 %v1229, %v1228
      %v1244 = vpack.c.b16 %v1231, %v1230
      %v1245 = vpack.c.b16 %v1233, %v1232
      %v1246 = vpack.c.b16 %v1235, %v1234
      %v1247 = vpack.c.b16 %v1237, %v1236
      %v1248 = vpack.c.b16 %v1239, %v1238
      %v1249 = vpack.c.b16 %v1241, %v1240
      %1258 = vmatprep.subr.bf16.mxu0 0
      %1259 = vmatpush1.bf16.msra.mxu0 %v1249
      %1260 = vmatprep.subr.bf16.mxu0 0
      %1261 = vmatpush1.bf16.msra.mxu0 %v1248
      %1262 = vmatprep.subr.bf16.mxu0 0
      %1263 = vmatpush1.bf16.msra.mxu0 %v1247
      %1264 = vmatprep.subr.bf16.mxu0 0
      %1265 = vmatpush1.bf16.msra.mxu0 %v1246
      %1266 = vmatprep.subr.bf16.mxu0 0
      %1267 = vmatpush1.bf16.msra.mxu0 %v1245
      %1268 = vmatprep.subr.bf16.mxu0 0
      %1269 = vmatpush1.bf16.msra.mxu0 %v1244
      %1270 = vmatprep.subr.bf16.mxu0 0
      %1271 = vmatpush1.bf16.msra.mxu0 %v1243
      %1272 = vmatprep.subr.bf16.mxu0 0
      %1273 = vmatpush1.bf16.msra.mxu0 %v1242
      %1274 = vmatprep.subr.bf16.mxu0 0
      %1275 = vmatpush2.bf16.msra.mxu0 0
      %1276 = vmatprep.subr.bf16.mxu0 0
      %1277 = vmatpush2.bf16.msra.mxu0 0
      %1278 = vmatprep.subr.bf16.mxu0 0
      %1279 = vmatpush2.bf16.msra.mxu0 0
      %1280 = vmatprep.subr.bf16.mxu0 0
      %1281 = vmatpush2.bf16.msra.mxu0 0
      %1282 = vmatprep.subr.bf16.mxu0 0
      %1283 = vmatpush2.bf16.msra.mxu0 0
      %1284 = vmatprep.subr.bf16.mxu0 0
      %1285 = vmatpush2.bf16.msra.mxu0 0
      %1286 = vmatprep.subr.bf16.mxu0 0
      %1287 = vmatpush2.bf16.msra.mxu0 0
      %1288 = vmatprep.subr.bf16.mxu0 0
      %1289 = vmatpush2.bf16.msra.mxu0 0
      %1290 = vmatprep.mubr.bf16.mxu0 0
      %1291 = vmatmul.mubr.bf16.gmra.mxu0 %v1193
      %v1292 = vpop.f32.mrf.mxu0
      %v1293 = vadd.f32 0.0, %v1292
      %v1294 = vpop.f32.mrf.mxu0
      %v1295 = vpop.f32.mrf.mxu0
      %v1296 = vadd.f32 0.0, %v1295
      %v1297 = vpop.f32.mrf.mxu0
      %1298 = vdwg.mxu0
      %v1299 = vadd.f32 %v388, %v1293
      %v1300 = vadd.f32 %v389, %v1296
      %v1301 = vld [vmem:[%s5] sm:$0x1]
      %v1302 = vld [vmem:[%s6] sm:$0x1]
      %1303 = vadd.xlane.f32.xlu0 %v1299
      %v1304 = vpop.xlane.xlu0 %1303
      %1305 = vadd.xlane.f32.xlu0 %v1300
      %v1306 = vpop.xlane.xlu0 %1305
      %v1307 = vmul.f32 %v1304, %v396
      %v1308 = vmul.f32 %v1306, %v396
      %v1309 = vsub.f32 %v1299, %v1307
      %v1310 = vsub.f32 %v1300, %v1308
      %v1311 = vmul.f32 %v1309, %v1309
      %v1312 = vmul.f32 %v1310, %v1310
      %1313 = vadd.xlane.f32.xlu0 %v1311
      %v1314 = vpop.xlane.xlu0 %1313
      %1315 = vadd.xlane.f32.xlu0 %v1312
      %v1316 = vpop.xlane.xlu0 %1315
      %v1317 = vmul.f32 %v1314, %v396
      %v1318 = vmul.f32 %v1316, %v396
      %v1319 = vadd.f32 %v1317, 1e-05
      %v1320 = vadd.f32 %v1318, 1e-05
      %v1321 = vrsqrt.pop %v1319
      %v1322 = vrsqrt.pop %v1320
      %v1323 = vmul.f32 %v1309, %v1321
      %v1324 = vmul.f32 %v1310, %v1322
      %v1326 = vlaneseq
      %v1327 = vshrl.u32 %v1326, 7
      %v1328 = vsub.s32 0, %v1327
      %v1329 = vrot.slane %v1301, %v1328
      %v1331 = vmul.f32 %v1323, %v1329
      %v1332 = vmul.f32 %v1324, %v1329
      %v1334 = vlaneseq
      %v1335 = vshrl.u32 %v1334, 7
      %v1336 = vsub.s32 0, %v1335
      %v1337 = vrot.slane %v1302, %v1336
      %v1339 = vadd.f32 %v1331, %v1337
      %v1340 = vadd.f32 %v1332, %v1337
      %v1341 = vpack.c.bf16 %v1340, %v1339
      %v1342 = vld [vmem:[%s7] sm:$0xff]
      %v1343 = vld [vmem:[%s7 + $0x8] sm:$0xff]
      %v1344 = vld [vmem:[%s7 + $0x10] sm:$0xff]
      %v1345 = vld [vmem:[%s7 + $0x18] sm:$0xff]
      %v1346 = vld [vmem:[%s7 + $0x20] sm:$0xff]
      %v1347 = vld [vmem:[%s7 + $0x28] sm:$0xff]
      %v1348 = vld [vmem:[%s7 + $0x30] sm:$0xff]
      %v1349 = vld [vmem:[%s7 + $0x38] sm:$0xff]
      %v1350 = vld [vmem:[%s7 + $0x40] sm:$0xff]
      %v1351 = vld [vmem:[%s7 + $0x48] sm:$0xff]
      %v1352 = vld [vmem:[%s7 + $0x50] sm:$0xff]
      %v1353 = vld [vmem:[%s7 + $0x58] sm:$0xff]
      %v1354 = vld [vmem:[%s7 + $0x60] sm:$0xff]
      %v1355 = vld [vmem:[%s7 + $0x68] sm:$0xff]
      %v1356 = vld [vmem:[%s7 + $0x70] sm:$0xff]
      %v1357 = vld [vmem:[%s7 + $0x78] sm:$0xff]
      %v1358 = vld [vmem:[%s8] sm:$0x3]
      %v1360 = vlaneseq
      %v1361 = vshrl.u32 %v1360, 7
      %v1362 = vsub.s32 0, %v1361
      %v1363 = vrot.slane %v1358, %v1362
      %v1364 = vlaneseq
      %v1365 = vshrl.u32 %v1364, 7
      %v1366 = vsub.s32 1, %v1365
      %v1367 = vrot.slane %v1358, %v1366
      %v1386 = vunpack.c.l.b16 %v1342
      %v1387 = vunpack.c.h.b16 %v1342
      %v1388 = vunpack.c.l.b16 %v1343
      %v1389 = vunpack.c.h.b16 %v1343
      %v1390 = vunpack.c.l.b16 %v1344
      %v1391 = vunpack.c.h.b16 %v1344
      %v1392 = vunpack.c.l.b16 %v1345
      %v1393 = vunpack.c.h.b16 %v1345
      %v1394 = vunpack.c.l.b16 %v1346
      %v1395 = vunpack.c.h.b16 %v1346
      %v1396 = vunpack.c.l.b16 %v1347
      %v1397 = vunpack.c.h.b16 %v1347
      %v1398 = vunpack.c.l.b16 %v1348
      %v1399 = vunpack.c.h.b16 %v1348
      %v1400 = vunpack.c.l.b16 %v1349
      %v1401 = vunpack.c.h.b16 %v1349
      %v1402 = vunpack.c.l.b16 %v1350
      %v1403 = vunpack.c.h.b16 %v1350
      %v1404 = vunpack.c.l.b16 %v1351
      %v1405 = vunpack.c.h.b16 %v1351
      %v1406 = vunpack.c.l.b16 %v1352
      %v1407 = vunpack.c.h.b16 %v1352
      %v1408 = vunpack.c.l.b16 %v1353
      %v1409 = vunpack.c.h.b16 %v1353
      %v1410 = vunpack.c.l.b16 %v1354
      %v1411 = vunpack.c.h.b16 %v1354
      %v1412 = vunpack.c.l.b16 %v1355
      %v1413 = vunpack.c.h.b16 %v1355
      %v1414 = vunpack.c.l.b16 %v1356
      %v1415 = vunpack.c.h.b16 %v1356
      %v1416 = vunpack.c.l.b16 %v1357
      %v1417 = vunpack.c.h.b16 %v1357
      %v1418 = vpack.c.b16 %v1388, %v1386
      %v1419 = vpack.c.b16 %v1389, %v1387
      %v1420 = vpack.c.b16 %v1392, %v1390
      %v1421 = vpack.c.b16 %v1393, %v1391
      %v1422 = vpack.c.b16 %v1396, %v1394
      %v1423 = vpack.c.b16 %v1397, %v1395
      %v1424 = vpack.c.b16 %v1400, %v1398
      %v1425 = vpack.c.b16 %v1401, %v1399
      %v1426 = vpack.c.b16 %v1404, %v1402
      %v1427 = vpack.c.b16 %v1405, %v1403
      %v1428 = vpack.c.b16 %v1408, %v1406
      %v1429 = vpack.c.b16 %v1409, %v1407
      %v1430 = vpack.c.b16 %v1412, %v1410
      %v1431 = vpack.c.b16 %v1413, %v1411
      %v1432 = vpack.c.b16 %v1416, %v1414
      %v1433 = vpack.c.b16 %v1417, %v1415
      %1450 = vmatprep.subr.bf16.mxu0 %v1433
      %1451 = vmatpush1.bf16.msra.mxu0 %v1432
      %1452 = vmatprep.subr.bf16.mxu0 %v1431
      %1453 = vmatpush1.bf16.msra.mxu0 %v1430
      %1454 = vmatprep.subr.bf16.mxu0 %v1429
      %1455 = vmatpush1.bf16.msra.mxu0 %v1428
      %1456 = vmatprep.subr.bf16.mxu0 %v1427
      %1457 = vmatpush1.bf16.msra.mxu0 %v1426
      %1458 = vmatprep.subr.bf16.mxu0 %v1425
      %1459 = vmatpush1.bf16.msra.mxu0 %v1424
      %1460 = vmatprep.subr.bf16.mxu0 %v1423
      %1461 = vmatpush1.bf16.msra.mxu0 %v1422
      %1462 = vmatprep.subr.bf16.mxu0 %v1421
      %1463 = vmatpush1.bf16.msra.mxu0 %v1420
      %1464 = vmatprep.subr.bf16.mxu0 %v1419
      %1465 = vmatpush1.bf16.msra.mxu0 %v1418
      %1466 = vmatprep.subr.bf16.mxu0 0
      %1467 = vmatpush2.bf16.msra.mxu0 0
      %1468 = vmatprep.subr.bf16.mxu0 0
      %1469 = vmatpush2.bf16.msra.mxu0 0
      %1470 = vmatprep.subr.bf16.mxu0 0
      %1471 = vmatpush2.bf16.msra.mxu0 0
      %1472 = vmatprep.subr.bf16.mxu0 0
      %1473 = vmatpush2.bf16.msra.mxu0 0
      %1474 = vmatprep.subr.bf16.mxu0 0
      %1475 = vmatpush2.bf16.msra.mxu0 0
      %1476 = vmatprep.subr.bf16.mxu0 0
      %1477 = vmatpush2.bf16.msra.mxu0 0
      %1478 = vmatprep.subr.bf16.mxu0 0
      %1479 = vmatpush2.bf16.msra.mxu0 0
      %1480 = vmatprep.subr.bf16.mxu0 0
      %1481 = vmatpush2.bf16.msra.mxu0 0
      %1482 = vmatprep.mubr.bf16.mxu0 0
      %1483 = vmatmul.mubr.bf16.gmra.mxu0 %v1341
      %v1484 = vpop.f32.mrf.mxu0
      %v1485 = vadd.f32 %v1363, %v1484
      %v1486 = vpop.f32.mrf.mxu0
      %v1487 = vadd.f32 %v1367, %v1486
      %v1488 = vpop.f32.mrf.mxu0
      %v1489 = vadd.f32 %v1363, %v1488
      %v1490 = vpop.f32.mrf.mxu0
      %v1491 = vadd.f32 %v1367, %v1490
      %1492 = vdwg.mxu0
      %v1493 = vmul.f32 %v1485, 0.5
      %v1494 = vmul.f32 %v1487, 0.5
      %v1495 = vmul.f32 %v1489, 0.5
      %v1496 = vmul.f32 %v1491, 0.5
      %v1497 = vmul.f32 %v1485, 0.70710677
      %v1498 = vmul.f32 %v1487, 0.70710677
      %v1499 = vmul.f32 %v1489, 0.70710677
      %v1500 = vmul.f32 %v1491, 0.70710677
      %vm1501 = vcmp.ge.f32.partialorder %v1497, 0.0
      %vm1502 = vcmp.ge.f32.partialorder %v1498, 0.0
      %vm1503 = vcmp.ge.f32.partialorder %v1499, 0.0
      %vm1504 = vcmp.ge.f32.partialorder %v1500, 0.0
      %v1505 = vsel %vm1501, 1.0, -1.0
      %v1506 = vsel %vm1502, 1.0, -1.0
      %v1507 = vsel %vm1503, 1.0, -1.0
      %v1508 = vsel %vm1504, 1.0, -1.0
      %v1509 = vand.u32 2147483647, %v1497
      %v1510 = vand.u32 2147483647, %v1498
      %v1511 = vand.u32 2147483647, %v1499
      %v1512 = vand.u32 2147483647, %v1500
      %v1513 = vmul.f32 %v1509, 0.3275911
      %v1514 = vmul.f32 %v1510, 0.3275911
      %v1515 = vmul.f32 %v1511, 0.3275911
      %v1516 = vmul.f32 %v1512, 0.3275911
      %v1517 = vadd.f32 %v1513, 1.0
      %v1518 = vadd.f32 %v1514, 1.0
      %v1519 = vadd.f32 %v1515, 1.0
      %v1520 = vadd.f32 %v1516, 1.0
      %v1521 = vrcp.pop %v1517
      %v1522 = vmul.f32 1.0, %v1521
      %v1523 = vrcp.pop %v1518
      %v1524 = vmul.f32 1.0, %v1523
      %v1525 = vrcp.pop %v1519
      %v1526 = vmul.f32 1.0, %v1525
      %v1527 = vrcp.pop %v1520
      %v1528 = vmul.f32 1.0, %v1527
      %v1529 = vmul.f32 %v1522, 1.0614054
      %v1530 = vmul.f32 %v1524, 1.0614054
      %v1531 = vmul.f32 %v1526, 1.0614054
      %v1532 = vmul.f32 %v1528, 1.0614054
      %v1533 = vadd.f32 %v1529, -1.4531521
      %v1534 = vadd.f32 %v1530, -1.4531521
      %v1535 = vadd.f32 %v1531, -1.4531521
      %v1536 = vadd.f32 %v1532, -1.4531521
      %v1537 = vmul.f32 %v1533, %v1522
      %v1538 = vmul.f32 %v1534, %v1524
      %v1539 = vmul.f32 %v1535, %v1526
      %v1540 = vmul.f32 %v1536, %v1528
      %v1541 = vadd.f32 %v1537, 1.4214138
      %v1542 = vadd.f32 %v1538, 1.4214138
      %v1543 = vadd.f32 %v1539, 1.4214138
      %v1544 = vadd.f32 %v1540, 1.4214138
      %v1545 = vmul.f32 %v1541, %v1522
      %v1546 = vmul.f32 %v1542, %v1524
      %v1547 = vmul.f32 %v1543, %v1526
      %v1548 = vmul.f32 %v1544, %v1528
      %v1549 = vadd.f32 %v1545, -0.28449672
      %v1550 = vadd.f32 %v1546, -0.28449672
      %v1551 = vadd.f32 %v1547, -0.28449672
      %v1552 = vadd.f32 %v1548, -0.28449672
      %v1553 = vmul.f32 %v1549, %v1522
      %v1554 = vmul.f32 %v1550, %v1524
      %v1555 = vmul.f32 %v1551, %v1526
      %v1556 = vmul.f32 %v1552, %v1528
      %v1557 = vadd.f32 %v1553, 0.2548296
      %v1558 = vadd.f32 %v1554, 0.2548296
      %v1559 = vadd.f32 %v1555, 0.2548296
      %v1560 = vadd.f32 %v1556, 0.2548296
      %v1561 = vmul.f32 %v1557, %v1522
      %v1562 = vmul.f32 %v1558, %v1524
      %v1563 = vmul.f32 %v1559, %v1526
      %v1564 = vmul.f32 %v1560, %v1528
      %v1565 = vsub.f32 0.0, %v1509
      %v1566 = vsub.f32 0.0, %v1510
      %v1567 = vsub.f32 0.0, %v1511
      %v1568 = vsub.f32 0.0, %v1512
      %v1569 = vmul.f32 %v1565, %v1509
      %v1570 = vmul.f32 %v1566, %v1510
      %v1571 = vmul.f32 %v1567, %v1511
      %v1572 = vmul.f32 %v1568, %v1512
      %v1573 = vmul.f32 %v1569, 1.442695
      %v1574 = vpow.pop %v1573
      %v1575 = vmul.f32 %v1570, 1.442695
      %v1576 = vpow.pop %v1575
      %v1577 = vmul.f32 %v1571, 1.442695
      %v1578 = vpow.pop %v1577
      %v1579 = vmul.f32 %v1572, 1.442695
      %v1580 = vpow.pop %v1579
      %v1581 = vmul.f32 %v1561, %v1574
      %v1582 = vmul.f32 %v1562, %v1576
      %v1583 = vmul.f32 %v1563, %v1578
      %v1584 = vmul.f32 %v1564, %v1580
      %v1585 = vsub.f32 1.0, %v1581
      %v1586 = vsub.f32 1.0, %v1582
      %v1587 = vsub.f32 1.0, %v1583
      %v1588 = vsub.f32 1.0, %v1584
      %v1589 = vmul.f32 %v1505, %v1585
      %v1590 = vmul.f32 %v1506, %v1586
      %v1591 = vmul.f32 %v1507, %v1587
      %v1592 = vmul.f32 %v1508, %v1588
      %v1593 = vadd.f32 %v1589, 1.0
      %v1594 = vadd.f32 %v1590, 1.0
      %v1595 = vadd.f32 %v1591, 1.0
      %v1596 = vadd.f32 %v1592, 1.0
      %v1597 = vmul.f32 %v1493, %v1593
      %v1598 = vmul.f32 %v1494, %v1594
      %v1599 = vmul.f32 %v1495, %v1595
      %v1600 = vmul.f32 %v1496, %v1596
      %v1601 = vpack.c.bf16 %v1599, %v1597
      %v1602 = vpack.c.bf16 %v1600, %v1598
      %v1603 = vld [vmem:[%s9] sm:$0xf]
      %v1604 = vld [vmem:[%s9 + $0x4] sm:$0xf]
      %v1605 = vld [vmem:[%s9 + $0x8] sm:$0xf]
      %v1606 = vld [vmem:[%s9 + $0xc] sm:$0xf]
      %v1607 = vld [vmem:[%s9 + $0x10] sm:$0xf]
      %v1608 = vld [vmem:[%s9 + $0x14] sm:$0xf]
      %v1609 = vld [vmem:[%s9 + $0x18] sm:$0xf]
      %v1610 = vld [vmem:[%s9 + $0x1c] sm:$0xf]
      %v1611 = vld [vmem:[%s9 + $0x20] sm:$0xf]
      %v1612 = vld [vmem:[%s9 + $0x24] sm:$0xf]
      %v1613 = vld [vmem:[%s9 + $0x28] sm:$0xf]
      %v1614 = vld [vmem:[%s9 + $0x2c] sm:$0xf]
      %v1615 = vld [vmem:[%s9 + $0x30] sm:$0xf]
      %v1616 = vld [vmem:[%s9 + $0x34] sm:$0xf]
      %v1617 = vld [vmem:[%s9 + $0x38] sm:$0xf]
      %v1618 = vld [vmem:[%s9 + $0x3c] sm:$0xf]
      %v1619 = vld [vmem:[%s9 + $0x40] sm:$0xf]
      %v1620 = vld [vmem:[%s9 + $0x44] sm:$0xf]
      %v1621 = vld [vmem:[%s9 + $0x48] sm:$0xf]
      %v1622 = vld [vmem:[%s9 + $0x4c] sm:$0xf]
      %v1623 = vld [vmem:[%s9 + $0x50] sm:$0xf]
      %v1624 = vld [vmem:[%s9 + $0x54] sm:$0xf]
      %v1625 = vld [vmem:[%s9 + $0x58] sm:$0xf]
      %v1626 = vld [vmem:[%s9 + $0x5c] sm:$0xf]
      %v1627 = vld [vmem:[%s9 + $0x60] sm:$0xf]
      %v1628 = vld [vmem:[%s9 + $0x64] sm:$0xf]
      %v1629 = vld [vmem:[%s9 + $0x68] sm:$0xf]
      %v1630 = vld [vmem:[%s9 + $0x6c] sm:$0xf]
      %v1631 = vld [vmem:[%s9 + $0x70] sm:$0xf]
      %v1632 = vld [vmem:[%s9 + $0x74] sm:$0xf]
      %v1633 = vld [vmem:[%s9 + $0x78] sm:$0xf]
      %v1634 = vld [vmem:[%s9 + $0x7c] sm:$0xf]
      %v1635 = vld [vmem:[%s10] sm:$0x1]
      %v1637 = vlaneseq
      %v1638 = vshrl.u32 %v1637, 7
      %v1639 = vsub.s32 0, %v1638
      %v1640 = vrot.slane %v1635, %v1639
      %v1674 = vunpack.c.l.b16 %v1603
      %v1675 = vunpack.c.l.b16 %v1604
      %v1676 = vunpack.c.l.b16 %v1605
      %v1677 = vunpack.c.l.b16 %v1606
      %v1678 = vunpack.c.l.b16 %v1607
      %v1679 = vunpack.c.l.b16 %v1608
      %v1680 = vunpack.c.l.b16 %v1609
      %v1681 = vunpack.c.l.b16 %v1610
      %v1682 = vunpack.c.l.b16 %v1611
      %v1683 = vunpack.c.l.b16 %v1612
      %v1684 = vunpack.c.l.b16 %v1613
      %v1685 = vunpack.c.l.b16 %v1614
      %v1686 = vunpack.c.l.b16 %v1615
      %v1687 = vunpack.c.l.b16 %v1616
      %v1688 = vunpack.c.l.b16 %v1617
      %v1689 = vunpack.c.l.b16 %v1618
      %v1690 = vunpack.c.l.b16 %v1619
      %v1691 = vunpack.c.l.b16 %v1620
      %v1692 = vunpack.c.l.b16 %v1621
      %v1693 = vunpack.c.l.b16 %v1622
      %v1694 = vunpack.c.l.b16 %v1623
      %v1695 = vunpack.c.l.b16 %v1624
      %v1696 = vunpack.c.l.b16 %v1625
      %v1697 = vunpack.c.l.b16 %v1626
      %v1698 = vunpack.c.l.b16 %v1627
      %v1699 = vunpack.c.l.b16 %v1628
      %v1700 = vunpack.c.l.b16 %v1629
      %v1701 = vunpack.c.l.b16 %v1630
      %v1702 = vunpack.c.l.b16 %v1631
      %v1703 = vunpack.c.l.b16 %v1632
      %v1704 = vunpack.c.l.b16 %v1633
      %v1705 = vunpack.c.l.b16 %v1634
      %v1706 = vpack.c.b16 %v1675, %v1674
      %v1707 = vpack.c.b16 %v1677, %v1676
      %v1708 = vpack.c.b16 %v1679, %v1678
      %v1709 = vpack.c.b16 %v1681, %v1680
      %v1710 = vpack.c.b16 %v1683, %v1682
      %v1711 = vpack.c.b16 %v1685, %v1684
      %v1712 = vpack.c.b16 %v1687, %v1686
      %v1713 = vpack.c.b16 %v1689, %v1688
      %v1714 = vpack.c.b16 %v1691, %v1690
      %v1715 = vpack.c.b16 %v1693, %v1692
      %v1716 = vpack.c.b16 %v1695, %v1694
      %v1717 = vpack.c.b16 %v1697, %v1696
      %v1718 = vpack.c.b16 %v1699, %v1698
      %v1719 = vpack.c.b16 %v1701, %v1700
      %v1720 = vpack.c.b16 %v1703, %v1702
      %v1721 = vpack.c.b16 %v1705, %v1704
      %1738 = vmatprep.subr.bf16.mxu0 0
      %1739 = vmatpush1.bf16.msra.mxu0 %v1713
      %1740 = vmatprep.subr.bf16.mxu0 0
      %1741 = vmatpush1.bf16.msra.mxu0 %v1712
      %1742 = vmatprep.subr.bf16.mxu0 0
      %1743 = vmatpush1.bf16.msra.mxu0 %v1711
      %1744 = vmatprep.subr.bf16.mxu0 0
      %1745 = vmatpush1.bf16.msra.mxu0 %v1710
      %1746 = vmatprep.subr.bf16.mxu0 0
      %1747 = vmatpush1.bf16.msra.mxu0 %v1709
      %1748 = vmatprep.subr.bf16.mxu0 0
      %1749 = vmatpush1.bf16.msra.mxu0 %v1708
      %1750 = vmatprep.subr.bf16.mxu0 0
      %1751 = vmatpush1.bf16.msra.mxu0 %v1707
      %1752 = vmatprep.subr.bf16.mxu0 0
      %1753 = vmatpush1.bf16.msra.mxu0 %v1706
      %1754 = vmatprep.subr.bf16.mxu0 0
      %1755 = vmatpush2.bf16.msra.mxu0 %v1721
      %1756 = vmatprep.subr.bf16.mxu0 0
      %1757 = vmatpush2.bf16.msra.mxu0 %v1720
      %1758 = vmatprep.subr.bf16.mxu0 0
      %1759 = vmatpush2.bf16.msra.mxu0 %v1719
      %1760 = vmatprep.subr.bf16.mxu0 0
      %1761 = vmatpush2.bf16.msra.mxu0 %v1718
      %1762 = vmatprep.subr.bf16.mxu0 0
      %1763 = vmatpush2.bf16.msra.mxu0 %v1717
      %1764 = vmatprep.subr.bf16.mxu0 0
      %1765 = vmatpush2.bf16.msra.mxu0 %v1716
      %1766 = vmatprep.subr.bf16.mxu0 0
      %1767 = vmatpush2.bf16.msra.mxu0 %v1715
      %1768 = vmatprep.subr.bf16.mxu0 0
      %1769 = vmatpush2.bf16.msra.mxu0 %v1714
      %1770 = vmatprep.mubr.bf16.mxu0 %v1602
      %1771 = vmatmul.mubr.bf16.gmra.mxu0 %v1601
      %v1772 = vpop.f32.mrf.mxu0
      %v1773 = vadd.f32 %v1640, %v1772
      %v1774 = vpop.f32.mrf.mxu0
      %v1775 = vpop.f32.mrf.mxu0
      %v1776 = vadd.f32 %v1640, %v1775
      %v1777 = vpop.f32.mrf.mxu0
      %1778 = vdwg.mxu0
      %v1779 = vadd.f32 %v1299, %v1773
      %v1780 = vadd.f32 %v1300, %v1776
      %1781 = vst [vmem:[%s386] sm:$0xff] %v1779
      %1782 = vst [vmem:[%s386 + $0x8] sm:$0xff] %v1780
      %p1783 = scmp.lt.s32.totalorder %s22, 1
      %s1784 = scalar_select %p1783, %s22, 1
      %s1785 = smul.addr %s1784, 2
      %s1786 = smul.addr %s1785, 8
      %s1787 = scalar_lea.vmem %s11, %s1786
      // Predicated region
      $region65: #{image_meta_model.5} parent=63 // pred_check
        %p1788 = pneg %p276
      $region66: #{image_meta_model.5} parent=63 // pred_check_branch
        %1790 = sbr.rel (%p1788) target = $region68
      $region67: #{image_meta_model.5} parent=63 // pred_region
        _
      $region68: #{image_meta_model.5} parent=63 // pred_fallthru
        _
    $region64: #{image_meta_model.5} parent=5 // pred_fallthru
      _
    %p1791 = scmp.le.s32.totalorder 2, %s17
    // Predicated region
    $region69: #{image_meta_model.5} parent=5 // pred_check
      %p1792 = pneg %p1791
    $region70: #{image_meta_model.5} parent=5 // pred_check_branch
      %1794 = sbr.rel (%p1792) target = $region72
    $region71: #{image_meta_model.5} parent=5 // pred_region
      %s1795 = ssub.s32 %s17, 2
      // Predicated region
      $region73: #{image_meta_model.5} parent=71 // pred_check
        %p1796 = pneg %p282
      $region74: #{image_meta_model.5} parent=71 // pred_check_branch
        %1798 = sbr.rel (%p1796) target = $region76
      $region75: #{image_meta_model.5} parent=71 // pred_region
        %p1799 = scmp.lt.s32.totalorder %s23, 1
        %s1800 = scalar_select %p1799, %s23, 1
        %s1801 = smul.addr %s1800, 2
        %s1802 = smul.addr %s1801, 8
        %s1803 = scalar_lea.vmem %s11, %s1802
      $region76: #{image_meta_model.5} parent=71 // pred_fallthru
        _
    $region72: #{image_meta_model.5} parent=5 // pred_fallthru
      _
  $region6: #{image_meta_model.5} parent=0 // loop_footer
    %s21 = sadd.s32 1, %s17
  $region7: #{image_meta_model.5} parent=0 // loop_footer_branch
    %16 = sbr.rel target = $region3
  $region8: #{image_meta_model.5} parent=0 // loop_exit
    _

</llo_original>
